<compile_context>
chip_gen: v5e
topology: v5e:2x2
jax: 0.10.0
libtpu: 0.0.40
codegen_flags: <defaults>
</compile_context>

<pallas_src>
import jax
import jax.numpy as jnp
from jax.experimental import pallas as pl
from jax.experimental.pallas import tpu as pltpu

L_IN = 16           # input sequence length
L_CONV1 = 15        # (16 + 4 - 6) + 1
L_POOL = 7          # maxpool(3, stride=2) of length 15
L_CAT = 2 * L_POOL  # 14
L_CONV2 = 7         # conv(k=4, p=1, s=2) of length 14
BN_EPS = 1e-5
HP = jax.lax.Precision.HIGHEST

# aux column layout (per branch; 32 channels on sublanes, columns on lanes):
#   0: conv1 bias   1: BN gamma   2: BN beta   3..8: conv1 taps k=0..5
#   branch 0 only -> 9: fused fc1 bias   10: fc2 weight   11: fc2 bias
AUX_COLS = 12


def _disc_z_kernel(x_ref, aux_ref, wf_ref, out_ref):
    B = x_ref.shape[-1]
    xp = x_ref[...]                   # (2, 20, 1, B)  stacked padded inputs [z, rec]
    vp = aux_ref[...]                 # (2, 32, 12)    packed per-channel vectors

    b1 = vp[:, None, :, 0:1]          # (2, 1, 32, 1) conv1 bias
    g1 = vp[:, None, :, 1:2]          # BN gamma
    be1 = vp[:, None, :, 2:3]         # BN beta

    # Conv1d(1, 32, k=6, pad=2), both branches at once: 6 broadcast FMAs (VPU).
    acc = xp[:, 0:L_CONV1] * vp[:, None, :, 3:4] + b1            # (2, 15, 32, B)
    for k in range(1, 6):
        acc = acc + xp[:, k:k + L_CONV1] * vp[:, None, :, 3 + k:4 + k]
    h = jnp.maximum(acc, 0.0)                                    # ReLU

    # BatchNorm1d (train mode): per-branch single-pass stats over (N, L), biased var.
    n = float(L_CONV1 * B)
    s = jnp.sum(jnp.sum(h, axis=1), axis=-1, keepdims=True)[:, None]        # (2,1,32,1)
    ss = jnp.sum(jnp.sum(h * h, axis=1), axis=-1, keepdims=True)[:, None]   # (2,1,32,1)
    mu = s * (1.0 / n)
    var = jnp.maximum(ss * (1.0 / n) - mu * mu, 0.0)
    hn = (h - mu) * jax.lax.rsqrt(var + BN_EPS) * g1 + be1       # (2, 15, 32, B)

    # MaxPool1d(3, stride=2) + cat(dim=length) + Flatten -> (448, B).
    # Slabs are sublane-aligned (32 rows each); order matches PyTorch flatten.
    slabs = [jnp.maximum(jnp.maximum(hn[br, 2 * t], hn[br, 2 * t + 1]),
                         hn[br, 2 * t + 2])
             for br in range(2) for t in range(L_POOL)]
    cat = jnp.concatenate(slabs, axis=0)                         # (448, B)

    # conv2 + Flatten + fc1 fused into ONE MXU matmul with pre-folded bias.
    y = jnp.dot(wf_ref[...], cat, preferred_element_type=jnp.float32,
                precision=HP) + vp[0, :, 9:10]                   # (32, B)
    y = jnp.where(y > 0, y, 0.2 * y)                             # LeakyReLU(0.2)

    # fc2: (1,32)@(32,B) done as multiply + sublane reduce (avoids a tiny matmul).
    out = jnp.sum(vp[0, :, 10:11] * y, axis=0, keepdims=True) + vp[0, 0:1, 11:12]
    out_ref[...] = out                                           # (1, B) lane-dense store


@jax.jit
def discriminator_z_forward(z, rec, params):
    """z, rec: (B, 1, 16) float32 (PyTorch NCW). Returns (B, 1) float32."""
    B = z.shape[0]

    def prep(x):                                    # (B,1,16) -> (20, 1, B)
        x = x[:, 0, :].astype(jnp.float32)
        x = jnp.pad(x, ((0, 0), (2, 2)))            # conv1 padding = 2
        return jnp.transpose(x, (1, 0))[:, None, :]

    x_pack = jnp.stack([prep(z), prep(rec)], axis=0)                    # (2, 20, 1, B)

    # ---- fuse Conv1d(32,16,k=4,p=1,s=2) + Flatten + Linear(112,32) ----------
    # w2[k, ci, co] = conv2_w[co, ci, k];  w3[t, co, o] = fc1_w[o, co*7 + t]
    w2 = jnp.transpose(params['conv2_w'], (2, 1, 0)).astype(jnp.float32)            # (4, 32, 16)
    w3 = jnp.transpose(params['fc1_w'].reshape(32, 16, L_CONV2),
                       (2, 1, 0)).astype(jnp.float32)                               # (7, 16, 32)
    wf = jnp.zeros((L_CAT, 32, 32), jnp.float32)
    for t in range(L_CONV2):
        for k in range(4):
            j = 2 * t + k - 1                       # conv2 padding = 1
            if 0 <= j < L_CAT:
                wf = wf.at[j].add(jnp.dot(w2[k], w3[t], precision=HP))
    wf_t = jnp.transpose(wf.reshape(L_CAT * 32, 32), (1, 0))            # (32, 448)
    # conv2 bias folded through fc1 (b2 is added for every output position t).
    b_fused = params['fc1_b'].astype(jnp.float32) + jnp.einsum(
        'c,tco->o', params['conv2_b'].astype(jnp.float32), w3, precision=HP)        # (32,)

    # ---- pack per-channel vectors + conv1 taps into one (2, 32, 12) slab -----
    z32 = jnp.zeros((32,), jnp.float32)
    aux_z = jnp.stack(
        [params['conv_z_b'], params['bn_z_g'], params['bn_z_b']]
        + [params['conv_z_w'][:, 0, k] for k in range(6)]
        + [b_fused, params['fc2_w'][0, :], jnp.broadcast_to(params['fc2_b'], (32,))],
        axis=1)                                                         # (32, 12)
    aux_r = jnp.stack(
        [params['conv_r_b'], params['bn_r_g'], params['bn_r_b']]
        + [params['conv_r_w'][:, 0, k] for k in range(6)]
        + [z32, z32, z32],
        axis=1)                                                         # (32, 12)
    aux = jnp.stack([aux_z, aux_r], axis=0).astype(jnp.float32)         # (2, 32, 12)

    vmem = pltpu.MemorySpace.VMEM
    out = pl.pallas_call(
        _disc_z_kernel,
        out_shape=jax.ShapeDtypeStruct((1, B), jnp.float32),
        in_specs=[pl.BlockSpec(memory_space=vmem) for _ in range(3)],
        out_specs=pl.BlockSpec(memory_space=vmem),
    )(x_pack, aux, wf_t)
    return jnp.transpose(out, (1, 0))                                   # (B, 1)


def reference_forward(z, rec, params):
    """Plain-JAX mirror of the PyTorch module (train-mode BatchNorm)."""
    dn = ('NCH', 'OIH', 'NCH')

    def branch(x, w, b, g, be):
        h = jax.lax.conv_general_dilated(x, w, window_strides=(1,),
                                         padding=((2, 2),), dimension_numbers=dn,
                                         precision=HP)
        h = h + b[None, :, None]
        h = jnp.maximum(h, 0.0)
        mu = jnp.mean(h, axis=(0, 2), keepdims=True)
        var = jnp.mean((h - mu) ** 2, axis=(0, 2), keepdims=True)
        h = (h - mu) / jnp.sqrt(var + BN_EPS) * g[None, :, None] + be[None, :, None]
        return jax.lax.reduce_window(h, -jnp.inf, jax.lax.max,
                                     (1, 1, 3), (1, 1, 2), 'VALID')

    hz = branch(z, params['conv_z_w'], params['conv_z_b'],
                params['bn_z_g'], params['bn_z_b'])
    hr = branch(rec, params['conv_r_w'], params['conv_r_b'],
                params['bn_r_g'], params['bn_r_b'])
    cat = jnp.concatenate([hz, hr], axis=2)                      # (B, 32, 14)
    h2 = jax.lax.conv_general_dilated(cat, params['conv2_w'], window_strides=(2,),
                                      padding=((1, 1),), dimension_numbers=dn,
                                      precision=HP)
    h2 = h2 + params['conv2_b'][None, :, None]                   # (B, 16, 7)
    flat = h2.reshape(h2.shape[0], 112)
    y = jnp.dot(flat, params['fc1_w'].T, precision=HP) + params['fc1_b']
    y = jnp.where(y > 0, y, 0.2 * y)
    return jnp.dot(y, params['fc2_w'].T, precision=HP) + params['fc2_b']


if __name__ == "__main__":
    key = jax.random.PRNGKey(0)
    ks = jax.random.split(key, 16)

    def nrm(k, shape, scale=0.1):
        return scale * jax.random.normal(k, shape, jnp.float32)

    params = {
        'conv_z_w': nrm(ks[0], (32, 1, 6)),
        'conv_z_b': nrm(ks[1], (32,)),
        'bn_z_g': 1.0 + nrm(ks[2], (32,)),
        'bn_z_b': nrm(ks[3], (32,)),
        'conv_r_w': nrm(ks[4], (32, 1, 6)),
        'conv_r_b': nrm(ks[5], (32,)),
        'bn_r_g': 1.0 + nrm(ks[6], (32,)),
        'bn_r_b': nrm(ks[7], (32,)),
        'conv2_w': nrm(ks[8], (16, 32, 4)),
        'conv2_b': nrm(ks[9], (16,)),
        'fc1_w': nrm(ks[10], (32, 112)),
        'fc1_b': nrm(ks[11], (32,)),
        'fc2_w': nrm(ks[12], (1, 32)),
        'fc2_b': nrm(ks[13], (1,)),
    }

    B = 4
    z = jax.random.normal(ks[14], (B, 1, L_IN), jnp.float32)
    rec = jax.random.normal(ks[15], (B, 1, L_IN), jnp.float32)

    out = discriminator_z_forward(z, rec, params)
    out = jax.block_until_ready(out)

    ref = jax.block_until_ready(reference_forward(z, rec, params))
    assert out.shape == (B, 1), out.shape
    assert jnp.allclose(out, ref, atol=2e-3, rtol=2e-3), (out, ref)

    print("KERNEL_OK")
</pallas_src>

<mosaic_0001>
module attributes {stable_mosaic.version = 11 : i64} {
  func.func @_disc_z_kernel(%arg0: memref<2x20x1x4xf32, #tpu.memory_space<vmem>>, %arg1: memref<2x32x12xf32, #tpu.memory_space<vmem>>, %arg2: memref<32x448xf32, #tpu.memory_space<vmem>>, %arg3: memref<1x4xf32, #tpu.memory_space<vmem>>) attributes {dimension_semantics = [], scalar_prefetch = 0 : i64, scratch_operands = 0 : i64, tpu.core_type = #tpu.core_type<tc>} {
    %c0 = arith.constant 0 : index
    %c0_0 = arith.constant 0 : index
    %c0_1 = arith.constant 0 : index
    %c0_2 = arith.constant 0 : index
    %0 = vector.load %arg0[%c0, %c0_0, %c0_1, %c0_2] : memref<2x20x1x4xf32, #tpu.memory_space<vmem>>, vector<2x20x1x4xf32>
    %c0_3 = arith.constant 0 : index
    %c0_4 = arith.constant 0 : index
    %c0_5 = arith.constant 0 : index
    %1 = vector.load %arg1[%c0_3, %c0_4, %c0_5] : memref<2x32x12xf32, #tpu.memory_space<vmem>>, vector<2x32x12xf32>
    %2 = vector.extract_strided_slice %1 {offsets = [0, 0, 0], sizes = [2, 32, 1], strides = [1, 1, 1]} : vector<2x32x12xf32> to vector<2x32x1xf32>
    %3 = vector.shape_cast %2 : vector<2x32x1xf32> to vector<2x1x32x1xf32>
    %4 = vector.extract_strided_slice %1 {offsets = [0, 0, 1], sizes = [2, 32, 1], strides = [1, 1, 1]} : vector<2x32x12xf32> to vector<2x32x1xf32>
    %5 = vector.shape_cast %4 : vector<2x32x1xf32> to vector<2x1x32x1xf32>
    %6 = vector.extract_strided_slice %1 {offsets = [0, 0, 2], sizes = [2, 32, 1], strides = [1, 1, 1]} : vector<2x32x12xf32> to vector<2x32x1xf32>
    %7 = vector.shape_cast %6 : vector<2x32x1xf32> to vector<2x1x32x1xf32>
    %8 = vector.extract_strided_slice %0 {offsets = [0, 0, 0, 0], sizes = [2, 15, 1, 4], strides = [1, 1, 1, 1]} : vector<2x20x1x4xf32> to vector<2x15x1x4xf32>
    %9 = vector.extract_strided_slice %1 {offsets = [0, 0, 3], sizes = [2, 32, 1], strides = [1, 1, 1]} : vector<2x32x12xf32> to vector<2x32x1xf32>
    %10 = vector.shape_cast %9 : vector<2x32x1xf32> to vector<2x1x32x1xf32>
    %11 = vector.broadcast %8 : vector<2x15x1x4xf32> to vector<2x15x32x4xf32>
    %12 = vector.broadcast %10 : vector<2x1x32x1xf32> to vector<2x15x32x4xf32>
    %13 = arith.mulf %11, %12 : vector<2x15x32x4xf32>
    %14 = vector.broadcast %3 : vector<2x1x32x1xf32> to vector<2x15x32x4xf32>
    %15 = arith.addf %13, %14 : vector<2x15x32x4xf32>
    %16 = vector.extract_strided_slice %0 {offsets = [0, 1, 0, 0], sizes = [2, 15, 1, 4], strides = [1, 1, 1, 1]} : vector<2x20x1x4xf32> to vector<2x15x1x4xf32>
    %17 = vector.extract_strided_slice %1 {offsets = [0, 0, 4], sizes = [2, 32, 1], strides = [1, 1, 1]} : vector<2x32x12xf32> to vector<2x32x1xf32>
    %18 = vector.shape_cast %17 : vector<2x32x1xf32> to vector<2x1x32x1xf32>
    %19 = vector.broadcast %16 : vector<2x15x1x4xf32> to vector<2x15x32x4xf32>
    %20 = vector.broadcast %18 : vector<2x1x32x1xf32> to vector<2x15x32x4xf32>
    %21 = arith.mulf %19, %20 : vector<2x15x32x4xf32>
    %22 = arith.addf %15, %21 : vector<2x15x32x4xf32>
    %23 = vector.extract_strided_slice %0 {offsets = [0, 2, 0, 0], sizes = [2, 15, 1, 4], strides = [1, 1, 1, 1]} : vector<2x20x1x4xf32> to vector<2x15x1x4xf32>
    %24 = vector.extract_strided_slice %1 {offsets = [0, 0, 5], sizes = [2, 32, 1], strides = [1, 1, 1]} : vector<2x32x12xf32> to vector<2x32x1xf32>
    %25 = vector.shape_cast %24 : vector<2x32x1xf32> to vector<2x1x32x1xf32>
    %26 = vector.broadcast %23 : vector<2x15x1x4xf32> to vector<2x15x32x4xf32>
    %27 = vector.broadcast %25 : vector<2x1x32x1xf32> to vector<2x15x32x4xf32>
    %28 = arith.mulf %26, %27 : vector<2x15x32x4xf32>
    %29 = arith.addf %22, %28 : vector<2x15x32x4xf32>
    %30 = vector.extract_strided_slice %0 {offsets = [0, 3, 0, 0], sizes = [2, 15, 1, 4], strides = [1, 1, 1, 1]} : vector<2x20x1x4xf32> to vector<2x15x1x4xf32>
    %31 = vector.extract_strided_slice %1 {offsets = [0, 0, 6], sizes = [2, 32, 1], strides = [1, 1, 1]} : vector<2x32x12xf32> to vector<2x32x1xf32>
    %32 = vector.shape_cast %31 : vector<2x32x1xf32> to vector<2x1x32x1xf32>
    %33 = vector.broadcast %30 : vector<2x15x1x4xf32> to vector<2x15x32x4xf32>
    %34 = vector.broadcast %32 : vector<2x1x32x1xf32> to vector<2x15x32x4xf32>
    %35 = arith.mulf %33, %34 : vector<2x15x32x4xf32>
    %36 = arith.addf %29, %35 : vector<2x15x32x4xf32>
    %37 = vector.extract_strided_slice %0 {offsets = [0, 4, 0, 0], sizes = [2, 15, 1, 4], strides = [1, 1, 1, 1]} : vector<2x20x1x4xf32> to vector<2x15x1x4xf32>
    %38 = vector.extract_strided_slice %1 {offsets = [0, 0, 7], sizes = [2, 32, 1], strides = [1, 1, 1]} : vector<2x32x12xf32> to vector<2x32x1xf32>
    %39 = vector.shape_cast %38 : vector<2x32x1xf32> to vector<2x1x32x1xf32>
    %40 = vector.broadcast %37 : vector<2x15x1x4xf32> to vector<2x15x32x4xf32>
    %41 = vector.broadcast %39 : vector<2x1x32x1xf32> to vector<2x15x32x4xf32>
    %42 = arith.mulf %40, %41 : vector<2x15x32x4xf32>
    %43 = arith.addf %36, %42 : vector<2x15x32x4xf32>
    %44 = vector.extract_strided_slice %0 {offsets = [0, 5, 0, 0], sizes = [2, 15, 1, 4], strides = [1, 1, 1, 1]} : vector<2x20x1x4xf32> to vector<2x15x1x4xf32>
    %45 = vector.extract_strided_slice %1 {offsets = [0, 0, 8], sizes = [2, 32, 1], strides = [1, 1, 1]} : vector<2x32x12xf32> to vector<2x32x1xf32>
    %46 = vector.shape_cast %45 : vector<2x32x1xf32> to vector<2x1x32x1xf32>
    %47 = vector.broadcast %44 : vector<2x15x1x4xf32> to vector<2x15x32x4xf32>
    %48 = vector.broadcast %46 : vector<2x1x32x1xf32> to vector<2x15x32x4xf32>
    %49 = arith.mulf %47, %48 : vector<2x15x32x4xf32>
    %50 = arith.addf %43, %49 : vector<2x15x32x4xf32>
    %cst = arith.constant 0.000000e+00 : f32
    %51 = vector.broadcast %cst : f32 to vector<2x15x32x4xf32>
    %52 = arith.maximumf %50, %51 : vector<2x15x32x4xf32>
    %cst_6 = arith.constant dense<0.000000e+00> : vector<2x32x4xf32>
    %53 = vector.multi_reduction <add>, %52, %cst_6 [1] : vector<2x15x32x4xf32> to vector<2x32x4xf32>
    %cst_7 = arith.constant dense<0.000000e+00> : vector<2x32xf32>
    %54 = vector.multi_reduction <add>, %53, %cst_7 [2] : vector<2x32x4xf32> to vector<2x32xf32>
    %55 = vector.shape_cast %54 : vector<2x32xf32> to vector<2x32x1xf32>
    %56 = vector.shape_cast %55 : vector<2x32x1xf32> to vector<2x1x32x1xf32>
    %57 = arith.mulf %52, %52 : vector<2x15x32x4xf32>
    %cst_8 = arith.constant dense<0.000000e+00> : vector<2x32x4xf32>
    %58 = vector.multi_reduction <add>, %57, %cst_8 [1] : vector<2x15x32x4xf32> to vector<2x32x4xf32>
    %cst_9 = arith.constant dense<0.000000e+00> : vector<2x32xf32>
    %59 = vector.multi_reduction <add>, %58, %cst_9 [2] : vector<2x32x4xf32> to vector<2x32xf32>
    %60 = vector.shape_cast %59 : vector<2x32xf32> to vector<2x32x1xf32>
    %61 = vector.shape_cast %60 : vector<2x32x1xf32> to vector<2x1x32x1xf32>
    %cst_10 = arith.constant 0.0166666675 : f32
    %62 = vector.broadcast %cst_10 : f32 to vector<2x1x32x1xf32>
    %63 = arith.mulf %56, %62 : vector<2x1x32x1xf32>
    %cst_11 = arith.constant 0.0166666675 : f32
    %64 = vector.broadcast %cst_11 : f32 to vector<2x1x32x1xf32>
    %65 = arith.mulf %61, %64 : vector<2x1x32x1xf32>
    %66 = arith.mulf %63, %63 : vector<2x1x32x1xf32>
    %67 = arith.subf %65, %66 : vector<2x1x32x1xf32>
    %cst_12 = arith.constant 0.000000e+00 : f32
    %68 = vector.broadcast %cst_12 : f32 to vector<2x1x32x1xf32>
    %69 = arith.maximumf %67, %68 : vector<2x1x32x1xf32>
    %70 = vector.broadcast %63 : vector<2x1x32x1xf32> to vector<2x15x32x4xf32>
    %71 = arith.subf %52, %70 : vector<2x15x32x4xf32>
    %cst_13 = arith.constant 9.99999974E-6 : f32
    %72 = vector.broadcast %cst_13 : f32 to vector<2x1x32x1xf32>
    %73 = arith.addf %69, %72 : vector<2x1x32x1xf32>
    %74 = math.rsqrt %73 : vector<2x1x32x1xf32>
    %75 = vector.broadcast %74 : vector<2x1x32x1xf32> to vector<2x15x32x4xf32>
    %76 = arith.mulf %71, %75 : vector<2x15x32x4xf32>
    %77 = vector.broadcast %5 : vector<2x1x32x1xf32> to vector<2x15x32x4xf32>
    %78 = arith.mulf %76, %77 : vector<2x15x32x4xf32>
    %79 = vector.broadcast %7 : vector<2x1x32x1xf32> to vector<2x15x32x4xf32>
    %80 = arith.addf %78, %79 : vector<2x15x32x4xf32>
    %81 = vector.extract_strided_slice %80 {offsets = [0, 0, 0, 0], sizes = [1, 1, 32, 4], strides = [1, 1, 1, 1]} : vector<2x15x32x4xf32> to vector<1x1x32x4xf32>
    %82 = vector.shape_cast %81 : vector<1x1x32x4xf32> to vector<32x4xf32>
    %83 = vector.extract_strided_slice %80 {offsets = [0, 1, 0, 0], sizes = [1, 1, 32, 4], strides = [1, 1, 1, 1]} : vector<2x15x32x4xf32> to vector<1x1x32x4xf32>
    %84 = vector.shape_cast %83 : vector<1x1x32x4xf32> to vector<32x4xf32>
    %85 = arith.maximumf %82, %84 : vector<32x4xf32>
    %86 = vector.extract_strided_slice %80 {offsets = [0, 2, 0, 0], sizes = [1, 1, 32, 4], strides = [1, 1, 1, 1]} : vector<2x15x32x4xf32> to vector<1x1x32x4xf32>
    %87 = vector.shape_cast %86 : vector<1x1x32x4xf32> to vector<32x4xf32>
    %88 = arith.maximumf %85, %87 : vector<32x4xf32>
    %89 = vector.extract_strided_slice %80 {offsets = [0, 2, 0, 0], sizes = [1, 1, 32, 4], strides = [1, 1, 1, 1]} : vector<2x15x32x4xf32> to vector<1x1x32x4xf32>
    %90 = vector.shape_cast %89 : vector<1x1x32x4xf32> to vector<32x4xf32>
    %91 = vector.extract_strided_slice %80 {offsets = [0, 3, 0, 0], sizes = [1, 1, 32, 4], strides = [1, 1, 1, 1]} : vector<2x15x32x4xf32> to vector<1x1x32x4xf32>
    %92 = vector.shape_cast %91 : vector<1x1x32x4xf32> to vector<32x4xf32>
    %93 = arith.maximumf %90, %92 : vector<32x4xf32>
    %94 = vector.extract_strided_slice %80 {offsets = [0, 4, 0, 0], sizes = [1, 1, 32, 4], strides = [1, 1, 1, 1]} : vector<2x15x32x4xf32> to vector<1x1x32x4xf32>
    %95 = vector.shape_cast %94 : vector<1x1x32x4xf32> to vector<32x4xf32>
    %96 = arith.maximumf %93, %95 : vector<32x4xf32>
    %97 = vector.extract_strided_slice %80 {offsets = [0, 4, 0, 0], sizes = [1, 1, 32, 4], strides = [1, 1, 1, 1]} : vector<2x15x32x4xf32> to vector<1x1x32x4xf32>
    %98 = vector.shape_cast %97 : vector<1x1x32x4xf32> to vector<32x4xf32>
    %99 = vector.extract_strided_slice %80 {offsets = [0, 5, 0, 0], sizes = [1, 1, 32, 4], strides = [1, 1, 1, 1]} : vector<2x15x32x4xf32> to vector<1x1x32x4xf32>
    %100 = vector.shape_cast %99 : vector<1x1x32x4xf32> to vector<32x4xf32>
    %101 = arith.maximumf %98, %100 : vector<32x4xf32>
    %102 = vector.extract_strided_slice %80 {offsets = [0, 6, 0, 0], sizes = [1, 1, 32, 4], strides = [1, 1, 1, 1]} : vector<2x15x32x4xf32> to vector<1x1x32x4xf32>
    %103 = vector.shape_cast %102 : vector<1x1x32x4xf32> to vector<32x4xf32>
    %104 = arith.maximumf %101, %103 : vector<32x4xf32>
    %105 = vector.extract_strided_slice %80 {offsets = [0, 6, 0, 0], sizes = [1, 1, 32, 4], strides = [1, 1, 1, 1]} : vector<2x15x32x4xf32> to vector<1x1x32x4xf32>
    %106 = vector.shape_cast %105 : vector<1x1x32x4xf32> to vector<32x4xf32>
    %107 = vector.extract_strided_slice %80 {offsets = [0, 7, 0, 0], sizes = [1, 1, 32, 4], strides = [1, 1, 1, 1]} : vector<2x15x32x4xf32> to vector<1x1x32x4xf32>
    %108 = vector.shape_cast %107 : vector<1x1x32x4xf32> to vector<32x4xf32>
    %109 = arith.maximumf %106, %108 : vector<32x4xf32>
    %110 = vector.extract_strided_slice %80 {offsets = [0, 8, 0, 0], sizes = [1, 1, 32, 4], strides = [1, 1, 1, 1]} : vector<2x15x32x4xf32> to vector<1x1x32x4xf32>
    %111 = vector.shape_cast %110 : vector<1x1x32x4xf32> to vector<32x4xf32>
    %112 = arith.maximumf %109, %111 : vector<32x4xf32>
    %113 = vector.extract_strided_slice %80 {offsets = [0, 8, 0, 0], sizes = [1, 1, 32, 4], strides = [1, 1, 1, 1]} : vector<2x15x32x4xf32> to vector<1x1x32x4xf32>
    %114 = vector.shape_cast %113 : vector<1x1x32x4xf32> to vector<32x4xf32>
    %115 = vector.extract_strided_slice %80 {offsets = [0, 9, 0, 0], sizes = [1, 1, 32, 4], strides = [1, 1, 1, 1]} : vector<2x15x32x4xf32> to vector<1x1x32x4xf32>
    %116 = vector.shape_cast %115 : vector<1x1x32x4xf32> to vector<32x4xf32>
    %117 = arith.maximumf %114, %116 : vector<32x4xf32>
    %118 = vector.extract_strided_slice %80 {offsets = [0, 10, 0, 0], sizes = [1, 1, 32, 4], strides = [1, 1, 1, 1]} : vector<2x15x32x4xf32> to vector<1x1x32x4xf32>
    %119 = vector.shape_cast %118 : vector<1x1x32x4xf32> to vector<32x4xf32>
    %120 = arith.maximumf %117, %119 : vector<32x4xf32>
    %121 = vector.extract_strided_slice %80 {offsets = [0, 10, 0, 0], sizes = [1, 1, 32, 4], strides = [1, 1, 1, 1]} : vector<2x15x32x4xf32> to vector<1x1x32x4xf32>
    %122 = vector.shape_cast %121 : vector<1x1x32x4xf32> to vector<32x4xf32>
    %123 = vector.extract_strided_slice %80 {offsets = [0, 11, 0, 0], sizes = [1, 1, 32, 4], strides = [1, 1, 1, 1]} : vector<2x15x32x4xf32> to vector<1x1x32x4xf32>
    %124 = vector.shape_cast %123 : vector<1x1x32x4xf32> to vector<32x4xf32>
    %125 = arith.maximumf %122, %124 : vector<32x4xf32>
    %126 = vector.extract_strided_slice %80 {offsets = [0, 12, 0, 0], sizes = [1, 1, 32, 4], strides = [1, 1, 1, 1]} : vector<2x15x32x4xf32> to vector<1x1x32x4xf32>
    %127 = vector.shape_cast %126 : vector<1x1x32x4xf32> to vector<32x4xf32>
    %128 = arith.maximumf %125, %127 : vector<32x4xf32>
    %129 = vector.extract_strided_slice %80 {offsets = [0, 12, 0, 0], sizes = [1, 1, 32, 4], strides = [1, 1, 1, 1]} : vector<2x15x32x4xf32> to vector<1x1x32x4xf32>
    %130 = vector.shape_cast %129 : vector<1x1x32x4xf32> to vector<32x4xf32>
    %131 = vector.extract_strided_slice %80 {offsets = [0, 13, 0, 0], sizes = [1, 1, 32, 4], strides = [1, 1, 1, 1]} : vector<2x15x32x4xf32> to vector<1x1x32x4xf32>
    %132 = vector.shape_cast %131 : vector<1x1x32x4xf32> to vector<32x4xf32>
    %133 = arith.maximumf %130, %132 : vector<32x4xf32>
    %134 = vector.extract_strided_slice %80 {offsets = [0, 14, 0, 0], sizes = [1, 1, 32, 4], strides = [1, 1, 1, 1]} : vector<2x15x32x4xf32> to vector<1x1x32x4xf32>
    %135 = vector.shape_cast %134 : vector<1x1x32x4xf32> to vector<32x4xf32>
    %136 = arith.maximumf %133, %135 : vector<32x4xf32>
    %137 = vector.extract_strided_slice %80 {offsets = [1, 0, 0, 0], sizes = [1, 1, 32, 4], strides = [1, 1, 1, 1]} : vector<2x15x32x4xf32> to vector<1x1x32x4xf32>
    %138 = vector.shape_cast %137 : vector<1x1x32x4xf32> to vector<32x4xf32>
    %139 = vector.extract_strided_slice %80 {offsets = [1, 1, 0, 0], sizes = [1, 1, 32, 4], strides = [1, 1, 1, 1]} : vector<2x15x32x4xf32> to vector<1x1x32x4xf32>
    %140 = vector.shape_cast %139 : vector<1x1x32x4xf32> to vector<32x4xf32>
    %141 = arith.maximumf %138, %140 : vector<32x4xf32>
    %142 = vector.extract_strided_slice %80 {offsets = [1, 2, 0, 0], sizes = [1, 1, 32, 4], strides = [1, 1, 1, 1]} : vector<2x15x32x4xf32> to vector<1x1x32x4xf32>
    %143 = vector.shape_cast %142 : vector<1x1x32x4xf32> to vector<32x4xf32>
    %144 = arith.maximumf %141, %143 : vector<32x4xf32>
    %145 = vector.extract_strided_slice %80 {offsets = [1, 2, 0, 0], sizes = [1, 1, 32, 4], strides = [1, 1, 1, 1]} : vector<2x15x32x4xf32> to vector<1x1x32x4xf32>
    %146 = vector.shape_cast %145 : vector<1x1x32x4xf32> to vector<32x4xf32>
    %147 = vector.extract_strided_slice %80 {offsets = [1, 3, 0, 0], sizes = [1, 1, 32, 4], strides = [1, 1, 1, 1]} : vector<2x15x32x4xf32> to vector<1x1x32x4xf32>
    %148 = vector.shape_cast %147 : vector<1x1x32x4xf32> to vector<32x4xf32>
    %149 = arith.maximumf %146, %148 : vector<32x4xf32>
    %150 = vector.extract_strided_slice %80 {offsets = [1, 4, 0, 0], sizes = [1, 1, 32, 4], strides = [1, 1, 1, 1]} : vector<2x15x32x4xf32> to vector<1x1x32x4xf32>
    %151 = vector.shape_cast %150 : vector<1x1x32x4xf32> to vector<32x4xf32>
    %152 = arith.maximumf %149, %151 : vector<32x4xf32>
    %153 = vector.extract_strided_slice %80 {offsets = [1, 4, 0, 0], sizes = [1, 1, 32, 4], strides = [1, 1, 1, 1]} : vector<2x15x32x4xf32> to vector<1x1x32x4xf32>
    %154 = vector.shape_cast %153 : vector<1x1x32x4xf32> to vector<32x4xf32>
    %155 = vector.extract_strided_slice %80 {offsets = [1, 5, 0, 0], sizes = [1, 1, 32, 4], strides = [1, 1, 1, 1]} : vector<2x15x32x4xf32> to vector<1x1x32x4xf32>
    %156 = vector.shape_cast %155 : vector<1x1x32x4xf32> to vector<32x4xf32>
    %157 = arith.maximumf %154, %156 : vector<32x4xf32>
    %158 = vector.extract_strided_slice %80 {offsets = [1, 6, 0, 0], sizes = [1, 1, 32, 4], strides = [1, 1, 1, 1]} : vector<2x15x32x4xf32> to vector<1x1x32x4xf32>
    %159 = vector.shape_cast %158 : vector<1x1x32x4xf32> to vector<32x4xf32>
    %160 = arith.maximumf %157, %159 : vector<32x4xf32>
    %161 = vector.extract_strided_slice %80 {offsets = [1, 6, 0, 0], sizes = [1, 1, 32, 4], strides = [1, 1, 1, 1]} : vector<2x15x32x4xf32> to vector<1x1x32x4xf32>
    %162 = vector.shape_cast %161 : vector<1x1x32x4xf32> to vector<32x4xf32>
    %163 = vector.extract_strided_slice %80 {offsets = [1, 7, 0, 0], sizes = [1, 1, 32, 4], strides = [1, 1, 1, 1]} : vector<2x15x32x4xf32> to vector<1x1x32x4xf32>
    %164 = vector.shape_cast %163 : vector<1x1x32x4xf32> to vector<32x4xf32>
    %165 = arith.maximumf %162, %164 : vector<32x4xf32>
    %166 = vector.extract_strided_slice %80 {offsets = [1, 8, 0, 0], sizes = [1, 1, 32, 4], strides = [1, 1, 1, 1]} : vector<2x15x32x4xf32> to vector<1x1x32x4xf32>
    %167 = vector.shape_cast %166 : vector<1x1x32x4xf32> to vector<32x4xf32>
    %168 = arith.maximumf %165, %167 : vector<32x4xf32>
    %169 = vector.extract_strided_slice %80 {offsets = [1, 8, 0, 0], sizes = [1, 1, 32, 4], strides = [1, 1, 1, 1]} : vector<2x15x32x4xf32> to vector<1x1x32x4xf32>
    %170 = vector.shape_cast %169 : vector<1x1x32x4xf32> to vector<32x4xf32>
    %171 = vector.extract_strided_slice %80 {offsets = [1, 9, 0, 0], sizes = [1, 1, 32, 4], strides = [1, 1, 1, 1]} : vector<2x15x32x4xf32> to vector<1x1x32x4xf32>
    %172 = vector.shape_cast %171 : vector<1x1x32x4xf32> to vector<32x4xf32>
    %173 = arith.maximumf %170, %172 : vector<32x4xf32>
    %174 = vector.extract_strided_slice %80 {offsets = [1, 10, 0, 0], sizes = [1, 1, 32, 4], strides = [1, 1, 1, 1]} : vector<2x15x32x4xf32> to vector<1x1x32x4xf32>
    %175 = vector.shape_cast %174 : vector<1x1x32x4xf32> to vector<32x4xf32>
    %176 = arith.maximumf %173, %175 : vector<32x4xf32>
    %177 = vector.extract_strided_slice %80 {offsets = [1, 10, 0, 0], sizes = [1, 1, 32, 4], strides = [1, 1, 1, 1]} : vector<2x15x32x4xf32> to vector<1x1x32x4xf32>
    %178 = vector.shape_cast %177 : vector<1x1x32x4xf32> to vector<32x4xf32>
    %179 = vector.extract_strided_slice %80 {offsets = [1, 11, 0, 0], sizes = [1, 1, 32, 4], strides = [1, 1, 1, 1]} : vector<2x15x32x4xf32> to vector<1x1x32x4xf32>
    %180 = vector.shape_cast %179 : vector<1x1x32x4xf32> to vector<32x4xf32>
    %181 = arith.maximumf %178, %180 : vector<32x4xf32>
    %182 = vector.extract_strided_slice %80 {offsets = [1, 12, 0, 0], sizes = [1, 1, 32, 4], strides = [1, 1, 1, 1]} : vector<2x15x32x4xf32> to vector<1x1x32x4xf32>
    %183 = vector.shape_cast %182 : vector<1x1x32x4xf32> to vector<32x4xf32>
    %184 = arith.maximumf %181, %183 : vector<32x4xf32>
    %185 = vector.extract_strided_slice %80 {offsets = [1, 12, 0, 0], sizes = [1, 1, 32, 4], strides = [1, 1, 1, 1]} : vector<2x15x32x4xf32> to vector<1x1x32x4xf32>
    %186 = vector.shape_cast %185 : vector<1x1x32x4xf32> to vector<32x4xf32>
    %187 = vector.extract_strided_slice %80 {offsets = [1, 13, 0, 0], sizes = [1, 1, 32, 4], strides = [1, 1, 1, 1]} : vector<2x15x32x4xf32> to vector<1x1x32x4xf32>
    %188 = vector.shape_cast %187 : vector<1x1x32x4xf32> to vector<32x4xf32>
    %189 = arith.maximumf %186, %188 : vector<32x4xf32>
    %190 = vector.extract_strided_slice %80 {offsets = [1, 14, 0, 0], sizes = [1, 1, 32, 4], strides = [1, 1, 1, 1]} : vector<2x15x32x4xf32> to vector<1x1x32x4xf32>
    %191 = vector.shape_cast %190 : vector<1x1x32x4xf32> to vector<32x4xf32>
    %192 = arith.maximumf %189, %191 : vector<32x4xf32>
    %193 = tpu.concatenate %88, %96, %104, %112, %120, %128, %136, %144, %152, %160, %168, %176, %184, %192 in 0 : vector<32x4xf32>, vector<32x4xf32>, vector<32x4xf32>, vector<32x4xf32>, vector<32x4xf32>, vector<32x4xf32>, vector<32x4xf32>, vector<32x4xf32>, vector<32x4xf32>, vector<32x4xf32>, vector<32x4xf32>, vector<32x4xf32>, vector<32x4xf32>, vector<32x4xf32> -> vector<448x4xf32>
    %c0_14 = arith.constant 0 : index
    %c0_15 = arith.constant 0 : index
    %194 = vector.load %arg2[%c0_14, %c0_15] : memref<32x448xf32, #tpu.memory_space<vmem>>, vector<32x448xf32>
    %cst_16 = arith.constant dense<0.000000e+00> : vector<32x4xf32>
    %195 = tpu.matmul %194, %193, %cst_16 {dimension_numbers = #tpu.dot_dimension_numbers<[1], [0], [0], [1], [0, 0, 1, 1], [], []>, precision = #tpu.contract_precision<fp32>} : vector<32x448xf32>, vector<448x4xf32>, vector<32x4xf32> -> vector<32x4xf32>
    %196 = vector.extract_strided_slice %1 {offsets = [0, 0, 9], sizes = [1, 32, 1], strides = [1, 1, 1]} : vector<2x32x12xf32> to vector<1x32x1xf32>
    %197 = vector.shape_cast %196 : vector<1x32x1xf32> to vector<32x1xf32>
    %198 = vector.broadcast %197 : vector<32x1xf32> to vector<32x4xf32>
    %199 = arith.addf %195, %198 : vector<32x4xf32>
    %cst_17 = arith.constant 0.000000e+00 : f32
    %200 = vector.broadcast %cst_17 : f32 to vector<32x4xf32>
    %201 = arith.cmpf ogt, %199, %200 : vector<32x4xf32>
    %cst_18 = arith.constant 2.000000e-01 : f32
    %202 = vector.broadcast %cst_18 : f32 to vector<32x4xf32>
    %203 = arith.mulf %202, %199 : vector<32x4xf32>
    %204 = arith.select %201, %199, %203 : vector<32x4xi1>, vector<32x4xf32>
    %205 = vector.extract_strided_slice %1 {offsets = [0, 0, 10], sizes = [1, 32, 1], strides = [1, 1, 1]} : vector<2x32x12xf32> to vector<1x32x1xf32>
    %206 = vector.shape_cast %205 : vector<1x32x1xf32> to vector<32x1xf32>
    %207 = vector.broadcast %206 : vector<32x1xf32> to vector<32x4xf32>
    %208 = arith.mulf %207, %204 : vector<32x4xf32>
    %cst_19 = arith.constant dense<0.000000e+00> : vector<4xf32>
    %209 = vector.multi_reduction <add>, %208, %cst_19 [0] : vector<32x4xf32> to vector<4xf32>
    %210 = vector.shape_cast %209 : vector<4xf32> to vector<1x4xf32>
    %211 = vector.extract_strided_slice %1 {offsets = [0, 0, 11], sizes = [1, 1, 1], strides = [1, 1, 1]} : vector<2x32x12xf32> to vector<1x1x1xf32>
    %212 = vector.shape_cast %211 : vector<1x1x1xf32> to vector<1x1xf32>
    %213 = vector.broadcast %212 : vector<1x1xf32> to vector<1x4xf32>
    %214 = arith.addf %210, %213 : vector<1x4xf32>
    %c0_20 = arith.constant 0 : index
    %c0_21 = arith.constant 0 : index
    %215 = vector.load %arg3[%c0_20, %c0_21] : memref<1x4xf32, #tpu.memory_space<vmem>>, vector<1x4xf32>
    tpu.vector_store %arg3[%c0_20, %c0_21], %214 {strides = array<i32>} : memref<1x4xf32, #tpu.memory_space<vmem>>, vector<1x4xf32>,
    return
  }
}

</mosaic_0001>

<llo_original>
// kernel: discriminator_z_forward.1
$region0: #{discriminator_z_forward.1}
  #allocation0 [shape = 'u32[]', space=smem, size = 0x4, offset = 0x4, fixed_abs, tag = 'smem constant byte address 0x4 - core index']
  #allocation1 [shape = 'u32[72,128]{1,0:T(1,128)}', space=vmem, size = 0x9000, scoped, tag = 'internal scratch']
  %s0 = inlined_call_operand.vmem [shape: f32[2,20,1,4], index: 0, kind: input, shape index: {}]
  %s1 = inlined_call_operand.vmem [shape: f32[2,32,12], index: 1, kind: input, shape index: {}]
  %s2 = inlined_call_operand.vmem [shape: f32[32,448], index: 2, kind: input, shape index: {}]
  %s3 = inlined_call_operand.hbm [shape: f32[1,4], index: 3, kind: output, shape index: {}]
  %s4 = sld [smem:[#allocation0]]
  $region22: #{discriminator_z_forward.1} parent=0
    _
  %s6 = ssub.s32 1, %s4
  %s7 = scalar_select 0, %s6, %s4
  $region1: #{discriminator_z_forward.1} parent=0
    #allocation2 [shape = 'u8[512]{0}', space=vmem, size = 0x400, scoped, tag = 'output window, operand 0, single buffered']
    #allocation3 [shape = 's32[1]{0}', space=sflag, size = 0x4, scoped, tag = 'scoped memory for discriminator_z_forward.1']
    %8 = vsyncpa [#allocation3], 0
    // Predicated region
    $region2: #{discriminator_z_forward.1} parent=1 // pred_check
      _
    $region3: #{discriminator_z_forward.1} parent=1 // pred_check_branch
      %10 = sbr.rel (0) target = $region5
    $region4: #{discriminator_z_forward.1} parent=1 // pred_region
      _
    $region5: #{discriminator_z_forward.1} parent=1 // pred_fallthru
      _
    // Predicated region
    $region6: #{discriminator_z_forward.1} parent=1 // pred_check
      _
    $region7: #{discriminator_z_forward.1} parent=1 // pred_check_branch
      %12 = sbr.rel (0) target = $region9
    $region8: #{discriminator_z_forward.1} parent=1 // pred_region
      _
    $region9: #{discriminator_z_forward.1} parent=1 // pred_fallthru
      _
    // Predicated region
    $region10: #{discriminator_z_forward.1} parent=1 // pred_check
      _
    $region11: #{discriminator_z_forward.1} parent=1 // pred_check_branch
      %14 = sbr.rel (0) target = $region13
    $region12: #{discriminator_z_forward.1} parent=1 // pred_region
      _
    $region13: #{discriminator_z_forward.1} parent=1 // pred_fallthru
      _
    %v15 = vld [vmem:[%s0] sm:$0x1]
    %v16 = vld [vmem:[%s0 + $0x1] sm:$0x1]
    %v17 = vld [vmem:[%s0 + $0x2] sm:$0x1]
    %v18 = vld [vmem:[%s0 + $0x3] sm:$0x1]
    %v19 = vld [vmem:[%s0 + $0x4] sm:$0x1]
    %v20 = vld [vmem:[%s0 + $0x5] sm:$0x1]
    %v21 = vld [vmem:[%s0 + $0x6] sm:$0x1]
    %v22 = vld [vmem:[%s0 + $0x7] sm:$0x1]
    %v23 = vld [vmem:[%s0 + $0x8] sm:$0x1]
    %v24 = vld [vmem:[%s0 + $0x9] sm:$0x1]
    %v25 = vld [vmem:[%s0 + $0xa] sm:$0x1]
    %v26 = vld [vmem:[%s0 + $0xb] sm:$0x1]
    %v27 = vld [vmem:[%s0 + $0xc] sm:$0x1]
    %v28 = vld [vmem:[%s0 + $0xd] sm:$0x1]
    %v29 = vld [vmem:[%s0 + $0xe] sm:$0x1]
    %v30 = vld [vmem:[%s0 + $0xf] sm:$0x1]
    %v31 = vld [vmem:[%s0 + $0x10] sm:$0x1]
    %v32 = vld [vmem:[%s0 + $0x11] sm:$0x1]
    %v33 = vld [vmem:[%s0 + $0x12] sm:$0x1]
    %v34 = vld [vmem:[%s0 + $0x13] sm:$0x1]
    %v35 = vld [vmem:[%s0 + $0x14] sm:$0x1]
    %v36 = vld [vmem:[%s0 + $0x15] sm:$0x1]
    %v37 = vld [vmem:[%s0 + $0x16] sm:$0x1]
    %v38 = vld [vmem:[%s0 + $0x17] sm:$0x1]
    %v39 = vld [vmem:[%s0 + $0x18] sm:$0x1]
    %v40 = vld [vmem:[%s0 + $0x19] sm:$0x1]
    %v41 = vld [vmem:[%s0 + $0x1a] sm:$0x1]
    %v42 = vld [vmem:[%s0 + $0x1b] sm:$0x1]
    %v43 = vld [vmem:[%s0 + $0x1c] sm:$0x1]
    %v44 = vld [vmem:[%s0 + $0x1d] sm:$0x1]
    %v45 = vld [vmem:[%s0 + $0x1e] sm:$0x1]
    %v46 = vld [vmem:[%s0 + $0x1f] sm:$0x1]
    %v47 = vld [vmem:[%s0 + $0x20] sm:$0x1]
    %v48 = vld [vmem:[%s0 + $0x21] sm:$0x1]
    %v49 = vld [vmem:[%s0 + $0x22] sm:$0x1]
    %v50 = vld [vmem:[%s0 + $0x23] sm:$0x1]
    %v51 = vld [vmem:[%s0 + $0x24] sm:$0x1]
    %v52 = vld [vmem:[%s0 + $0x25] sm:$0x1]
    %v53 = vld [vmem:[%s0 + $0x26] sm:$0x1]
    %v54 = vld [vmem:[%s0 + $0x27] sm:$0x1]
    %v55 = vld [vmem:[%s1] sm:$0xff]
    %v56 = vld [vmem:[%s1 + $0x8] sm:$0xff]
    %v57 = vld [vmem:[%s1 + $0x10] sm:$0xff]
    %v58 = vld [vmem:[%s1 + $0x18] sm:$0xff]
    %v59 = vld [vmem:[%s1 + $0x20] sm:$0xff]
    %v60 = vld [vmem:[%s1 + $0x28] sm:$0xff]
    %v61 = vld [vmem:[%s1 + $0x30] sm:$0xff]
    %v62 = vld [vmem:[%s1 + $0x38] sm:$0xff]
    %v93 = vperm.slane %v15, 0
    %v94 = vperm.slane %v16, 0
    %v95 = vperm.slane %v17, 0
    %v96 = vperm.slane %v18, 0
    %v97 = vperm.slane %v19, 0
    %v98 = vperm.slane %v20, 0
    %v99 = vperm.slane %v21, 0
    %v100 = vperm.slane %v22, 0
    %v101 = vperm.slane %v23, 0
    %v102 = vperm.slane %v24, 0
    %v103 = vperm.slane %v25, 0
    %v104 = vperm.slane %v26, 0
    %v105 = vperm.slane %v27, 0
    %v106 = vperm.slane %v28, 0
    %v107 = vperm.slane %v29, 0
    %v108 = vperm.slane %v35, 0
    %v109 = vperm.slane %v36, 0
    %v110 = vperm.slane %v37, 0
    %v111 = vperm.slane %v38, 0
    %v112 = vperm.slane %v39, 0
    %v113 = vperm.slane %v40, 0
    %v114 = vperm.slane %v41, 0
    %v115 = vperm.slane %v42, 0
    %v116 = vperm.slane %v43, 0
    %v117 = vperm.slane %v44, 0
    %v118 = vperm.slane %v45, 0
    %v119 = vperm.slane %v46, 0
    %v120 = vperm.slane %v47, 0
    %v121 = vperm.slane %v48, 0
    %v122 = vperm.slane %v49, 0
    %154 = vset.pattern.permute.xlu0 3
    %155 = vperm.xlu0 %154, %v55
    %v156 = vpop.permute.xlu0 %155
    %159 = vset.pattern.permute.xlu0 3
    %160 = vperm.xlu0 %159, %v56
    %v161 = vpop.permute.xlu0 %160
    %164 = vset.pattern.permute.xlu0 3
    %165 = vperm.xlu0 %164, %v57
    %v166 = vpop.permute.xlu0 %165
    %169 = vset.pattern.permute.xlu0 3
    %170 = vperm.xlu0 %169, %v58
    %v171 = vpop.permute.xlu0 %170
    %174 = vset.pattern.permute.xlu0 3
    %175 = vperm.xlu0 %174, %v59
    %v176 = vpop.permute.xlu0 %175
    %179 = vset.pattern.permute.xlu0 3
    %180 = vperm.xlu0 %179, %v60
    %v181 = vpop.permute.xlu0 %180
    %184 = vset.pattern.permute.xlu0 3
    %185 = vperm.xlu0 %184, %v61
    %v186 = vpop.permute.xlu0 %185
    %189 = vset.pattern.permute.xlu0 3
    %190 = vperm.xlu0 %189, %v62
    %v191 = vpop.permute.xlu0 %190
    %v193 = vmul.f32 %v93, %v156
    %v194 = vmul.f32 %v93, %v161
    %v195 = vmul.f32 %v93, %v166
    %v196 = vmul.f32 %v93, %v171
    %v197 = vmul.f32 %v94, %v156
    %v198 = vmul.f32 %v94, %v161
    %v199 = vmul.f32 %v94, %v166
    %v200 = vmul.f32 %v94, %v171
    %v201 = vmul.f32 %v95, %v156
    %v202 = vmul.f32 %v95, %v161
    %v203 = vmul.f32 %v95, %v166
    %v204 = vmul.f32 %v95, %v171
    %v205 = vmul.f32 %v96, %v156
    %v206 = vmul.f32 %v96, %v161
    %v207 = vmul.f32 %v96, %v166
    %v208 = vmul.f32 %v96, %v171
    %v209 = vmul.f32 %v97, %v156
    %v210 = vmul.f32 %v97, %v161
    %v211 = vmul.f32 %v97, %v166
    %v212 = vmul.f32 %v97, %v171
    %v213 = vmul.f32 %v98, %v156
    %v214 = vmul.f32 %v98, %v161
    %v215 = vmul.f32 %v98, %v166
    %v216 = vmul.f32 %v98, %v171
    %v217 = vmul.f32 %v99, %v156
    %v218 = vmul.f32 %v99, %v161
    %v219 = vmul.f32 %v99, %v166
    %v220 = vmul.f32 %v99, %v171
    %v221 = vmul.f32 %v100, %v156
    %v222 = vmul.f32 %v100, %v161
    %v223 = vmul.f32 %v100, %v166
    %v224 = vmul.f32 %v100, %v171
    %v225 = vmul.f32 %v101, %v156
    %v226 = vmul.f32 %v101, %v161
    %v227 = vmul.f32 %v101, %v166
    %v228 = vmul.f32 %v101, %v171
    %v229 = vmul.f32 %v102, %v156
    %v230 = vmul.f32 %v102, %v161
    %v231 = vmul.f32 %v102, %v166
    %v232 = vmul.f32 %v102, %v171
    %v233 = vmul.f32 %v103, %v156
    %v234 = vmul.f32 %v103, %v161
    %v235 = vmul.f32 %v103, %v166
    %v236 = vmul.f32 %v103, %v171
    %v237 = vmul.f32 %v104, %v156
    %v238 = vmul.f32 %v104, %v161
    %v239 = vmul.f32 %v104, %v166
    %v240 = vmul.f32 %v104, %v171
    %v241 = vmul.f32 %v105, %v156
    %v242 = vmul.f32 %v105, %v161
    %v243 = vmul.f32 %v105, %v166
    %v244 = vmul.f32 %v105, %v171
    %v245 = vmul.f32 %v106, %v156
    %v246 = vmul.f32 %v106, %v161
    %v247 = vmul.f32 %v106, %v166
    %v248 = vmul.f32 %v106, %v171
    %v249 = vmul.f32 %v107, %v156
    %v250 = vmul.f32 %v107, %v161
    %v251 = vmul.f32 %v107, %v166
    %v252 = vmul.f32 %v107, %v171
    %v253 = vmul.f32 %v108, %v176
    %v254 = vmul.f32 %v108, %v181
    %v255 = vmul.f32 %v108, %v186
    %v256 = vmul.f32 %v108, %v191
    %v257 = vmul.f32 %v109, %v176
    %v258 = vmul.f32 %v109, %v181
    %v259 = vmul.f32 %v109, %v186
    %v260 = vmul.f32 %v109, %v191
    %v261 = vmul.f32 %v110, %v176
    %v262 = vmul.f32 %v110, %v181
    %v263 = vmul.f32 %v110, %v186
    %v264 = vmul.f32 %v110, %v191
    %v265 = vmul.f32 %v111, %v176
    %v266 = vmul.f32 %v111, %v181
    %v267 = vmul.f32 %v111, %v186
    %v268 = vmul.f32 %v111, %v191
    %v269 = vmul.f32 %v112, %v176
    %v270 = vmul.f32 %v112, %v181
    %v271 = vmul.f32 %v112, %v186
    %v272 = vmul.f32 %v112, %v191
    %v273 = vmul.f32 %v113, %v176
    %v274 = vmul.f32 %v113, %v181
    %v275 = vmul.f32 %v113, %v186
    %v276 = vmul.f32 %v113, %v191
    %v277 = vmul.f32 %v114, %v176
    %v278 = vmul.f32 %v114, %v181
    %v279 = vmul.f32 %v114, %v186
    %v280 = vmul.f32 %v114, %v191
    %v281 = vmul.f32 %v115, %v176
    %v282 = vmul.f32 %v115, %v181
    %v283 = vmul.f32 %v115, %v186
    %v284 = vmul.f32 %v115, %v191
    %v285 = vmul.f32 %v116, %v176
    %v286 = vmul.f32 %v116, %v181
    %v287 = vmul.f32 %v116, %v186
    %v288 = vmul.f32 %v116, %v191
    %v289 = vmul.f32 %v117, %v176
    %v290 = vmul.f32 %v117, %v181
    %v291 = vmul.f32 %v117, %v186
    %v292 = vmul.f32 %v117, %v191
    %v293 = vmul.f32 %v118, %v176
    %v294 = vmul.f32 %v118, %v181
    %v295 = vmul.f32 %v118, %v186
    %v296 = vmul.f32 %v118, %v191
    %v297 = vmul.f32 %v119, %v176
    %v298 = vmul.f32 %v119, %v181
    %v299 = vmul.f32 %v119, %v186
    %v300 = vmul.f32 %v119, %v191
    %v301 = vmul.f32 %v120, %v176
    %v302 = vmul.f32 %v120, %v181
    %v303 = vmul.f32 %v120, %v186
    %v304 = vmul.f32 %v120, %v191
    %v305 = vmul.f32 %v121, %v176
    %v306 = vmul.f32 %v121, %v181
    %v307 = vmul.f32 %v121, %v186
    %v308 = vmul.f32 %v121, %v191
    %v309 = vmul.f32 %v122, %v176
    %v310 = vmul.f32 %v122, %v181
    %v311 = vmul.f32 %v122, %v186
    %v312 = vmul.f32 %v122, %v191
    %313 = vset.pattern.permute.xlu0 0
    %314 = vperm.xlu0 %313, %v55
    %v315 = vpop.permute.xlu0 %314
    %317 = vset.pattern.permute.xlu0 0
    %318 = vperm.xlu0 %317, %v56
    %v319 = vpop.permute.xlu0 %318
    %321 = vset.pattern.permute.xlu0 0
    %322 = vperm.xlu0 %321, %v57
    %v323 = vpop.permute.xlu0 %322
    %325 = vset.pattern.permute.xlu0 0
    %326 = vperm.xlu0 %325, %v58
    %v327 = vpop.permute.xlu0 %326
    %329 = vset.pattern.permute.xlu0 0
    %330 = vperm.xlu0 %329, %v59
    %v331 = vpop.permute.xlu0 %330
    %333 = vset.pattern.permute.xlu0 0
    %334 = vperm.xlu0 %333, %v60
    %v335 = vpop.permute.xlu0 %334
    %337 = vset.pattern.permute.xlu0 0
    %338 = vperm.xlu0 %337, %v61
    %v339 = vpop.permute.xlu0 %338
    %341 = vset.pattern.permute.xlu0 0
    %342 = vperm.xlu0 %341, %v62
    %v343 = vpop.permute.xlu0 %342
    %v345 = vadd.f32 %v193, %v315
    %v346 = vadd.f32 %v194, %v319
    %v347 = vadd.f32 %v195, %v323
    %v348 = vadd.f32 %v196, %v327
    %v349 = vadd.f32 %v197, %v315
    %v350 = vadd.f32 %v198, %v319
    %v351 = vadd.f32 %v199, %v323
    %v352 = vadd.f32 %v200, %v327
    %v353 = vadd.f32 %v201, %v315
    %v354 = vadd.f32 %v202, %v319
    %v355 = vadd.f32 %v203, %v323
    %v356 = vadd.f32 %v204, %v327
    %v357 = vadd.f32 %v205, %v315
    %v358 = vadd.f32 %v206, %v319
    %v359 = vadd.f32 %v207, %v323
    %v360 = vadd.f32 %v208, %v327
    %v361 = vadd.f32 %v209, %v315
    %v362 = vadd.f32 %v210, %v319
    %v363 = vadd.f32 %v211, %v323
    %v364 = vadd.f32 %v212, %v327
    %v365 = vadd.f32 %v213, %v315
    %v366 = vadd.f32 %v214, %v319
    %v367 = vadd.f32 %v215, %v323
    %v368 = vadd.f32 %v216, %v327
    %v369 = vadd.f32 %v217, %v315
    %v370 = vadd.f32 %v218, %v319
    %v371 = vadd.f32 %v219, %v323
    %v372 = vadd.f32 %v220, %v327
    %v373 = vadd.f32 %v221, %v315
    %v374 = vadd.f32 %v222, %v319
    %v375 = vadd.f32 %v223, %v323
    %v376 = vadd.f32 %v224, %v327
    %v377 = vadd.f32 %v225, %v315
    %v378 = vadd.f32 %v226, %v319
    %v379 = vadd.f32 %v227, %v323
    %v380 = vadd.f32 %v228, %v327
    %v381 = vadd.f32 %v229, %v315
    %v382 = vadd.f32 %v230, %v319
    %v383 = vadd.f32 %v231, %v323
    %v384 = vadd.f32 %v232, %v327
    %v385 = vadd.f32 %v233, %v315
    %v386 = vadd.f32 %v234, %v319
    %v387 = vadd.f32 %v235, %v323
    %v388 = vadd.f32 %v236, %v327
    %v389 = vadd.f32 %v237, %v315
    %v390 = vadd.f32 %v238, %v319
    %v391 = vadd.f32 %v239, %v323
    %v392 = vadd.f32 %v240, %v327
    %v393 = vadd.f32 %v241, %v315
    %v394 = vadd.f32 %v242, %v319
    %v395 = vadd.f32 %v243, %v323
    %v396 = vadd.f32 %v244, %v327
    %v397 = vadd.f32 %v245, %v315
    %v398 = vadd.f32 %v246, %v319
    %v399 = vadd.f32 %v247, %v323
    %v400 = vadd.f32 %v248, %v327
    %v401 = vadd.f32 %v249, %v315
    %v402 = vadd.f32 %v250, %v319
    %v403 = vadd.f32 %v251, %v323
    %v404 = vadd.f32 %v252, %v327
    %v405 = vadd.f32 %v253, %v331
    %v406 = vadd.f32 %v254, %v335
    %v407 = vadd.f32 %v255, %v339
    %v408 = vadd.f32 %v256, %v343
    %v409 = vadd.f32 %v257, %v331
    %v410 = vadd.f32 %v258, %v335
    %v411 = vadd.f32 %v259, %v339
    %v412 = vadd.f32 %v260, %v343
    %v413 = vadd.f32 %v261, %v331
    %v414 = vadd.f32 %v262, %v335
    %v415 = vadd.f32 %v263, %v339
    %v416 = vadd.f32 %v264, %v343
    %v417 = vadd.f32 %v265, %v331
    %v418 = vadd.f32 %v266, %v335
    %v419 = vadd.f32 %v267, %v339
    %v420 = vadd.f32 %v268, %v343
    %v421 = vadd.f32 %v269, %v331
    %v422 = vadd.f32 %v270, %v335
    %v423 = vadd.f32 %v271, %v339
    %v424 = vadd.f32 %v272, %v343
    %v425 = vadd.f32 %v273, %v331
    %v426 = vadd.f32 %v274, %v335
    %v427 = vadd.f32 %v275, %v339
    %v428 = vadd.f32 %v276, %v343
    %v429 = vadd.f32 %v277, %v331
    %v430 = vadd.f32 %v278, %v335
    %v431 = vadd.f32 %v279, %v339
    %v432 = vadd.f32 %v280, %v343
    %v433 = vadd.f32 %v281, %v331
    %v434 = vadd.f32 %v282, %v335
    %v435 = vadd.f32 %v283, %v339
    %v436 = vadd.f32 %v284, %v343
    %v437 = vadd.f32 %v285, %v331
    %v438 = vadd.f32 %v286, %v335
    %v439 = vadd.f32 %v287, %v339
    %v440 = vadd.f32 %v288, %v343
    %v441 = vadd.f32 %v289, %v331
    %v442 = vadd.f32 %v290, %v335
    %v443 = vadd.f32 %v291, %v339
    %v444 = vadd.f32 %v292, %v343
    %v445 = vadd.f32 %v293, %v331
    %v446 = vadd.f32 %v294, %v335
    %v447 = vadd.f32 %v295, %v339
    %v448 = vadd.f32 %v296, %v343
    %v449 = vadd.f32 %v297, %v331
    %v450 = vadd.f32 %v298, %v335
    %v451 = vadd.f32 %v299, %v339
    %v452 = vadd.f32 %v300, %v343
    %v453 = vadd.f32 %v301, %v331
    %v454 = vadd.f32 %v302, %v335
    %v455 = vadd.f32 %v303, %v339
    %v456 = vadd.f32 %v304, %v343
    %v457 = vadd.f32 %v305, %v331
    %v458 = vadd.f32 %v306, %v335
    %v459 = vadd.f32 %v307, %v339
    %v460 = vadd.f32 %v308, %v343
    %v461 = vadd.f32 %v309, %v331
    %v462 = vadd.f32 %v310, %v335
    %v463 = vadd.f32 %v311, %v339
    %v464 = vadd.f32 %v312, %v343
    %v467 = vperm.slane %v30, 0
    %v468 = vperm.slane %v50, 0
    %471 = vset.pattern.permute.xlu0 4
    %472 = vperm.xlu0 %471, %v55
    %v473 = vpop.permute.xlu0 %472
    %475 = vset.pattern.permute.xlu0 4
    %476 = vperm.xlu0 %475, %v56
    %v477 = vpop.permute.xlu0 %476
    %479 = vset.pattern.permute.xlu0 4
    %480 = vperm.xlu0 %479, %v57
    %v481 = vpop.permute.xlu0 %480
    %483 = vset.pattern.permute.xlu0 4
    %484 = vperm.xlu0 %483, %v58
    %v485 = vpop.permute.xlu0 %484
    %487 = vset.pattern.permute.xlu0 4
    %488 = vperm.xlu0 %487, %v59
    %v489 = vpop.permute.xlu0 %488
    %491 = vset.pattern.permute.xlu0 4
    %492 = vperm.xlu0 %491, %v60
    %v493 = vpop.permute.xlu0 %492
    %495 = vset.pattern.permute.xlu0 4
    %496 = vperm.xlu0 %495, %v61
    %v497 = vpop.permute.xlu0 %496
    %499 = vset.pattern.permute.xlu0 4
    %500 = vperm.xlu0 %499, %v62
    %v501 = vpop.permute.xlu0 %500
    %v503 = vmul.f32 %v94, %v473
    %v504 = vmul.f32 %v94, %v477
    %v505 = vmul.f32 %v94, %v481
    %v506 = vmul.f32 %v94, %v485
    %v507 = vmul.f32 %v95, %v473
    %v508 = vmul.f32 %v95, %v477
    %v509 = vmul.f32 %v95, %v481
    %v510 = vmul.f32 %v95, %v485
    %v511 = vmul.f32 %v96, %v473
    %v512 = vmul.f32 %v96, %v477
    %v513 = vmul.f32 %v96, %v481
    %v514 = vmul.f32 %v96, %v485
    %v515 = vmul.f32 %v97, %v473
    %v516 = vmul.f32 %v97, %v477
    %v517 = vmul.f32 %v97, %v481
    %v518 = vmul.f32 %v97, %v485
    %v519 = vmul.f32 %v98, %v473
    %v520 = vmul.f32 %v98, %v477
    %v521 = vmul.f32 %v98, %v481
    %v522 = vmul.f32 %v98, %v485
    %v523 = vmul.f32 %v99, %v473
    %v524 = vmul.f32 %v99, %v477
    %v525 = vmul.f32 %v99, %v481
    %v526 = vmul.f32 %v99, %v485
    %v527 = vmul.f32 %v100, %v473
    %v528 = vmul.f32 %v100, %v477
    %v529 = vmul.f32 %v100, %v481
    %v530 = vmul.f32 %v100, %v485
    %v531 = vmul.f32 %v101, %v473
    %v532 = vmul.f32 %v101, %v477
    %v533 = vmul.f32 %v101, %v481
    %v534 = vmul.f32 %v101, %v485
    %v535 = vmul.f32 %v102, %v473
    %v536 = vmul.f32 %v102, %v477
    %v537 = vmul.f32 %v102, %v481
    %v538 = vmul.f32 %v102, %v485
    %v539 = vmul.f32 %v103, %v473
    %v540 = vmul.f32 %v103, %v477
    %v541 = vmul.f32 %v103, %v481
    %v542 = vmul.f32 %v103, %v485
    %v543 = vmul.f32 %v104, %v473
    %v544 = vmul.f32 %v104, %v477
    %v545 = vmul.f32 %v104, %v481
    %v546 = vmul.f32 %v104, %v485
    %v547 = vmul.f32 %v105, %v473
    %v548 = vmul.f32 %v105, %v477
    %v549 = vmul.f32 %v105, %v481
    %v550 = vmul.f32 %v105, %v485
    %v551 = vmul.f32 %v106, %v473
    %v552 = vmul.f32 %v106, %v477
    %v553 = vmul.f32 %v106, %v481
    %v554 = vmul.f32 %v106, %v485
    %v555 = vmul.f32 %v107, %v473
    %v556 = vmul.f32 %v107, %v477
    %v557 = vmul.f32 %v107, %v481
    %v558 = vmul.f32 %v107, %v485
    %v559 = vmul.f32 %v467, %v473
    %v560 = vmul.f32 %v467, %v477
    %v561 = vmul.f32 %v467, %v481
    %v562 = vmul.f32 %v467, %v485
    %v563 = vmul.f32 %v109, %v489
    %v564 = vmul.f32 %v109, %v493
    %v565 = vmul.f32 %v109, %v497
    %v566 = vmul.f32 %v109, %v501
    %v567 = vmul.f32 %v110, %v489
    %v568 = vmul.f32 %v110, %v493
    %v569 = vmul.f32 %v110, %v497
    %v570 = vmul.f32 %v110, %v501
    %v571 = vmul.f32 %v111, %v489
    %v572 = vmul.f32 %v111, %v493
    %v573 = vmul.f32 %v111, %v497
    %v574 = vmul.f32 %v111, %v501
    %v575 = vmul.f32 %v112, %v489
    %v576 = vmul.f32 %v112, %v493
    %v577 = vmul.f32 %v112, %v497
    %v578 = vmul.f32 %v112, %v501
    %v579 = vmul.f32 %v113, %v489
    %v580 = vmul.f32 %v113, %v493
    %v581 = vmul.f32 %v113, %v497
    %v582 = vmul.f32 %v113, %v501
    %v583 = vmul.f32 %v114, %v489
    %v584 = vmul.f32 %v114, %v493
    %v585 = vmul.f32 %v114, %v497
    %v586 = vmul.f32 %v114, %v501
    %v587 = vmul.f32 %v115, %v489
    %v588 = vmul.f32 %v115, %v493
    %v589 = vmul.f32 %v115, %v497
    %v590 = vmul.f32 %v115, %v501
    %v591 = vmul.f32 %v116, %v489
    %v592 = vmul.f32 %v116, %v493
    %v593 = vmul.f32 %v116, %v497
    %v594 = vmul.f32 %v116, %v501
    %v595 = vmul.f32 %v117, %v489
    %v596 = vmul.f32 %v117, %v493
    %v597 = vmul.f32 %v117, %v497
    %v598 = vmul.f32 %v117, %v501
    %v599 = vmul.f32 %v118, %v489
    %v600 = vmul.f32 %v118, %v493
    %v601 = vmul.f32 %v118, %v497
    %v602 = vmul.f32 %v118, %v501
    %v603 = vmul.f32 %v119, %v489
    %v604 = vmul.f32 %v119, %v493
    %v605 = vmul.f32 %v119, %v497
    %v606 = vmul.f32 %v119, %v501
    %v607 = vmul.f32 %v120, %v489
    %v608 = vmul.f32 %v120, %v493
    %v609 = vmul.f32 %v120, %v497
    %v610 = vmul.f32 %v120, %v501
    %v611 = vmul.f32 %v121, %v489
    %v612 = vmul.f32 %v121, %v493
    %v613 = vmul.f32 %v121, %v497
    %v614 = vmul.f32 %v121, %v501
    %v615 = vmul.f32 %v122, %v489
    %v616 = vmul.f32 %v122, %v493
    %v617 = vmul.f32 %v122, %v497
    %v618 = vmul.f32 %v122, %v501
    %v619 = vmul.f32 %v468, %v489
    %v620 = vmul.f32 %v468, %v493
    %v621 = vmul.f32 %v468, %v497
    %v622 = vmul.f32 %v468, %v501
    %v623 = vadd.f32 %v345, %v503
    %v624 = vadd.f32 %v346, %v504
    %v625 = vadd.f32 %v347, %v505
    %v626 = vadd.f32 %v348, %v506
    %v627 = vadd.f32 %v349, %v507
    %v628 = vadd.f32 %v350, %v508
    %v629 = vadd.f32 %v351, %v509
    %v630 = vadd.f32 %v352, %v510
    %v631 = vadd.f32 %v353, %v511
    %v632 = vadd.f32 %v354, %v512
    %v633 = vadd.f32 %v355, %v513
    %v634 = vadd.f32 %v356, %v514
    %v635 = vadd.f32 %v357, %v515
    %v636 = vadd.f32 %v358, %v516
    %v637 = vadd.f32 %v359, %v517
    %v638 = vadd.f32 %v360, %v518
    %v639 = vadd.f32 %v361, %v519
    %v640 = vadd.f32 %v362, %v520
    %v641 = vadd.f32 %v363, %v521
    %v642 = vadd.f32 %v364, %v522
    %v643 = vadd.f32 %v365, %v523
    %v644 = vadd.f32 %v366, %v524
    %v645 = vadd.f32 %v367, %v525
    %v646 = vadd.f32 %v368, %v526
    %v647 = vadd.f32 %v369, %v527
    %v648 = vadd.f32 %v370, %v528
    %v649 = vadd.f32 %v371, %v529
    %v650 = vadd.f32 %v372, %v530
    %v651 = vadd.f32 %v373, %v531
    %v652 = vadd.f32 %v374, %v532
    %v653 = vadd.f32 %v375, %v533
    %v654 = vadd.f32 %v376, %v534
    %v655 = vadd.f32 %v377, %v535
    %v656 = vadd.f32 %v378, %v536
    %v657 = vadd.f32 %v379, %v537
    %v658 = vadd.f32 %v380, %v538
    %v659 = vadd.f32 %v381, %v539
    %v660 = vadd.f32 %v382, %v540
    %v661 = vadd.f32 %v383, %v541
    %v662 = vadd.f32 %v384, %v542
    %v663 = vadd.f32 %v385, %v543
    %v664 = vadd.f32 %v386, %v544
    %v665 = vadd.f32 %v387, %v545
    %v666 = vadd.f32 %v388, %v546
    %v667 = vadd.f32 %v389, %v547
    %v668 = vadd.f32 %v390, %v548
    %v669 = vadd.f32 %v391, %v549
    %v670 = vadd.f32 %v392, %v550
    %v671 = vadd.f32 %v393, %v551
    %v672 = vadd.f32 %v394, %v552
    %v673 = vadd.f32 %v395, %v553
    %v674 = vadd.f32 %v396, %v554
    %v675 = vadd.f32 %v397, %v555
    %v676 = vadd.f32 %v398, %v556
    %v677 = vadd.f32 %v399, %v557
    %v678 = vadd.f32 %v400, %v558
    %v679 = vadd.f32 %v401, %v559
    %v680 = vadd.f32 %v402, %v560
    %v681 = vadd.f32 %v403, %v561
    %v682 = vadd.f32 %v404, %v562
    %v683 = vadd.f32 %v405, %v563
    %v684 = vadd.f32 %v406, %v564
    %v685 = vadd.f32 %v407, %v565
    %v686 = vadd.f32 %v408, %v566
    %v687 = vadd.f32 %v409, %v567
    %v688 = vadd.f32 %v410, %v568
    %v689 = vadd.f32 %v411, %v569
    %v690 = vadd.f32 %v412, %v570
    %v691 = vadd.f32 %v413, %v571
    %v692 = vadd.f32 %v414, %v572
    %v693 = vadd.f32 %v415, %v573
    %v694 = vadd.f32 %v416, %v574
    %v695 = vadd.f32 %v417, %v575
    %v696 = vadd.f32 %v418, %v576
    %v697 = vadd.f32 %v419, %v577
    %v698 = vadd.f32 %v420, %v578
    %v699 = vadd.f32 %v421, %v579
    %v700 = vadd.f32 %v422, %v580
    %v701 = vadd.f32 %v423, %v581
    %v702 = vadd.f32 %v424, %v582
    %v703 = vadd.f32 %v425, %v583
    %v704 = vadd.f32 %v426, %v584
    %v705 = vadd.f32 %v427, %v585
    %v706 = vadd.f32 %v428, %v586
    %v707 = vadd.f32 %v429, %v587
    %v708 = vadd.f32 %v430, %v588
    %v709 = vadd.f32 %v431, %v589
    %v710 = vadd.f32 %v432, %v590
    %v711 = vadd.f32 %v433, %v591
    %v712 = vadd.f32 %v434, %v592
    %v713 = vadd.f32 %v435, %v593
    %v714 = vadd.f32 %v436, %v594
    %v715 = vadd.f32 %v437, %v595
    %v716 = vadd.f32 %v438, %v596
    %v717 = vadd.f32 %v439, %v597
    %v718 = vadd.f32 %v440, %v598
    %v719 = vadd.f32 %v441, %v599
    %v720 = vadd.f32 %v442, %v600
    %v721 = vadd.f32 %v443, %v601
    %v722 = vadd.f32 %v444, %v602
    %v723 = vadd.f32 %v445, %v603
    %v724 = vadd.f32 %v446, %v604
    %v725 = vadd.f32 %v447, %v605
    %v726 = vadd.f32 %v448, %v606
    %v727 = vadd.f32 %v449, %v607
    %v728 = vadd.f32 %v450, %v608
    %v729 = vadd.f32 %v451, %v609
    %v730 = vadd.f32 %v452, %v610
    %v731 = vadd.f32 %v453, %v611
    %v732 = vadd.f32 %v454, %v612
    %v733 = vadd.f32 %v455, %v613
    %v734 = vadd.f32 %v456, %v614
    %v735 = vadd.f32 %v457, %v615
    %v736 = vadd.f32 %v458, %v616
    %v737 = vadd.f32 %v459, %v617
    %v738 = vadd.f32 %v460, %v618
    %v739 = vadd.f32 %v461, %v619
    %v740 = vadd.f32 %v462, %v620
    %v741 = vadd.f32 %v463, %v621
    %v742 = vadd.f32 %v464, %v622
    %v745 = vperm.slane %v31, 0
    %v746 = vperm.slane %v51, 0
    %749 = vset.pattern.permute.xlu0 5
    %750 = vperm.xlu0 %749, %v55
    %v751 = vpop.permute.xlu0 %750
    %753 = vset.pattern.permute.xlu0 5
    %754 = vperm.xlu0 %753, %v56
    %v755 = vpop.permute.xlu0 %754
    %757 = vset.pattern.permute.xlu0 5
    %758 = vperm.xlu0 %757, %v57
    %v759 = vpop.permute.xlu0 %758
    %761 = vset.pattern.permute.xlu0 5
    %762 = vperm.xlu0 %761, %v58
    %v763 = vpop.permute.xlu0 %762
    %765 = vset.pattern.permute.xlu0 5
    %766 = vperm.xlu0 %765, %v59
    %v767 = vpop.permute.xlu0 %766
    %769 = vset.pattern.permute.xlu0 5
    %770 = vperm.xlu0 %769, %v60
    %v771 = vpop.permute.xlu0 %770
    %773 = vset.pattern.permute.xlu0 5
    %774 = vperm.xlu0 %773, %v61
    %v775 = vpop.permute.xlu0 %774
    %777 = vset.pattern.permute.xlu0 5
    %778 = vperm.xlu0 %777, %v62
    %v779 = vpop.permute.xlu0 %778
    %v781 = vmul.f32 %v95, %v751
    %v782 = vmul.f32 %v95, %v755
    %v783 = vmul.f32 %v95, %v759
    %v784 = vmul.f32 %v95, %v763
    %v785 = vmul.f32 %v96, %v751
    %v786 = vmul.f32 %v96, %v755
    %v787 = vmul.f32 %v96, %v759
    %v788 = vmul.f32 %v96, %v763
    %v789 = vmul.f32 %v97, %v751
    %v790 = vmul.f32 %v97, %v755
    %v791 = vmul.f32 %v97, %v759
    %v792 = vmul.f32 %v97, %v763
    %v793 = vmul.f32 %v98, %v751
    %v794 = vmul.f32 %v98, %v755
    %v795 = vmul.f32 %v98, %v759
    %v796 = vmul.f32 %v98, %v763
    %v797 = vmul.f32 %v99, %v751
    %v798 = vmul.f32 %v99, %v755
    %v799 = vmul.f32 %v99, %v759
    %v800 = vmul.f32 %v99, %v763
    %v801 = vmul.f32 %v100, %v751
    %v802 = vmul.f32 %v100, %v755
    %v803 = vmul.f32 %v100, %v759
    %v804 = vmul.f32 %v100, %v763
    %v805 = vmul.f32 %v101, %v751
    %v806 = vmul.f32 %v101, %v755
    %v807 = vmul.f32 %v101, %v759
    %v808 = vmul.f32 %v101, %v763
    %v809 = vmul.f32 %v102, %v751
    %v810 = vmul.f32 %v102, %v755
    %v811 = vmul.f32 %v102, %v759
    %v812 = vmul.f32 %v102, %v763
    %v813 = vmul.f32 %v103, %v751
    %v814 = vmul.f32 %v103, %v755
    %v815 = vmul.f32 %v103, %v759
    %v816 = vmul.f32 %v103, %v763
    %v817 = vmul.f32 %v104, %v751
    %v818 = vmul.f32 %v104, %v755
    %v819 = vmul.f32 %v104, %v759
    %v820 = vmul.f32 %v104, %v763
    %v821 = vmul.f32 %v105, %v751
    %v822 = vmul.f32 %v105, %v755
    %v823 = vmul.f32 %v105, %v759
    %v824 = vmul.f32 %v105, %v763
    %v825 = vmul.f32 %v106, %v751
    %v826 = vmul.f32 %v106, %v755
    %v827 = vmul.f32 %v106, %v759
    %v828 = vmul.f32 %v106, %v763
    %v829 = vmul.f32 %v107, %v751
    %v830 = vmul.f32 %v107, %v755
    %v831 = vmul.f32 %v107, %v759
    %v832 = vmul.f32 %v107, %v763
    %v833 = vmul.f32 %v467, %v751
    %v834 = vmul.f32 %v467, %v755
    %v835 = vmul.f32 %v467, %v759
    %v836 = vmul.f32 %v467, %v763
    %v837 = vmul.f32 %v745, %v751
    %v838 = vmul.f32 %v745, %v755
    %v839 = vmul.f32 %v745, %v759
    %v840 = vmul.f32 %v745, %v763
    %v841 = vmul.f32 %v110, %v767
    %v842 = vmul.f32 %v110, %v771
    %v843 = vmul.f32 %v110, %v775
    %v844 = vmul.f32 %v110, %v779
    %v845 = vmul.f32 %v111, %v767
    %v846 = vmul.f32 %v111, %v771
    %v847 = vmul.f32 %v111, %v775
    %v848 = vmul.f32 %v111, %v779
    %v849 = vmul.f32 %v112, %v767
    %v850 = vmul.f32 %v112, %v771
    %v851 = vmul.f32 %v112, %v775
    %v852 = vmul.f32 %v112, %v779
    %v853 = vmul.f32 %v113, %v767
    %v854 = vmul.f32 %v113, %v771
    %v855 = vmul.f32 %v113, %v775
    %v856 = vmul.f32 %v113, %v779
    %v857 = vmul.f32 %v114, %v767
    %v858 = vmul.f32 %v114, %v771
    %v859 = vmul.f32 %v114, %v775
    %v860 = vmul.f32 %v114, %v779
    %v861 = vmul.f32 %v115, %v767
    %v862 = vmul.f32 %v115, %v771
    %v863 = vmul.f32 %v115, %v775
    %v864 = vmul.f32 %v115, %v779
    %v865 = vmul.f32 %v116, %v767
    %v866 = vmul.f32 %v116, %v771
    %v867 = vmul.f32 %v116, %v775
    %v868 = vmul.f32 %v116, %v779
    %v869 = vmul.f32 %v117, %v767
    %v870 = vmul.f32 %v117, %v771
    %v871 = vmul.f32 %v117, %v775
    %v872 = vmul.f32 %v117, %v779
    %v873 = vmul.f32 %v118, %v767
    %v874 = vmul.f32 %v118, %v771
    %v875 = vmul.f32 %v118, %v775
    %v876 = vmul.f32 %v118, %v779
    %v877 = vmul.f32 %v119, %v767
    %v878 = vmul.f32 %v119, %v771
    %v879 = vmul.f32 %v119, %v775
    %v880 = vmul.f32 %v119, %v779
    %v881 = vmul.f32 %v120, %v767
    %v882 = vmul.f32 %v120, %v771
    %v883 = vmul.f32 %v120, %v775
    %v884 = vmul.f32 %v120, %v779
    %v885 = vmul.f32 %v121, %v767
    %v886 = vmul.f32 %v121, %v771
    %v887 = vmul.f32 %v121, %v775
    %v888 = vmul.f32 %v121, %v779
    %v889 = vmul.f32 %v122, %v767
    %v890 = vmul.f32 %v122, %v771
    %v891 = vmul.f32 %v122, %v775
    %v892 = vmul.f32 %v122, %v779
    %v893 = vmul.f32 %v468, %v767
    %v894 = vmul.f32 %v468, %v771
    %v895 = vmul.f32 %v468, %v775
    %v896 = vmul.f32 %v468, %v779
    %v897 = vmul.f32 %v746, %v767
    %v898 = vmul.f32 %v746, %v771
    %v899 = vmul.f32 %v746, %v775
    %v900 = vmul.f32 %v746, %v779
    %v901 = vadd.f32 %v623, %v781
    %v902 = vadd.f32 %v624, %v782
    %v903 = vadd.f32 %v625, %v783
    %v904 = vadd.f32 %v626, %v784
    %v905 = vadd.f32 %v627, %v785
    %v906 = vadd.f32 %v628, %v786
    %v907 = vadd.f32 %v629, %v787
    %v908 = vadd.f32 %v630, %v788
    %v909 = vadd.f32 %v631, %v789
    %v910 = vadd.f32 %v632, %v790
    %v911 = vadd.f32 %v633, %v791
    %v912 = vadd.f32 %v634, %v792
    %v913 = vadd.f32 %v635, %v793
    %v914 = vadd.f32 %v636, %v794
    %v915 = vadd.f32 %v637, %v795
    %v916 = vadd.f32 %v638, %v796
    %v917 = vadd.f32 %v639, %v797
    %v918 = vadd.f32 %v640, %v798
    %v919 = vadd.f32 %v641, %v799
    %v920 = vadd.f32 %v642, %v800
    %v921 = vadd.f32 %v643, %v801
    %v922 = vadd.f32 %v644, %v802
    %v923 = vadd.f32 %v645, %v803
    %v924 = vadd.f32 %v646, %v804
    %v925 = vadd.f32 %v647, %v805
    %v926 = vadd.f32 %v648, %v806
    %v927 = vadd.f32 %v649, %v807
    %v928 = vadd.f32 %v650, %v808
    %v929 = vadd.f32 %v651, %v809
    %v930 = vadd.f32 %v652, %v810
    %v931 = vadd.f32 %v653, %v811
    %v932 = vadd.f32 %v654, %v812
    %v933 = vadd.f32 %v655, %v813
    %v934 = vadd.f32 %v656, %v814
    %v935 = vadd.f32 %v657, %v815
    %v936 = vadd.f32 %v658, %v816
    %v937 = vadd.f32 %v659, %v817
    %v938 = vadd.f32 %v660, %v818
    %v939 = vadd.f32 %v661, %v819
    %v940 = vadd.f32 %v662, %v820
    %v941 = vadd.f32 %v663, %v821
    %v942 = vadd.f32 %v664, %v822
    %v943 = vadd.f32 %v665, %v823
    %v944 = vadd.f32 %v666, %v824
    %v945 = vadd.f32 %v667, %v825
    %v946 = vadd.f32 %v668, %v826
    %v947 = vadd.f32 %v669, %v827
    %v948 = vadd.f32 %v670, %v828
    %v949 = vadd.f32 %v671, %v829
    %v950 = vadd.f32 %v672, %v830
    %v951 = vadd.f32 %v673, %v831
    %v952 = vadd.f32 %v674, %v832
    %v953 = vadd.f32 %v675, %v833
    %v954 = vadd.f32 %v676, %v834
    %v955 = vadd.f32 %v677, %v835
    %v956 = vadd.f32 %v678, %v836
    %v957 = vadd.f32 %v679, %v837
    %v958 = vadd.f32 %v680, %v838
    %v959 = vadd.f32 %v681, %v839
    %v960 = vadd.f32 %v682, %v840
    %v961 = vadd.f32 %v683, %v841
    %v962 = vadd.f32 %v684, %v842
    %v963 = vadd.f32 %v685, %v843
    %v964 = vadd.f32 %v686, %v844
    %v965 = vadd.f32 %v687, %v845
    %v966 = vadd.f32 %v688, %v846
    %v967 = vadd.f32 %v689, %v847
    %v968 = vadd.f32 %v690, %v848
    %v969 = vadd.f32 %v691, %v849
    %v970 = vadd.f32 %v692, %v850
    %v971 = vadd.f32 %v693, %v851
    %v972 = vadd.f32 %v694, %v852
    %v973 = vadd.f32 %v695, %v853
    %v974 = vadd.f32 %v696, %v854
    %v975 = vadd.f32 %v697, %v855
    %v976 = vadd.f32 %v698, %v856
    %v977 = vadd.f32 %v699, %v857
    %v978 = vadd.f32 %v700, %v858
    %v979 = vadd.f32 %v701, %v859
    %v980 = vadd.f32 %v702, %v860
    %v981 = vadd.f32 %v703, %v861
    %v982 = vadd.f32 %v704, %v862
    %v983 = vadd.f32 %v705, %v863
    %v984 = vadd.f32 %v706, %v864
    %v985 = vadd.f32 %v707, %v865
    %v986 = vadd.f32 %v708, %v866
    %v987 = vadd.f32 %v709, %v867
    %v988 = vadd.f32 %v710, %v868
    %v989 = vadd.f32 %v711, %v869
    %v990 = vadd.f32 %v712, %v870
    %v991 = vadd.f32 %v713, %v871
    %v992 = vadd.f32 %v714, %v872
    %v993 = vadd.f32 %v715, %v873
    %v994 = vadd.f32 %v716, %v874
    %v995 = vadd.f32 %v717, %v875
    %v996 = vadd.f32 %v718, %v876
    %v997 = vadd.f32 %v719, %v877
    %v998 = vadd.f32 %v720, %v878
    %v999 = vadd.f32 %v721, %v879
    %v1000 = vadd.f32 %v722, %v880
    %v1001 = vadd.f32 %v723, %v881
    %v1002 = vadd.f32 %v724, %v882
    %v1003 = vadd.f32 %v725, %v883
    %v1004 = vadd.f32 %v726, %v884
    %v1005 = vadd.f32 %v727, %v885
    %v1006 = vadd.f32 %v728, %v886
    %v1007 = vadd.f32 %v729, %v887
    %v1008 = vadd.f32 %v730, %v888
    %v1009 = vadd.f32 %v731, %v889
    %v1010 = vadd.f32 %v732, %v890
    %v1011 = vadd.f32 %v733, %v891
    %v1012 = vadd.f32 %v734, %v892
    %v1013 = vadd.f32 %v735, %v893
    %v1014 = vadd.f32 %v736, %v894
    %v1015 = vadd.f32 %v737, %v895
    %v1016 = vadd.f32 %v738, %v896
    %v1017 = vadd.f32 %v739, %v897
    %v1018 = vadd.f32 %v740, %v898
    %v1019 = vadd.f32 %v741, %v899
    %v1020 = vadd.f32 %v742, %v900
    %v1023 = vperm.slane %v32, 0
    %v1024 = vperm.slane %v52, 0
    %1027 = vset.pattern.permute.xlu0 6
    %1028 = vperm.xlu0 %1027, %v55
    %v1029 = vpop.permute.xlu0 %1028
    %1031 = vset.pattern.permute.xlu0 6
    %1032 = vperm.xlu0 %1031, %v56
    %v1033 = vpop.permute.xlu0 %1032
    %1035 = vset.pattern.permute.xlu0 6
    %1036 = vperm.xlu0 %1035, %v57
    %v1037 = vpop.permute.xlu0 %1036
    %1039 = vset.pattern.permute.xlu0 6
    %1040 = vperm.xlu0 %1039, %v58
    %v1041 = vpop.permute.xlu0 %1040
    %1043 = vset.pattern.permute.xlu0 6
    %1044 = vperm.xlu0 %1043, %v59
    %v1045 = vpop.permute.xlu0 %1044
    %1047 = vset.pattern.permute.xlu0 6
    %1048 = vperm.xlu0 %1047, %v60
    %v1049 = vpop.permute.xlu0 %1048
    %1051 = vset.pattern.permute.xlu0 6
    %1052 = vperm.xlu0 %1051, %v61
    %v1053 = vpop.permute.xlu0 %1052
    %1055 = vset.pattern.permute.xlu0 6
    %1056 = vperm.xlu0 %1055, %v62
    %v1057 = vpop.permute.xlu0 %1056
    %v1059 = vmul.f32 %v96, %v1029
    %v1060 = vmul.f32 %v96, %v1033
    %v1061 = vmul.f32 %v96, %v1037
    %v1062 = vmul.f32 %v96, %v1041
    %v1063 = vmul.f32 %v97, %v1029
    %v1064 = vmul.f32 %v97, %v1033
    %v1065 = vmul.f32 %v97, %v1037
    %v1066 = vmul.f32 %v97, %v1041
    %v1067 = vmul.f32 %v98, %v1029
    %v1068 = vmul.f32 %v98, %v1033
    %v1069 = vmul.f32 %v98, %v1037
    %v1070 = vmul.f32 %v98, %v1041
    %v1071 = vmul.f32 %v99, %v1029
    %v1072 = vmul.f32 %v99, %v1033
    %v1073 = vmul.f32 %v99, %v1037
    %v1074 = vmul.f32 %v99, %v1041
    %v1075 = vmul.f32 %v100, %v1029
    %v1076 = vmul.f32 %v100, %v1033
    %v1077 = vmul.f32 %v100, %v1037
    %v1078 = vmul.f32 %v100, %v1041
    %v1079 = vmul.f32 %v101, %v1029
    %v1080 = vmul.f32 %v101, %v1033
    %v1081 = vmul.f32 %v101, %v1037
    %v1082 = vmul.f32 %v101, %v1041
    %v1083 = vmul.f32 %v102, %v1029
    %v1084 = vmul.f32 %v102, %v1033
    %v1085 = vmul.f32 %v102, %v1037
    %v1086 = vmul.f32 %v102, %v1041
    %v1087 = vmul.f32 %v103, %v1029
    %v1088 = vmul.f32 %v103, %v1033
    %v1089 = vmul.f32 %v103, %v1037
    %v1090 = vmul.f32 %v103, %v1041
    %v1091 = vmul.f32 %v104, %v1029
    %v1092 = vmul.f32 %v104, %v1033
    %v1093 = vmul.f32 %v104, %v1037
    %v1094 = vmul.f32 %v104, %v1041
    %v1095 = vmul.f32 %v105, %v1029
    %v1096 = vmul.f32 %v105, %v1033
    %v1097 = vmul.f32 %v105, %v1037
    %v1098 = vmul.f32 %v105, %v1041
    %v1099 = vmul.f32 %v106, %v1029
    %v1100 = vmul.f32 %v106, %v1033
    %v1101 = vmul.f32 %v106, %v1037
    %v1102 = vmul.f32 %v106, %v1041
    %v1103 = vmul.f32 %v107, %v1029
    %v1104 = vmul.f32 %v107, %v1033
    %v1105 = vmul.f32 %v107, %v1037
    %v1106 = vmul.f32 %v107, %v1041
    %v1107 = vmul.f32 %v467, %v1029
    %v1108 = vmul.f32 %v467, %v1033
    %v1109 = vmul.f32 %v467, %v1037
    %v1110 = vmul.f32 %v467, %v1041
    %v1111 = vmul.f32 %v745, %v1029
    %v1112 = vmul.f32 %v745, %v1033
    %v1113 = vmul.f32 %v745, %v1037
    %v1114 = vmul.f32 %v745, %v1041
    %v1115 = vmul.f32 %v1023, %v1029
    %v1116 = vmul.f32 %v1023, %v1033
    %v1117 = vmul.f32 %v1023, %v1037
    %v1118 = vmul.f32 %v1023, %v1041
    %v1119 = vmul.f32 %v111, %v1045
    %v1120 = vmul.f32 %v111, %v1049
    %v1121 = vmul.f32 %v111, %v1053
    %v1122 = vmul.f32 %v111, %v1057
    %v1123 = vmul.f32 %v112, %v1045
    %v1124 = vmul.f32 %v112, %v1049
    %v1125 = vmul.f32 %v112, %v1053
    %v1126 = vmul.f32 %v112, %v1057
    %v1127 = vmul.f32 %v113, %v1045
    %v1128 = vmul.f32 %v113, %v1049
    %v1129 = vmul.f32 %v113, %v1053
    %v1130 = vmul.f32 %v113, %v1057
    %v1131 = vmul.f32 %v114, %v1045
    %v1132 = vmul.f32 %v114, %v1049
    %v1133 = vmul.f32 %v114, %v1053
    %v1134 = vmul.f32 %v114, %v1057
    %v1135 = vmul.f32 %v115, %v1045
    %v1136 = vmul.f32 %v115, %v1049
    %v1137 = vmul.f32 %v115, %v1053
    %v1138 = vmul.f32 %v115, %v1057
    %v1139 = vmul.f32 %v116, %v1045
    %v1140 = vmul.f32 %v116, %v1049
    %v1141 = vmul.f32 %v116, %v1053
    %v1142 = vmul.f32 %v116, %v1057
    %v1143 = vmul.f32 %v117, %v1045
    %v1144 = vmul.f32 %v117, %v1049
    %v1145 = vmul.f32 %v117, %v1053
    %v1146 = vmul.f32 %v117, %v1057
    %v1147 = vmul.f32 %v118, %v1045
    %v1148 = vmul.f32 %v118, %v1049
    %v1149 = vmul.f32 %v118, %v1053
    %v1150 = vmul.f32 %v118, %v1057
    %v1151 = vmul.f32 %v119, %v1045
    %v1152 = vmul.f32 %v119, %v1049
    %v1153 = vmul.f32 %v119, %v1053
    %v1154 = vmul.f32 %v119, %v1057
    %v1155 = vmul.f32 %v120, %v1045
    %v1156 = vmul.f32 %v120, %v1049
    %v1157 = vmul.f32 %v120, %v1053
    %v1158 = vmul.f32 %v120, %v1057
    %v1159 = vmul.f32 %v121, %v1045
    %v1160 = vmul.f32 %v121, %v1049
    %v1161 = vmul.f32 %v121, %v1053
    %v1162 = vmul.f32 %v121, %v1057
    %v1163 = vmul.f32 %v122, %v1045
    %v1164 = vmul.f32 %v122, %v1049
    %v1165 = vmul.f32 %v122, %v1053
    %v1166 = vmul.f32 %v122, %v1057
    %v1167 = vmul.f32 %v468, %v1045
    %v1168 = vmul.f32 %v468, %v1049
    %v1169 = vmul.f32 %v468, %v1053
    %v1170 = vmul.f32 %v468, %v1057
    %v1171 = vmul.f32 %v746, %v1045
    %v1172 = vmul.f32 %v746, %v1049
    %v1173 = vmul.f32 %v746, %v1053
    %v1174 = vmul.f32 %v746, %v1057
    %v1175 = vmul.f32 %v1024, %v1045
    %v1176 = vmul.f32 %v1024, %v1049
    %v1177 = vmul.f32 %v1024, %v1053
    %v1178 = vmul.f32 %v1024, %v1057
    %v1179 = vadd.f32 %v901, %v1059
    %v1180 = vadd.f32 %v902, %v1060
    %v1181 = vadd.f32 %v903, %v1061
    %v1182 = vadd.f32 %v904, %v1062
    %v1183 = vadd.f32 %v905, %v1063
    %v1184 = vadd.f32 %v906, %v1064
    %v1185 = vadd.f32 %v907, %v1065
    %v1186 = vadd.f32 %v908, %v1066
    %v1187 = vadd.f32 %v909, %v1067
    %v1188 = vadd.f32 %v910, %v1068
    %v1189 = vadd.f32 %v911, %v1069
    %v1190 = vadd.f32 %v912, %v1070
    %v1191 = vadd.f32 %v913, %v1071
    %v1192 = vadd.f32 %v914, %v1072
    %v1193 = vadd.f32 %v915, %v1073
    %v1194 = vadd.f32 %v916, %v1074
    %v1195 = vadd.f32 %v917, %v1075
    %v1196 = vadd.f32 %v918, %v1076
    %v1197 = vadd.f32 %v919, %v1077
    %v1198 = vadd.f32 %v920, %v1078
    %v1199 = vadd.f32 %v921, %v1079
    %v1200 = vadd.f32 %v922, %v1080
    %v1201 = vadd.f32 %v923, %v1081
    %v1202 = vadd.f32 %v924, %v1082
    %v1203 = vadd.f32 %v925, %v1083
    %v1204 = vadd.f32 %v926, %v1084
    %v1205 = vadd.f32 %v927, %v1085
    %v1206 = vadd.f32 %v928, %v1086
    %v1207 = vadd.f32 %v929, %v1087
    %v1208 = vadd.f32 %v930, %v1088
    %v1209 = vadd.f32 %v931, %v1089
    %v1210 = vadd.f32 %v932, %v1090
    %v1211 = vadd.f32 %v933, %v1091
    %v1212 = vadd.f32 %v934, %v1092
    %v1213 = vadd.f32 %v935, %v1093
    %v1214 = vadd.f32 %v936, %v1094
    %v1215 = vadd.f32 %v937, %v1095
    %v1216 = vadd.f32 %v938, %v1096
    %v1217 = vadd.f32 %v939, %v1097
    %v1218 = vadd.f32 %v940, %v1098
    %v1219 = vadd.f32 %v941, %v1099
    %v1220 = vadd.f32 %v942, %v1100
    %v1221 = vadd.f32 %v943, %v1101
    %v1222 = vadd.f32 %v944, %v1102
    %v1223 = vadd.f32 %v945, %v1103
    %v1224 = vadd.f32 %v946, %v1104
    %v1225 = vadd.f32 %v947, %v1105
    %v1226 = vadd.f32 %v948, %v1106
    %v1227 = vadd.f32 %v949, %v1107
    %v1228 = vadd.f32 %v950, %v1108
    %v1229 = vadd.f32 %v951, %v1109
    %v1230 = vadd.f32 %v952, %v1110
    %v1231 = vadd.f32 %v953, %v1111
    %v1232 = vadd.f32 %v954, %v1112
    %v1233 = vadd.f32 %v955, %v1113
    %v1234 = vadd.f32 %v956, %v1114
    %v1235 = vadd.f32 %v957, %v1115
    %v1236 = vadd.f32 %v958, %v1116
    %v1237 = vadd.f32 %v959, %v1117
    %v1238 = vadd.f32 %v960, %v1118
    %v1239 = vadd.f32 %v961, %v1119
    %v1240 = vadd.f32 %v962, %v1120
    %v1241 = vadd.f32 %v963, %v1121
    %v1242 = vadd.f32 %v964, %v1122
    %v1243 = vadd.f32 %v965, %v1123
    %v1244 = vadd.f32 %v966, %v1124
    %v1245 = vadd.f32 %v967, %v1125
    %v1246 = vadd.f32 %v968, %v1126
    %v1247 = vadd.f32 %v969, %v1127
    %v1248 = vadd.f32 %v970, %v1128
    %v1249 = vadd.f32 %v971, %v1129
    %v1250 = vadd.f32 %v972, %v1130
    %v1251 = vadd.f32 %v973, %v1131
    %v1252 = vadd.f32 %v974, %v1132
    %v1253 = vadd.f32 %v975, %v1133
    %v1254 = vadd.f32 %v976, %v1134
    %v1255 = vadd.f32 %v977, %v1135
    %v1256 = vadd.f32 %v978, %v1136
    %v1257 = vadd.f32 %v979, %v1137
    %v1258 = vadd.f32 %v980, %v1138
    %v1259 = vadd.f32 %v981, %v1139
    %v1260 = vadd.f32 %v982, %v1140
    %v1261 = vadd.f32 %v983, %v1141
    %v1262 = vadd.f32 %v984, %v1142
    %v1263 = vadd.f32 %v985, %v1143
    %v1264 = vadd.f32 %v986, %v1144
    %v1265 = vadd.f32 %v987, %v1145
    %v1266 = vadd.f32 %v988, %v1146
    %v1267 = vadd.f32 %v989, %v1147
    %v1268 = vadd.f32 %v990, %v1148
    %v1269 = vadd.f32 %v991, %v1149
    %v1270 = vadd.f32 %v992, %v1150
    %v1271 = vadd.f32 %v993, %v1151
    %v1272 = vadd.f32 %v994, %v1152
    %v1273 = vadd.f32 %v995, %v1153
    %v1274 = vadd.f32 %v996, %v1154
    %v1275 = vadd.f32 %v997, %v1155
    %v1276 = vadd.f32 %v998, %v1156
    %v1277 = vadd.f32 %v999, %v1157
    %v1278 = vadd.f32 %v1000, %v1158
    %v1279 = vadd.f32 %v1001, %v1159
    %v1280 = vadd.f32 %v1002, %v1160
    %v1281 = vadd.f32 %v1003, %v1161
    %v1282 = vadd.f32 %v1004, %v1162
    %v1283 = vadd.f32 %v1005, %v1163
    %v1284 = vadd.f32 %v1006, %v1164
    %v1285 = vadd.f32 %v1007, %v1165
    %v1286 = vadd.f32 %v1008, %v1166
    %v1287 = vadd.f32 %v1009, %v1167
    %v1288 = vadd.f32 %v1010, %v1168
    %v1289 = vadd.f32 %v1011, %v1169
    %v1290 = vadd.f32 %v1012, %v1170
    %v1291 = vadd.f32 %v1013, %v1171
    %v1292 = vadd.f32 %v1014, %v1172
    %v1293 = vadd.f32 %v1015, %v1173
    %v1294 = vadd.f32 %v1016, %v1174
    %v1295 = vadd.f32 %v1017, %v1175
    %v1296 = vadd.f32 %v1018, %v1176
    %v1297 = vadd.f32 %v1019, %v1177
    %v1298 = vadd.f32 %v1020, %v1178
    %v1301 = vperm.slane %v33, 0
    %v1302 = vperm.slane %v53, 0
    %1305 = vset.pattern.permute.xlu0 7
    %1306 = vperm.xlu0 %1305, %v55
    %v1307 = vpop.permute.xlu0 %1306
    %1309 = vset.pattern.permute.xlu0 7
    %1310 = vperm.xlu0 %1309, %v56
    %v1311 = vpop.permute.xlu0 %1310
    %1313 = vset.pattern.permute.xlu0 7
    %1314 = vperm.xlu0 %1313, %v57
    %v1315 = vpop.permute.xlu0 %1314
    %1317 = vset.pattern.permute.xlu0 7
    %1318 = vperm.xlu0 %1317, %v58
    %v1319 = vpop.permute.xlu0 %1318
    %1321 = vset.pattern.permute.xlu0 7
    %1322 = vperm.xlu0 %1321, %v59
    %v1323 = vpop.permute.xlu0 %1322
    %1325 = vset.pattern.permute.xlu0 7
    %1326 = vperm.xlu0 %1325, %v60
    %v1327 = vpop.permute.xlu0 %1326
    %1329 = vset.pattern.permute.xlu0 7
    %1330 = vperm.xlu0 %1329, %v61
    %v1331 = vpop.permute.xlu0 %1330
    %1333 = vset.pattern.permute.xlu0 7
    %1334 = vperm.xlu0 %1333, %v62
    %v1335 = vpop.permute.xlu0 %1334
    %v1337 = vmul.f32 %v97, %v1307
    %v1338 = vmul.f32 %v97, %v1311
    %v1339 = vmul.f32 %v97, %v1315
    %v1340 = vmul.f32 %v97, %v1319
    %v1341 = vmul.f32 %v98, %v1307
    %v1342 = vmul.f32 %v98, %v1311
    %v1343 = vmul.f32 %v98, %v1315
    %v1344 = vmul.f32 %v98, %v1319
    %v1345 = vmul.f32 %v99, %v1307
    %v1346 = vmul.f32 %v99, %v1311
    %v1347 = vmul.f32 %v99, %v1315
    %v1348 = vmul.f32 %v99, %v1319
    %v1349 = vmul.f32 %v100, %v1307
    %v1350 = vmul.f32 %v100, %v1311
    %v1351 = vmul.f32 %v100, %v1315
    %v1352 = vmul.f32 %v100, %v1319
    %v1353 = vmul.f32 %v101, %v1307
    %v1354 = vmul.f32 %v101, %v1311
    %v1355 = vmul.f32 %v101, %v1315
    %v1356 = vmul.f32 %v101, %v1319
    %v1357 = vmul.f32 %v102, %v1307
    %v1358 = vmul.f32 %v102, %v1311
    %v1359 = vmul.f32 %v102, %v1315
    %v1360 = vmul.f32 %v102, %v1319
    %v1361 = vmul.f32 %v103, %v1307
    %v1362 = vmul.f32 %v103, %v1311
    %v1363 = vmul.f32 %v103, %v1315
    %v1364 = vmul.f32 %v103, %v1319
    %v1365 = vmul.f32 %v104, %v1307
    %v1366 = vmul.f32 %v104, %v1311
    %v1367 = vmul.f32 %v104, %v1315
    %v1368 = vmul.f32 %v104, %v1319
    %v1369 = vmul.f32 %v105, %v1307
    %v1370 = vmul.f32 %v105, %v1311
    %v1371 = vmul.f32 %v105, %v1315
    %v1372 = vmul.f32 %v105, %v1319
    %v1373 = vmul.f32 %v106, %v1307
    %v1374 = vmul.f32 %v106, %v1311
    %v1375 = vmul.f32 %v106, %v1315
    %v1376 = vmul.f32 %v106, %v1319
    %v1377 = vmul.f32 %v107, %v1307
    %v1378 = vmul.f32 %v107, %v1311
    %v1379 = vmul.f32 %v107, %v1315
    %v1380 = vmul.f32 %v107, %v1319
    %v1381 = vmul.f32 %v467, %v1307
    %v1382 = vmul.f32 %v467, %v1311
    %v1383 = vmul.f32 %v467, %v1315
    %v1384 = vmul.f32 %v467, %v1319
    %v1385 = vmul.f32 %v745, %v1307
    %v1386 = vmul.f32 %v745, %v1311
    %v1387 = vmul.f32 %v745, %v1315
    %v1388 = vmul.f32 %v745, %v1319
    %v1389 = vmul.f32 %v1023, %v1307
    %v1390 = vmul.f32 %v1023, %v1311
    %v1391 = vmul.f32 %v1023, %v1315
    %v1392 = vmul.f32 %v1023, %v1319
    %v1393 = vmul.f32 %v1301, %v1307
    %v1394 = vmul.f32 %v1301, %v1311
    %v1395 = vmul.f32 %v1301, %v1315
    %v1396 = vmul.f32 %v1301, %v1319
    %v1397 = vmul.f32 %v112, %v1323
    %v1398 = vmul.f32 %v112, %v1327
    %v1399 = vmul.f32 %v112, %v1331
    %v1400 = vmul.f32 %v112, %v1335
    %v1401 = vmul.f32 %v113, %v1323
    %v1402 = vmul.f32 %v113, %v1327
    %v1403 = vmul.f32 %v113, %v1331
    %v1404 = vmul.f32 %v113, %v1335
    %v1405 = vmul.f32 %v114, %v1323
    %v1406 = vmul.f32 %v114, %v1327
    %v1407 = vmul.f32 %v114, %v1331
    %v1408 = vmul.f32 %v114, %v1335
    %v1409 = vmul.f32 %v115, %v1323
    %v1410 = vmul.f32 %v115, %v1327
    %v1411 = vmul.f32 %v115, %v1331
    %v1412 = vmul.f32 %v115, %v1335
    %v1413 = vmul.f32 %v116, %v1323
    %v1414 = vmul.f32 %v116, %v1327
    %v1415 = vmul.f32 %v116, %v1331
    %v1416 = vmul.f32 %v116, %v1335
    %v1417 = vmul.f32 %v117, %v1323
    %v1418 = vmul.f32 %v117, %v1327
    %v1419 = vmul.f32 %v117, %v1331
    %v1420 = vmul.f32 %v117, %v1335
    %v1421 = vmul.f32 %v118, %v1323
    %v1422 = vmul.f32 %v118, %v1327
    %v1423 = vmul.f32 %v118, %v1331
    %v1424 = vmul.f32 %v118, %v1335
    %v1425 = vmul.f32 %v119, %v1323
    %v1426 = vmul.f32 %v119, %v1327
    %v1427 = vmul.f32 %v119, %v1331
    %v1428 = vmul.f32 %v119, %v1335
    %v1429 = vmul.f32 %v120, %v1323
    %v1430 = vmul.f32 %v120, %v1327
    %v1431 = vmul.f32 %v120, %v1331
    %v1432 = vmul.f32 %v120, %v1335
    %v1433 = vmul.f32 %v121, %v1323
    %v1434 = vmul.f32 %v121, %v1327
    %v1435 = vmul.f32 %v121, %v1331
    %v1436 = vmul.f32 %v121, %v1335
    %v1437 = vmul.f32 %v122, %v1323
    %v1438 = vmul.f32 %v122, %v1327
    %v1439 = vmul.f32 %v122, %v1331
    %v1440 = vmul.f32 %v122, %v1335
    %v1441 = vmul.f32 %v468, %v1323
    %v1442 = vmul.f32 %v468, %v1327
    %v1443 = vmul.f32 %v468, %v1331
    %v1444 = vmul.f32 %v468, %v1335
    %v1445 = vmul.f32 %v746, %v1323
    %v1446 = vmul.f32 %v746, %v1327
    %v1447 = vmul.f32 %v746, %v1331
    %v1448 = vmul.f32 %v746, %v1335
    %v1449 = vmul.f32 %v1024, %v1323
    %v1450 = vmul.f32 %v1024, %v1327
    %v1451 = vmul.f32 %v1024, %v1331
    %v1452 = vmul.f32 %v1024, %v1335
    %v1453 = vmul.f32 %v1302, %v1323
    %v1454 = vmul.f32 %v1302, %v1327
    %v1455 = vmul.f32 %v1302, %v1331
    %v1456 = vmul.f32 %v1302, %v1335
    %v1457 = vadd.f32 %v1179, %v1337
    %v1458 = vadd.f32 %v1180, %v1338
    %v1459 = vadd.f32 %v1181, %v1339
    %v1460 = vadd.f32 %v1182, %v1340
    %v1461 = vadd.f32 %v1183, %v1341
    %v1462 = vadd.f32 %v1184, %v1342
    %v1463 = vadd.f32 %v1185, %v1343
    %v1464 = vadd.f32 %v1186, %v1344
    %v1465 = vadd.f32 %v1187, %v1345
    %v1466 = vadd.f32 %v1188, %v1346
    %v1467 = vadd.f32 %v1189, %v1347
    %v1468 = vadd.f32 %v1190, %v1348
    %v1469 = vadd.f32 %v1191, %v1349
    %v1470 = vadd.f32 %v1192, %v1350
    %v1471 = vadd.f32 %v1193, %v1351
    %v1472 = vadd.f32 %v1194, %v1352
    %v1473 = vadd.f32 %v1195, %v1353
    %v1474 = vadd.f32 %v1196, %v1354
    %v1475 = vadd.f32 %v1197, %v1355
    %v1476 = vadd.f32 %v1198, %v1356
    %v1477 = vadd.f32 %v1199, %v1357
    %v1478 = vadd.f32 %v1200, %v1358
    %v1479 = vadd.f32 %v1201, %v1359
    %v1480 = vadd.f32 %v1202, %v1360
    %v1481 = vadd.f32 %v1203, %v1361
    %v1482 = vadd.f32 %v1204, %v1362
    %v1483 = vadd.f32 %v1205, %v1363
    %v1484 = vadd.f32 %v1206, %v1364
    %v1485 = vadd.f32 %v1207, %v1365
    %v1486 = vadd.f32 %v1208, %v1366
    %v1487 = vadd.f32 %v1209, %v1367
    %v1488 = vadd.f32 %v1210, %v1368
    %v1489 = vadd.f32 %v1211, %v1369
    %v1490 = vadd.f32 %v1212, %v1370
    %v1491 = vadd.f32 %v1213, %v1371
    %v1492 = vadd.f32 %v1214, %v1372
    %v1493 = vadd.f32 %v1215, %v1373
    %v1494 = vadd.f32 %v1216, %v1374
    %v1495 = vadd.f32 %v1217, %v1375
    %v1496 = vadd.f32 %v1218, %v1376
    %v1497 = vadd.f32 %v1219, %v1377
    %v1498 = vadd.f32 %v1220, %v1378
    %v1499 = vadd.f32 %v1221, %v1379
    %v1500 = vadd.f32 %v1222, %v1380
    %v1501 = vadd.f32 %v1223, %v1381
    %v1502 = vadd.f32 %v1224, %v1382
    %v1503 = vadd.f32 %v1225, %v1383
    %v1504 = vadd.f32 %v1226, %v1384
    %v1505 = vadd.f32 %v1227, %v1385
    %v1506 = vadd.f32 %v1228, %v1386
    %v1507 = vadd.f32 %v1229, %v1387
    %v1508 = vadd.f32 %v1230, %v1388
    %v1509 = vadd.f32 %v1231, %v1389
    %v1510 = vadd.f32 %v1232, %v1390
    %v1511 = vadd.f32 %v1233, %v1391
    %v1512 = vadd.f32 %v1234, %v1392
    %v1513 = vadd.f32 %v1235, %v1393
    %v1514 = vadd.f32 %v1236, %v1394
    %v1515 = vadd.f32 %v1237, %v1395
    %v1516 = vadd.f32 %v1238, %v1396
    %v1517 = vadd.f32 %v1239, %v1397
    %v1518 = vadd.f32 %v1240, %v1398
    %v1519 = vadd.f32 %v1241, %v1399
    %v1520 = vadd.f32 %v1242, %v1400
    %v1521 = vadd.f32 %v1243, %v1401
    %v1522 = vadd.f32 %v1244, %v1402
    %v1523 = vadd.f32 %v1245, %v1403
    %v1524 = vadd.f32 %v1246, %v1404
    %v1525 = vadd.f32 %v1247, %v1405
    %v1526 = vadd.f32 %v1248, %v1406
    %v1527 = vadd.f32 %v1249, %v1407
    %v1528 = vadd.f32 %v1250, %v1408
    %v1529 = vadd.f32 %v1251, %v1409
    %v1530 = vadd.f32 %v1252, %v1410
    %v1531 = vadd.f32 %v1253, %v1411
    %v1532 = vadd.f32 %v1254, %v1412
    %v1533 = vadd.f32 %v1255, %v1413
    %v1534 = vadd.f32 %v1256, %v1414
    %v1535 = vadd.f32 %v1257, %v1415
    %v1536 = vadd.f32 %v1258, %v1416
    %v1537 = vadd.f32 %v1259, %v1417
    %v1538 = vadd.f32 %v1260, %v1418
    %v1539 = vadd.f32 %v1261, %v1419
    %v1540 = vadd.f32 %v1262, %v1420
    %v1541 = vadd.f32 %v1263, %v1421
    %v1542 = vadd.f32 %v1264, %v1422
    %v1543 = vadd.f32 %v1265, %v1423
    %v1544 = vadd.f32 %v1266, %v1424
    %v1545 = vadd.f32 %v1267, %v1425
    %v1546 = vadd.f32 %v1268, %v1426
    %v1547 = vadd.f32 %v1269, %v1427
    %v1548 = vadd.f32 %v1270, %v1428
    %v1549 = vadd.f32 %v1271, %v1429
    %v1550 = vadd.f32 %v1272, %v1430
    %v1551 = vadd.f32 %v1273, %v1431
    %v1552 = vadd.f32 %v1274, %v1432
    %v1553 = vadd.f32 %v1275, %v1433
    %v1554 = vadd.f32 %v1276, %v1434
    %v1555 = vadd.f32 %v1277, %v1435
    %v1556 = vadd.f32 %v1278, %v1436
    %v1557 = vadd.f32 %v1279, %v1437
    %v1558 = vadd.f32 %v1280, %v1438
    %v1559 = vadd.f32 %v1281, %v1439
    %v1560 = vadd.f32 %v1282, %v1440
    %v1561 = vadd.f32 %v1283, %v1441
    %v1562 = vadd.f32 %v1284, %v1442
    %v1563 = vadd.f32 %v1285, %v1443
    %v1564 = vadd.f32 %v1286, %v1444
    %v1565 = vadd.f32 %v1287, %v1445
    %v1566 = vadd.f32 %v1288, %v1446
    %v1567 = vadd.f32 %v1289, %v1447
    %v1568 = vadd.f32 %v1290, %v1448
    %v1569 = vadd.f32 %v1291, %v1449
    %v1570 = vadd.f32 %v1292, %v1450
    %v1571 = vadd.f32 %v1293, %v1451
    %v1572 = vadd.f32 %v1294, %v1452
    %v1573 = vadd.f32 %v1295, %v1453
    %v1574 = vadd.f32 %v1296, %v1454
    %v1575 = vadd.f32 %v1297, %v1455
    %v1576 = vadd.f32 %v1298, %v1456
    %v1579 = vperm.slane %v34, 0
    %v1580 = vperm.slane %v54, 0
    %1583 = vset.pattern.permute.xlu0 8
    %1584 = vperm.xlu0 %1583, %v55
    %v1585 = vpop.permute.xlu0 %1584
    %1587 = vset.pattern.permute.xlu0 8
    %1588 = vperm.xlu0 %1587, %v56
    %v1589 = vpop.permute.xlu0 %1588
    %1591 = vset.pattern.permute.xlu0 8
    %1592 = vperm.xlu0 %1591, %v57
    %v1593 = vpop.permute.xlu0 %1592
    %1595 = vset.pattern.permute.xlu0 8
    %1596 = vperm.xlu0 %1595, %v58
    %v1597 = vpop.permute.xlu0 %1596
    %1599 = vset.pattern.permute.xlu0 8
    %1600 = vperm.xlu0 %1599, %v59
    %v1601 = vpop.permute.xlu0 %1600
    %1603 = vset.pattern.permute.xlu0 8
    %1604 = vperm.xlu0 %1603, %v60
    %v1605 = vpop.permute.xlu0 %1604
    %1607 = vset.pattern.permute.xlu0 8
    %1608 = vperm.xlu0 %1607, %v61
    %v1609 = vpop.permute.xlu0 %1608
    %1611 = vset.pattern.permute.xlu0 8
    %1612 = vperm.xlu0 %1611, %v62
    %v1613 = vpop.permute.xlu0 %1612
    %v1615 = vmul.f32 %v98, %v1585
    %v1616 = vmul.f32 %v98, %v1589
    %v1617 = vmul.f32 %v98, %v1593
    %v1618 = vmul.f32 %v98, %v1597
    %v1619 = vmul.f32 %v99, %v1585
    %v1620 = vmul.f32 %v99, %v1589
    %v1621 = vmul.f32 %v99, %v1593
    %v1622 = vmul.f32 %v99, %v1597
    %v1623 = vmul.f32 %v100, %v1585
    %v1624 = vmul.f32 %v100, %v1589
    %v1625 = vmul.f32 %v100, %v1593
    %v1626 = vmul.f32 %v100, %v1597
    %v1627 = vmul.f32 %v101, %v1585
    %v1628 = vmul.f32 %v101, %v1589
    %v1629 = vmul.f32 %v101, %v1593
    %v1630 = vmul.f32 %v101, %v1597
    %v1631 = vmul.f32 %v102, %v1585
    %v1632 = vmul.f32 %v102, %v1589
    %v1633 = vmul.f32 %v102, %v1593
    %v1634 = vmul.f32 %v102, %v1597
    %v1635 = vmul.f32 %v103, %v1585
    %v1636 = vmul.f32 %v103, %v1589
    %v1637 = vmul.f32 %v103, %v1593
    %v1638 = vmul.f32 %v103, %v1597
    %v1639 = vmul.f32 %v104, %v1585
    %v1640 = vmul.f32 %v104, %v1589
    %v1641 = vmul.f32 %v104, %v1593
    %v1642 = vmul.f32 %v104, %v1597
    %v1643 = vmul.f32 %v105, %v1585
    %v1644 = vmul.f32 %v105, %v1589
    %v1645 = vmul.f32 %v105, %v1593
    %v1646 = vmul.f32 %v105, %v1597
    %v1647 = vmul.f32 %v106, %v1585
    %v1648 = vmul.f32 %v106, %v1589
    %v1649 = vmul.f32 %v106, %v1593
    %v1650 = vmul.f32 %v106, %v1597
    %v1651 = vmul.f32 %v107, %v1585
    %v1652 = vmul.f32 %v107, %v1589
    %v1653 = vmul.f32 %v107, %v1593
    %v1654 = vmul.f32 %v107, %v1597
    %v1655 = vmul.f32 %v467, %v1585
    %v1656 = vmul.f32 %v467, %v1589
    %v1657 = vmul.f32 %v467, %v1593
    %v1658 = vmul.f32 %v467, %v1597
    %v1659 = vmul.f32 %v745, %v1585
    %v1660 = vmul.f32 %v745, %v1589
    %v1661 = vmul.f32 %v745, %v1593
    %v1662 = vmul.f32 %v745, %v1597
    %v1663 = vmul.f32 %v1023, %v1585
    %v1664 = vmul.f32 %v1023, %v1589
    %v1665 = vmul.f32 %v1023, %v1593
    %v1666 = vmul.f32 %v1023, %v1597
    %v1667 = vmul.f32 %v1301, %v1585
    %v1668 = vmul.f32 %v1301, %v1589
    %v1669 = vmul.f32 %v1301, %v1593
    %v1670 = vmul.f32 %v1301, %v1597
    %v1671 = vmul.f32 %v1579, %v1585
    %v1672 = vmul.f32 %v1579, %v1589
    %v1673 = vmul.f32 %v1579, %v1593
    %v1674 = vmul.f32 %v1579, %v1597
    %v1675 = vmul.f32 %v113, %v1601
    %v1676 = vmul.f32 %v113, %v1605
    %v1677 = vmul.f32 %v113, %v1609
    %v1678 = vmul.f32 %v113, %v1613
    %v1679 = vmul.f32 %v114, %v1601
    %v1680 = vmul.f32 %v114, %v1605
    %v1681 = vmul.f32 %v114, %v1609
    %v1682 = vmul.f32 %v114, %v1613
    %v1683 = vmul.f32 %v115, %v1601
    %v1684 = vmul.f32 %v115, %v1605
    %v1685 = vmul.f32 %v115, %v1609
    %v1686 = vmul.f32 %v115, %v1613
    %v1687 = vmul.f32 %v116, %v1601
    %v1688 = vmul.f32 %v116, %v1605
    %v1689 = vmul.f32 %v116, %v1609
    %v1690 = vmul.f32 %v116, %v1613
    %v1691 = vmul.f32 %v117, %v1601
    %v1692 = vmul.f32 %v117, %v1605
    %v1693 = vmul.f32 %v117, %v1609
    %v1694 = vmul.f32 %v117, %v1613
    %v1695 = vmul.f32 %v118, %v1601
    %v1696 = vmul.f32 %v118, %v1605
    %v1697 = vmul.f32 %v118, %v1609
    %v1698 = vmul.f32 %v118, %v1613
    %v1699 = vmul.f32 %v119, %v1601
    %v1700 = vmul.f32 %v119, %v1605
    %v1701 = vmul.f32 %v119, %v1609
    %v1702 = vmul.f32 %v119, %v1613
    %v1703 = vmul.f32 %v120, %v1601
    %v1704 = vmul.f32 %v120, %v1605
    %v1705 = vmul.f32 %v120, %v1609
    %v1706 = vmul.f32 %v120, %v1613
    %v1707 = vmul.f32 %v121, %v1601
    %v1708 = vmul.f32 %v121, %v1605
    %v1709 = vmul.f32 %v121, %v1609
    %v1710 = vmul.f32 %v121, %v1613
    %v1711 = vmul.f32 %v122, %v1601
    %v1712 = vmul.f32 %v122, %v1605
    %v1713 = vmul.f32 %v122, %v1609
    %v1714 = vmul.f32 %v122, %v1613
    %v1715 = vmul.f32 %v468, %v1601
    %v1716 = vmul.f32 %v468, %v1605
    %v1717 = vmul.f32 %v468, %v1609
    %v1718 = vmul.f32 %v468, %v1613
    %v1719 = vmul.f32 %v746, %v1601
    %v1720 = vmul.f32 %v746, %v1605
    %v1721 = vmul.f32 %v746, %v1609
    %v1722 = vmul.f32 %v746, %v1613
    %v1723 = vmul.f32 %v1024, %v1601
    %v1724 = vmul.f32 %v1024, %v1605
    %v1725 = vmul.f32 %v1024, %v1609
    %v1726 = vmul.f32 %v1024, %v1613
    %v1727 = vmul.f32 %v1302, %v1601
    %v1728 = vmul.f32 %v1302, %v1605
    %v1729 = vmul.f32 %v1302, %v1609
    %v1730 = vmul.f32 %v1302, %v1613
    %v1731 = vmul.f32 %v1580, %v1601
    %v1732 = vmul.f32 %v1580, %v1605
    %v1733 = vmul.f32 %v1580, %v1609
    %v1734 = vmul.f32 %v1580, %v1613
    %v1735 = vadd.f32 %v1457, %v1615
    %v1736 = vadd.f32 %v1458, %v1616
    %v1737 = vadd.f32 %v1459, %v1617
    %v1738 = vadd.f32 %v1460, %v1618
    %v1739 = vadd.f32 %v1461, %v1619
    %v1740 = vadd.f32 %v1462, %v1620
    %v1741 = vadd.f32 %v1463, %v1621
    %v1742 = vadd.f32 %v1464, %v1622
    %v1743 = vadd.f32 %v1465, %v1623
    %v1744 = vadd.f32 %v1466, %v1624
    %v1745 = vadd.f32 %v1467, %v1625
    %v1746 = vadd.f32 %v1468, %v1626
    %v1747 = vadd.f32 %v1469, %v1627
    %v1748 = vadd.f32 %v1470, %v1628
    %v1749 = vadd.f32 %v1471, %v1629
    %v1750 = vadd.f32 %v1472, %v1630
    %v1751 = vadd.f32 %v1473, %v1631
    %v1752 = vadd.f32 %v1474, %v1632
    %v1753 = vadd.f32 %v1475, %v1633
    %v1754 = vadd.f32 %v1476, %v1634
    %v1755 = vadd.f32 %v1477, %v1635
    %v1756 = vadd.f32 %v1478, %v1636
    %v1757 = vadd.f32 %v1479, %v1637
    %v1758 = vadd.f32 %v1480, %v1638
    %v1759 = vadd.f32 %v1481, %v1639
    %v1760 = vadd.f32 %v1482, %v1640
    %v1761 = vadd.f32 %v1483, %v1641
    %v1762 = vadd.f32 %v1484, %v1642
    %v1763 = vadd.f32 %v1485, %v1643
    %v1764 = vadd.f32 %v1486, %v1644
    %v1765 = vadd.f32 %v1487, %v1645
    %v1766 = vadd.f32 %v1488, %v1646
    %v1767 = vadd.f32 %v1489, %v1647
    %v1768 = vadd.f32 %v1490, %v1648
    %v1769 = vadd.f32 %v1491, %v1649
    %v1770 = vadd.f32 %v1492, %v1650
    %v1771 = vadd.f32 %v1493, %v1651
    %v1772 = vadd.f32 %v1494, %v1652
    %v1773 = vadd.f32 %v1495, %v1653
    %v1774 = vadd.f32 %v1496, %v1654
    %v1775 = vadd.f32 %v1497, %v1655
    %v1776 = vadd.f32 %v1498, %v1656
    %v1777 = vadd.f32 %v1499, %v1657
    %v1778 = vadd.f32 %v1500, %v1658
    %v1779 = vadd.f32 %v1501, %v1659
    %v1780 = vadd.f32 %v1502, %v1660
    %v1781 = vadd.f32 %v1503, %v1661
    %v1782 = vadd.f32 %v1504, %v1662
    %v1783 = vadd.f32 %v1505, %v1663
    %v1784 = vadd.f32 %v1506, %v1664
    %v1785 = vadd.f32 %v1507, %v1665
    %v1786 = vadd.f32 %v1508, %v1666
    %v1787 = vadd.f32 %v1509, %v1667
    %v1788 = vadd.f32 %v1510, %v1668
    %v1789 = vadd.f32 %v1511, %v1669
    %v1790 = vadd.f32 %v1512, %v1670
    %v1791 = vadd.f32 %v1513, %v1671
    %v1792 = vadd.f32 %v1514, %v1672
    %v1793 = vadd.f32 %v1515, %v1673
    %v1794 = vadd.f32 %v1516, %v1674
    %v1795 = vadd.f32 %v1517, %v1675
    %v1796 = vadd.f32 %v1518, %v1676
    %v1797 = vadd.f32 %v1519, %v1677
    %v1798 = vadd.f32 %v1520, %v1678
    %v1799 = vadd.f32 %v1521, %v1679
    %v1800 = vadd.f32 %v1522, %v1680
    %v1801 = vadd.f32 %v1523, %v1681
    %v1802 = vadd.f32 %v1524, %v1682
    %v1803 = vadd.f32 %v1525, %v1683
    %v1804 = vadd.f32 %v1526, %v1684
    %v1805 = vadd.f32 %v1527, %v1685
    %v1806 = vadd.f32 %v1528, %v1686
    %v1807 = vadd.f32 %v1529, %v1687
    %v1808 = vadd.f32 %v1530, %v1688
    %v1809 = vadd.f32 %v1531, %v1689
    %v1810 = vadd.f32 %v1532, %v1690
    %v1811 = vadd.f32 %v1533, %v1691
    %v1812 = vadd.f32 %v1534, %v1692
    %v1813 = vadd.f32 %v1535, %v1693
    %v1814 = vadd.f32 %v1536, %v1694
    %v1815 = vadd.f32 %v1537, %v1695
    %v1816 = vadd.f32 %v1538, %v1696
    %v1817 = vadd.f32 %v1539, %v1697
    %v1818 = vadd.f32 %v1540, %v1698
    %v1819 = vadd.f32 %v1541, %v1699
    %v1820 = vadd.f32 %v1542, %v1700
    %v1821 = vadd.f32 %v1543, %v1701
    %v1822 = vadd.f32 %v1544, %v1702
    %v1823 = vadd.f32 %v1545, %v1703
    %v1824 = vadd.f32 %v1546, %v1704
    %v1825 = vadd.f32 %v1547, %v1705
    %v1826 = vadd.f32 %v1548, %v1706
    %v1827 = vadd.f32 %v1549, %v1707
    %v1828 = vadd.f32 %v1550, %v1708
    %v1829 = vadd.f32 %v1551, %v1709
    %v1830 = vadd.f32 %v1552, %v1710
    %v1831 = vadd.f32 %v1553, %v1711
    %v1832 = vadd.f32 %v1554, %v1712
    %v1833 = vadd.f32 %v1555, %v1713
    %v1834 = vadd.f32 %v1556, %v1714
    %v1835 = vadd.f32 %v1557, %v1715
    %v1836 = vadd.f32 %v1558, %v1716
    %v1837 = vadd.f32 %v1559, %v1717
    %v1838 = vadd.f32 %v1560, %v1718
    %v1839 = vadd.f32 %v1561, %v1719
    %v1840 = vadd.f32 %v1562, %v1720
    %v1841 = vadd.f32 %v1563, %v1721
    %v1842 = vadd.f32 %v1564, %v1722
    %v1843 = vadd.f32 %v1565, %v1723
    %v1844 = vadd.f32 %v1566, %v1724
    %v1845 = vadd.f32 %v1567, %v1725
    %v1846 = vadd.f32 %v1568, %v1726
    %v1847 = vadd.f32 %v1569, %v1727
    %v1848 = vadd.f32 %v1570, %v1728
    %v1849 = vadd.f32 %v1571, %v1729
    %v1850 = vadd.f32 %v1572, %v1730
    %v1851 = vadd.f32 %v1573, %v1731
    %v1852 = vadd.f32 %v1574, %v1732
    %v1853 = vadd.f32 %v1575, %v1733
    %v1854 = vadd.f32 %v1576, %v1734
    %v1855 = vmax.f32 %v1735, 0.0
    %v1856 = vmax.f32 %v1736, 0.0
    %v1857 = vmax.f32 %v1737, 0.0
    %v1858 = vmax.f32 %v1738, 0.0
    %v1859 = vmax.f32 %v1739, 0.0
    %v1860 = vmax.f32 %v1740, 0.0
    %v1861 = vmax.f32 %v1741, 0.0
    %v1862 = vmax.f32 %v1742, 0.0
    %v1863 = vmax.f32 %v1743, 0.0
    %v1864 = vmax.f32 %v1744, 0.0
    %v1865 = vmax.f32 %v1745, 0.0
    %v1866 = vmax.f32 %v1746, 0.0
    %v1867 = vmax.f32 %v1747, 0.0
    %v1868 = vmax.f32 %v1748, 0.0
    %v1869 = vmax.f32 %v1749, 0.0
    %v1870 = vmax.f32 %v1750, 0.0
    %v1871 = vmax.f32 %v1751, 0.0
    %v1872 = vmax.f32 %v1752, 0.0
    %v1873 = vmax.f32 %v1753, 0.0
    %v1874 = vmax.f32 %v1754, 0.0
    %v1875 = vmax.f32 %v1755, 0.0
    %v1876 = vmax.f32 %v1756, 0.0
    %v1877 = vmax.f32 %v1757, 0.0
    %v1878 = vmax.f32 %v1758, 0.0
    %v1879 = vmax.f32 %v1759, 0.0
    %v1880 = vmax.f32 %v1760, 0.0
    %v1881 = vmax.f32 %v1761, 0.0
    %v1882 = vmax.f32 %v1762, 0.0
    %v1883 = vmax.f32 %v1763, 0.0
    %v1884 = vmax.f32 %v1764, 0.0
    %v1885 = vmax.f32 %v1765, 0.0
    %v1886 = vmax.f32 %v1766, 0.0
    %v1887 = vmax.f32 %v1767, 0.0
    %v1888 = vmax.f32 %v1768, 0.0
    %v1889 = vmax.f32 %v1769, 0.0
    %v1890 = vmax.f32 %v1770, 0.0
    %v1891 = vmax.f32 %v1771, 0.0
    %v1892 = vmax.f32 %v1772, 0.0
    %v1893 = vmax.f32 %v1773, 0.0
    %v1894 = vmax.f32 %v1774, 0.0
    %v1895 = vmax.f32 %v1775, 0.0
    %v1896 = vmax.f32 %v1776, 0.0
    %v1897 = vmax.f32 %v1777, 0.0
    %v1898 = vmax.f32 %v1778, 0.0
    %v1899 = vmax.f32 %v1779, 0.0
    %v1900 = vmax.f32 %v1780, 0.0
    %v1901 = vmax.f32 %v1781, 0.0
    %v1902 = vmax.f32 %v1782, 0.0
    %v1903 = vmax.f32 %v1783, 0.0
    %v1904 = vmax.f32 %v1784, 0.0
    %v1905 = vmax.f32 %v1785, 0.0
    %v1906 = vmax.f32 %v1786, 0.0
    %v1907 = vmax.f32 %v1787, 0.0
    %v1908 = vmax.f32 %v1788, 0.0
    %v1909 = vmax.f32 %v1789, 0.0
    %v1910 = vmax.f32 %v1790, 0.0
    %v1911 = vmax.f32 %v1791, 0.0
    %v1912 = vmax.f32 %v1792, 0.0
    %v1913 = vmax.f32 %v1793, 0.0
    %v1914 = vmax.f32 %v1794, 0.0
    %v1915 = vmax.f32 %v1795, 0.0
    %v1916 = vmax.f32 %v1796, 0.0
    %v1917 = vmax.f32 %v1797, 0.0
    %v1918 = vmax.f32 %v1798, 0.0
    %v1919 = vmax.f32 %v1799, 0.0
    %v1920 = vmax.f32 %v1800, 0.0
    %v1921 = vmax.f32 %v1801, 0.0
    %v1922 = vmax.f32 %v1802, 0.0
    %v1923 = vmax.f32 %v1803, 0.0
    %v1924 = vmax.f32 %v1804, 0.0
    %v1925 = vmax.f32 %v1805, 0.0
    %v1926 = vmax.f32 %v1806, 0.0
    %v1927 = vmax.f32 %v1807, 0.0
    %v1928 = vmax.f32 %v1808, 0.0
    %v1929 = vmax.f32 %v1809, 0.0
    %v1930 = vmax.f32 %v1810, 0.0
    %v1931 = vmax.f32 %v1811, 0.0
    %v1932 = vmax.f32 %v1812, 0.0
    %v1933 = vmax.f32 %v1813, 0.0
    %v1934 = vmax.f32 %v1814, 0.0
    %v1935 = vmax.f32 %v1815, 0.0
    %v1936 = vmax.f32 %v1816, 0.0
    %v1937 = vmax.f32 %v1817, 0.0
    %v1938 = vmax.f32 %v1818, 0.0
    %v1939 = vmax.f32 %v1819, 0.0
    %v1940 = vmax.f32 %v1820, 0.0
    %v1941 = vmax.f32 %v1821, 0.0
    %v1942 = vmax.f32 %v1822, 0.0
    %v1943 = vmax.f32 %v1823, 0.0
    %v1944 = vmax.f32 %v1824, 0.0
    %v1945 = vmax.f32 %v1825, 0.0
    %v1946 = vmax.f32 %v1826, 0.0
    %v1947 = vmax.f32 %v1827, 0.0
    %v1948 = vmax.f32 %v1828, 0.0
    %v1949 = vmax.f32 %v1829, 0.0
    %v1950 = vmax.f32 %v1830, 0.0
    %v1951 = vmax.f32 %v1831, 0.0
    %v1952 = vmax.f32 %v1832, 0.0
    %v1953 = vmax.f32 %v1833, 0.0
    %v1954 = vmax.f32 %v1834, 0.0
    %v1955 = vmax.f32 %v1835, 0.0
    %v1956 = vmax.f32 %v1836, 0.0
    %v1957 = vmax.f32 %v1837, 0.0
    %v1958 = vmax.f32 %v1838, 0.0
    %v1959 = vmax.f32 %v1839, 0.0
    %v1960 = vmax.f32 %v1840, 0.0
    %v1961 = vmax.f32 %v1841, 0.0
    %v1962 = vmax.f32 %v1842, 0.0
    %v1963 = vmax.f32 %v1843, 0.0
    %v1964 = vmax.f32 %v1844, 0.0
    %v1965 = vmax.f32 %v1845, 0.0
    %v1966 = vmax.f32 %v1846, 0.0
    %v1967 = vmax.f32 %v1847, 0.0
    %v1968 = vmax.f32 %v1848, 0.0
    %v1969 = vmax.f32 %v1849, 0.0
    %v1970 = vmax.f32 %v1850, 0.0
    %v1971 = vmax.f32 %v1851, 0.0
    %v1972 = vmax.f32 %v1852, 0.0
    %v1973 = vmax.f32 %v1853, 0.0
    %v1974 = vmax.f32 %v1854, 0.0
    %vm1975 = vcmask 31744
    %v1976 = vsel %vm1975, %v1855, 0.0
    %v1977 = vsel %vm1975, %v1859, 0.0
    %v1978 = vadd.f32 %v1976, %v1977
    %v1979 = vsel %vm1975, %v1863, 0.0
    %v1980 = vadd.f32 %v1978, %v1979
    %v1981 = vsel %vm1975, %v1867, 0.0
    %v1982 = vadd.f32 %v1980, %v1981
    %v1983 = vsel %vm1975, %v1871, 0.0
    %v1984 = vadd.f32 %v1982, %v1983
    %v1985 = vsel %vm1975, %v1875, 0.0
    %v1986 = vadd.f32 %v1984, %v1985
    %v1987 = vsel %vm1975, %v1879, 0.0
    %v1988 = vadd.f32 %v1986, %v1987
    %v1989 = vsel %vm1975, %v1883, 0.0
    %v1990 = vadd.f32 %v1988, %v1989
    %v1991 = vsel %vm1975, %v1887, 0.0
    %v1992 = vadd.f32 %v1990, %v1991
    %v1993 = vsel %vm1975, %v1891, 0.0
    %v1994 = vadd.f32 %v1992, %v1993
    %v1995 = vsel %vm1975, %v1895, 0.0
    %v1996 = vadd.f32 %v1994, %v1995
    %v1997 = vsel %vm1975, %v1899, 0.0
    %v1998 = vadd.f32 %v1996, %v1997
    %v1999 = vsel %vm1975, %v1903, 0.0
    %v2000 = vadd.f32 %v1998, %v1999
    %v2001 = vsel %vm1975, %v1907, 0.0
    %v2002 = vadd.f32 %v2000, %v2001
    %v2003 = vsel %vm1975, %v1911, 0.0
    %v2004 = vadd.f32 %v2002, %v2003
    %v2005 = vsel %vm1975, %v1856, 0.0
    %v2006 = vsel %vm1975, %v1860, 0.0
    %v2007 = vadd.f32 %v2005, %v2006
    %v2008 = vsel %vm1975, %v1864, 0.0
    %v2009 = vadd.f32 %v2007, %v2008
    %v2010 = vsel %vm1975, %v1868, 0.0
    %v2011 = vadd.f32 %v2009, %v2010
    %v2012 = vsel %vm1975, %v1872, 0.0
    %v2013 = vadd.f32 %v2011, %v2012
    %v2014 = vsel %vm1975, %v1876, 0.0
    %v2015 = vadd.f32 %v2013, %v2014
    %v2016 = vsel %vm1975, %v1880, 0.0
    %v2017 = vadd.f32 %v2015, %v2016
    %v2018 = vsel %vm1975, %v1884, 0.0
    %v2019 = vadd.f32 %v2017, %v2018
    %v2020 = vsel %vm1975, %v1888, 0.0
    %v2021 = vadd.f32 %v2019, %v2020
    %v2022 = vsel %vm1975, %v1892, 0.0
    %v2023 = vadd.f32 %v2021, %v2022
    %v2024 = vsel %vm1975, %v1896, 0.0
    %v2025 = vadd.f32 %v2023, %v2024
    %v2026 = vsel %vm1975, %v1900, 0.0
    %v2027 = vadd.f32 %v2025, %v2026
    %v2028 = vsel %vm1975, %v1904, 0.0
    %v2029 = vadd.f32 %v2027, %v2028
    %v2030 = vsel %vm1975, %v1908, 0.0
    %v2031 = vadd.f32 %v2029, %v2030
    %v2032 = vsel %vm1975, %v1912, 0.0
    %v2033 = vadd.f32 %v2031, %v2032
    %v2034 = vsel %vm1975, %v1857, 0.0
    %v2035 = vsel %vm1975, %v1861, 0.0
    %v2036 = vadd.f32 %v2034, %v2035
    %v2037 = vsel %vm1975, %v1865, 0.0
    %v2038 = vadd.f32 %v2036, %v2037
    %v2039 = vsel %vm1975, %v1869, 0.0
    %v2040 = vadd.f32 %v2038, %v2039
    %v2041 = vsel %vm1975, %v1873, 0.0
    %v2042 = vadd.f32 %v2040, %v2041
    %v2043 = vsel %vm1975, %v1877, 0.0
    %v2044 = vadd.f32 %v2042, %v2043
    %v2045 = vsel %vm1975, %v1881, 0.0
    %v2046 = vadd.f32 %v2044, %v2045
    %v2047 = vsel %vm1975, %v1885, 0.0
    %v2048 = vadd.f32 %v2046, %v2047
    %v2049 = vsel %vm1975, %v1889, 0.0
    %v2050 = vadd.f32 %v2048, %v2049
    %v2051 = vsel %vm1975, %v1893, 0.0
    %v2052 = vadd.f32 %v2050, %v2051
    %v2053 = vsel %vm1975, %v1897, 0.0
    %v2054 = vadd.f32 %v2052, %v2053
    %v2055 = vsel %vm1975, %v1901, 0.0
    %v2056 = vadd.f32 %v2054, %v2055
    %v2057 = vsel %vm1975, %v1905, 0.0
    %v2058 = vadd.f32 %v2056, %v2057
    %v2059 = vsel %vm1975, %v1909, 0.0
    %v2060 = vadd.f32 %v2058, %v2059
    %v2061 = vsel %vm1975, %v1913, 0.0
    %v2062 = vadd.f32 %v2060, %v2061
    %v2063 = vsel %vm1975, %v1858, 0.0
    %v2064 = vsel %vm1975, %v1862, 0.0
    %v2065 = vadd.f32 %v2063, %v2064
    %v2066 = vsel %vm1975, %v1866, 0.0
    %v2067 = vadd.f32 %v2065, %v2066
    %v2068 = vsel %vm1975, %v1870, 0.0
    %v2069 = vadd.f32 %v2067, %v2068
    %v2070 = vsel %vm1975, %v1874, 0.0
    %v2071 = vadd.f32 %v2069, %v2070
    %v2072 = vsel %vm1975, %v1878, 0.0
    %v2073 = vadd.f32 %v2071, %v2072
    %v2074 = vsel %vm1975, %v1882, 0.0
    %v2075 = vadd.f32 %v2073, %v2074
    %v2076 = vsel %vm1975, %v1886, 0.0
    %v2077 = vadd.f32 %v2075, %v2076
    %v2078 = vsel %vm1975, %v1890, 0.0
    %v2079 = vadd.f32 %v2077, %v2078
    %v2080 = vsel %vm1975, %v1894, 0.0
    %v2081 = vadd.f32 %v2079, %v2080
    %v2082 = vsel %vm1975, %v1898, 0.0
    %v2083 = vadd.f32 %v2081, %v2082
    %v2084 = vsel %vm1975, %v1902, 0.0
    %v2085 = vadd.f32 %v2083, %v2084
    %v2086 = vsel %vm1975, %v1906, 0.0
    %v2087 = vadd.f32 %v2085, %v2086
    %v2088 = vsel %vm1975, %v1910, 0.0
    %v2089 = vadd.f32 %v2087, %v2088
    %v2090 = vsel %vm1975, %v1914, 0.0
    %v2091 = vadd.f32 %v2089, %v2090
    %v2092 = vsel %vm1975, %v1915, 0.0
    %v2093 = vsel %vm1975, %v1919, 0.0
    %v2094 = vadd.f32 %v2092, %v2093
    %v2095 = vsel %vm1975, %v1923, 0.0
    %v2096 = vadd.f32 %v2094, %v2095
    %v2097 = vsel %vm1975, %v1927, 0.0
    %v2098 = vadd.f32 %v2096, %v2097
    %v2099 = vsel %vm1975, %v1931, 0.0
    %v2100 = vadd.f32 %v2098, %v2099
    %v2101 = vsel %vm1975, %v1935, 0.0
    %v2102 = vadd.f32 %v2100, %v2101
    %v2103 = vsel %vm1975, %v1939, 0.0
    %v2104 = vadd.f32 %v2102, %v2103
    %v2105 = vsel %vm1975, %v1943, 0.0
    %v2106 = vadd.f32 %v2104, %v2105
    %v2107 = vsel %vm1975, %v1947, 0.0
    %v2108 = vadd.f32 %v2106, %v2107
    %v2109 = vsel %vm1975, %v1951, 0.0
    %v2110 = vadd.f32 %v2108, %v2109
    %v2111 = vsel %vm1975, %v1955, 0.0
    %v2112 = vadd.f32 %v2110, %v2111
    %v2113 = vsel %vm1975, %v1959, 0.0
    %v2114 = vadd.f32 %v2112, %v2113
    %v2115 = vsel %vm1975, %v1963, 0.0
    %v2116 = vadd.f32 %v2114, %v2115
    %v2117 = vsel %vm1975, %v1967, 0.0
    %v2118 = vadd.f32 %v2116, %v2117
    %v2119 = vsel %vm1975, %v1971, 0.0
    %v2120 = vadd.f32 %v2118, %v2119
    %v2121 = vsel %vm1975, %v1916, 0.0
    %v2122 = vsel %vm1975, %v1920, 0.0
    %v2123 = vadd.f32 %v2121, %v2122
    %v2124 = vsel %vm1975, %v1924, 0.0
    %v2125 = vadd.f32 %v2123, %v2124
    %v2126 = vsel %vm1975, %v1928, 0.0
    %v2127 = vadd.f32 %v2125, %v2126
    %v2128 = vsel %vm1975, %v1932, 0.0
    %v2129 = vadd.f32 %v2127, %v2128
    %v2130 = vsel %vm1975, %v1936, 0.0
    %v2131 = vadd.f32 %v2129, %v2130
    %v2132 = vsel %vm1975, %v1940, 0.0
    %v2133 = vadd.f32 %v2131, %v2132
    %v2134 = vsel %vm1975, %v1944, 0.0
    %v2135 = vadd.f32 %v2133, %v2134
    %v2136 = vsel %vm1975, %v1948, 0.0
    %v2137 = vadd.f32 %v2135, %v2136
    %v2138 = vsel %vm1975, %v1952, 0.0
    %v2139 = vadd.f32 %v2137, %v2138
    %v2140 = vsel %vm1975, %v1956, 0.0
    %v2141 = vadd.f32 %v2139, %v2140
    %v2142 = vsel %vm1975, %v1960, 0.0
    %v2143 = vadd.f32 %v2141, %v2142
    %v2144 = vsel %vm1975, %v1964, 0.0
    %v2145 = vadd.f32 %v2143, %v2144
    %v2146 = vsel %vm1975, %v1968, 0.0
    %v2147 = vadd.f32 %v2145, %v2146
    %v2148 = vsel %vm1975, %v1972, 0.0
    %v2149 = vadd.f32 %v2147, %v2148
    %v2150 = vsel %vm1975, %v1917, 0.0
    %v2151 = vsel %vm1975, %v1921, 0.0
    %v2152 = vadd.f32 %v2150, %v2151
    %v2153 = vsel %vm1975, %v1925, 0.0
    %v2154 = vadd.f32 %v2152, %v2153
    %v2155 = vsel %vm1975, %v1929, 0.0
    %v2156 = vadd.f32 %v2154, %v2155
    %v2157 = vsel %vm1975, %v1933, 0.0
    %v2158 = vadd.f32 %v2156, %v2157
    %v2159 = vsel %vm1975, %v1937, 0.0
    %v2160 = vadd.f32 %v2158, %v2159
    %v2161 = vsel %vm1975, %v1941, 0.0
    %v2162 = vadd.f32 %v2160, %v2161
    %v2163 = vsel %vm1975, %v1945, 0.0
    %v2164 = vadd.f32 %v2162, %v2163
    %v2165 = vsel %vm1975, %v1949, 0.0
    %v2166 = vadd.f32 %v2164, %v2165
    %v2167 = vsel %vm1975, %v1953, 0.0
    %v2168 = vadd.f32 %v2166, %v2167
    %v2169 = vsel %vm1975, %v1957, 0.0
    %v2170 = vadd.f32 %v2168, %v2169
    %v2171 = vsel %vm1975, %v1961, 0.0
    %v2172 = vadd.f32 %v2170, %v2171
    %v2173 = vsel %vm1975, %v1965, 0.0
    %v2174 = vadd.f32 %v2172, %v2173
    %v2175 = vsel %vm1975, %v1969, 0.0
    %v2176 = vadd.f32 %v2174, %v2175
    %v2177 = vsel %vm1975, %v1973, 0.0
    %v2178 = vadd.f32 %v2176, %v2177
    %v2179 = vsel %vm1975, %v1918, 0.0
    %v2180 = vsel %vm1975, %v1922, 0.0
    %v2181 = vadd.f32 %v2179, %v2180
    %v2182 = vsel %vm1975, %v1926, 0.0
    %v2183 = vadd.f32 %v2181, %v2182
    %v2184 = vsel %vm1975, %v1930, 0.0
    %v2185 = vadd.f32 %v2183, %v2184
    %v2186 = vsel %vm1975, %v1934, 0.0
    %v2187 = vadd.f32 %v2185, %v2186
    %v2188 = vsel %vm1975, %v1938, 0.0
    %v2189 = vadd.f32 %v2187, %v2188
    %v2190 = vsel %vm1975, %v1942, 0.0
    %v2191 = vadd.f32 %v2189, %v2190
    %v2192 = vsel %vm1975, %v1946, 0.0
    %v2193 = vadd.f32 %v2191, %v2192
    %v2194 = vsel %vm1975, %v1950, 0.0
    %v2195 = vadd.f32 %v2193, %v2194
    %v2196 = vsel %vm1975, %v1954, 0.0
    %v2197 = vadd.f32 %v2195, %v2196
    %v2198 = vsel %vm1975, %v1958, 0.0
    %v2199 = vadd.f32 %v2197, %v2198
    %v2200 = vsel %vm1975, %v1962, 0.0
    %v2201 = vadd.f32 %v2199, %v2200
    %v2202 = vsel %vm1975, %v1966, 0.0
    %v2203 = vadd.f32 %v2201, %v2202
    %v2204 = vsel %vm1975, %v1970, 0.0
    %v2205 = vadd.f32 %v2203, %v2204
    %v2206 = vsel %vm1975, %v1974, 0.0
    %v2207 = vadd.f32 %v2205, %v2206
    %v2208 = vsel %vm1975, %v2004, 0.0
    %2209 = vadd.xlane.f32.xlu0 %v2208
    %v2210 = vpop.xlane.xlu0 %2209
    %v2211 = vsel %vm1975, %v2033, 0.0
    %2212 = vadd.xlane.f32.xlu0 %v2211
    %v2213 = vpop.xlane.xlu0 %2212
    %v2214 = vsel %vm1975, %v2062, 0.0
    %2215 = vadd.xlane.f32.xlu0 %v2214
    %v2216 = vpop.xlane.xlu0 %2215
    %v2217 = vsel %vm1975, %v2091, 0.0
    %2218 = vadd.xlane.f32.xlu0 %v2217
    %v2219 = vpop.xlane.xlu0 %2218
    %v2220 = vsel %vm1975, %v2120, 0.0
    %2221 = vadd.xlane.f32.xlu0 %v2220
    %v2222 = vpop.xlane.xlu0 %2221
    %v2223 = vsel %vm1975, %v2149, 0.0
    %2224 = vadd.xlane.f32.xlu0 %v2223
    %v2225 = vpop.xlane.xlu0 %2224
    %v2226 = vsel %vm1975, %v2178, 0.0
    %2227 = vadd.xlane.f32.xlu0 %v2226
    %v2228 = vpop.xlane.xlu0 %2227
    %v2229 = vsel %vm1975, %v2207, 0.0
    %2230 = vadd.xlane.f32.xlu0 %v2229
    %v2231 = vpop.xlane.xlu0 %2230
    %v2232 = vmul.f32 %v1855, %v1855
    %v2233 = vmul.f32 %v1856, %v1856
    %v2234 = vmul.f32 %v1857, %v1857
    %v2235 = vmul.f32 %v1858, %v1858
    %v2236 = vmul.f32 %v1859, %v1859
    %v2237 = vmul.f32 %v1860, %v1860
    %v2238 = vmul.f32 %v1861, %v1861
    %v2239 = vmul.f32 %v1862, %v1862
    %v2240 = vmul.f32 %v1863, %v1863
    %v2241 = vmul.f32 %v1864, %v1864
    %v2242 = vmul.f32 %v1865, %v1865
    %v2243 = vmul.f32 %v1866, %v1866
    %v2244 = vmul.f32 %v1867, %v1867
    %v2245 = vmul.f32 %v1868, %v1868
    %v2246 = vmul.f32 %v1869, %v1869
    %v2247 = vmul.f32 %v1870, %v1870
    %v2248 = vmul.f32 %v1871, %v1871
    %v2249 = vmul.f32 %v1872, %v1872
    %v2250 = vmul.f32 %v1873, %v1873
    %v2251 = vmul.f32 %v1874, %v1874
    %v2252 = vmul.f32 %v1875, %v1875
    %v2253 = vmul.f32 %v1876, %v1876
    %v2254 = vmul.f32 %v1877, %v1877
    %v2255 = vmul.f32 %v1878, %v1878
    %v2256 = vmul.f32 %v1879, %v1879
    %v2257 = vmul.f32 %v1880, %v1880
    %v2258 = vmul.f32 %v1881, %v1881
    %v2259 = vmul.f32 %v1882, %v1882
    %v2260 = vmul.f32 %v1883, %v1883
    %v2261 = vmul.f32 %v1884, %v1884
    %v2262 = vmul.f32 %v1885, %v1885
    %v2263 = vmul.f32 %v1886, %v1886
    %v2264 = vmul.f32 %v1887, %v1887
    %v2265 = vmul.f32 %v1888, %v1888
    %v2266 = vmul.f32 %v1889, %v1889
    %v2267 = vmul.f32 %v1890, %v1890
    %v2268 = vmul.f32 %v1891, %v1891
    %v2269 = vmul.f32 %v1892, %v1892
    %v2270 = vmul.f32 %v1893, %v1893
    %v2271 = vmul.f32 %v1894, %v1894
    %v2272 = vmul.f32 %v1895, %v1895
    %v2273 = vmul.f32 %v1896, %v1896
    %v2274 = vmul.f32 %v1897, %v1897
    %v2275 = vmul.f32 %v1898, %v1898
    %v2276 = vmul.f32 %v1899, %v1899
    %v2277 = vmul.f32 %v1900, %v1900
    %v2278 = vmul.f32 %v1901, %v1901
    %v2279 = vmul.f32 %v1902, %v1902
    %v2280 = vmul.f32 %v1903, %v1903
    %v2281 = vmul.f32 %v1904, %v1904
    %v2282 = vmul.f32 %v1905, %v1905
    %v2283 = vmul.f32 %v1906, %v1906
    %v2284 = vmul.f32 %v1907, %v1907
    %v2285 = vmul.f32 %v1908, %v1908
    %v2286 = vmul.f32 %v1909, %v1909
    %v2287 = vmul.f32 %v1910, %v1910
    %v2288 = vmul.f32 %v1911, %v1911
    %v2289 = vmul.f32 %v1912, %v1912
    %v2290 = vmul.f32 %v1913, %v1913
    %v2291 = vmul.f32 %v1914, %v1914
    %v2292 = vmul.f32 %v1915, %v1915
    %v2293 = vmul.f32 %v1916, %v1916
    %v2294 = vmul.f32 %v1917, %v1917
    %v2295 = vmul.f32 %v1918, %v1918
    %v2296 = vmul.f32 %v1919, %v1919
    %v2297 = vmul.f32 %v1920, %v1920
    %v2298 = vmul.f32 %v1921, %v1921
    %v2299 = vmul.f32 %v1922, %v1922
    %v2300 = vmul.f32 %v1923, %v1923
    %v2301 = vmul.f32 %v1924, %v1924
    %v2302 = vmul.f32 %v1925, %v1925
    %v2303 = vmul.f32 %v1926, %v1926
    %v2304 = vmul.f32 %v1927, %v1927
    %v2305 = vmul.f32 %v1928, %v1928
    %v2306 = vmul.f32 %v1929, %v1929
    %v2307 = vmul.f32 %v1930, %v1930
    %v2308 = vmul.f32 %v1931, %v1931
    %v2309 = vmul.f32 %v1932, %v1932
    %v2310 = vmul.f32 %v1933, %v1933
    %v2311 = vmul.f32 %v1934, %v1934
    %v2312 = vmul.f32 %v1935, %v1935
    %v2313 = vmul.f32 %v1936, %v1936
    %v2314 = vmul.f32 %v1937, %v1937
    %v2315 = vmul.f32 %v1938, %v1938
    %v2316 = vmul.f32 %v1939, %v1939
    %v2317 = vmul.f32 %v1940, %v1940
    %v2318 = vmul.f32 %v1941, %v1941
    %v2319 = vmul.f32 %v1942, %v1942
    %v2320 = vmul.f32 %v1943, %v1943
    %v2321 = vmul.f32 %v1944, %v1944
    %v2322 = vmul.f32 %v1945, %v1945
    %v2323 = vmul.f32 %v1946, %v1946
    %v2324 = vmul.f32 %v1947, %v1947
    %v2325 = vmul.f32 %v1948, %v1948
    %v2326 = vmul.f32 %v1949, %v1949
    %v2327 = vmul.f32 %v1950, %v1950
    %v2328 = vmul.f32 %v1951, %v1951
    %v2329 = vmul.f32 %v1952, %v1952
    %v2330 = vmul.f32 %v1953, %v1953
    %v2331 = vmul.f32 %v1954, %v1954
    %v2332 = vmul.f32 %v1955, %v1955
    %v2333 = vmul.f32 %v1956, %v1956
    %v2334 = vmul.f32 %v1957, %v1957
    %v2335 = vmul.f32 %v1958, %v1958
    %v2336 = vmul.f32 %v1959, %v1959
    %v2337 = vmul.f32 %v1960, %v1960
    %v2338 = vmul.f32 %v1961, %v1961
    %v2339 = vmul.f32 %v1962, %v1962
    %v2340 = vmul.f32 %v1963, %v1963
    %v2341 = vmul.f32 %v1964, %v1964
    %v2342 = vmul.f32 %v1965, %v1965
    %v2343 = vmul.f32 %v1966, %v1966
    %v2344 = vmul.f32 %v1967, %v1967
    %v2345 = vmul.f32 %v1968, %v1968
    %v2346 = vmul.f32 %v1969, %v1969
    %v2347 = vmul.f32 %v1970, %v1970
    %v2348 = vmul.f32 %v1971, %v1971
    %v2349 = vmul.f32 %v1972, %v1972
    %v2350 = vmul.f32 %v1973, %v1973
    %v2351 = vmul.f32 %v1974, %v1974
    %v2352 = vsel %vm1975, %v2232, 0.0
    %v2353 = vsel %vm1975, %v2236, 0.0
    %v2354 = vadd.f32 %v2352, %v2353
    %v2355 = vsel %vm1975, %v2240, 0.0
    %v2356 = vadd.f32 %v2354, %v2355
    %v2357 = vsel %vm1975, %v2244, 0.0
    %v2358 = vadd.f32 %v2356, %v2357
    %v2359 = vsel %vm1975, %v2248, 0.0
    %v2360 = vadd.f32 %v2358, %v2359
    %v2361 = vsel %vm1975, %v2252, 0.0
    %v2362 = vadd.f32 %v2360, %v2361
    %v2363 = vsel %vm1975, %v2256, 0.0
    %v2364 = vadd.f32 %v2362, %v2363
    %v2365 = vsel %vm1975, %v2260, 0.0
    %v2366 = vadd.f32 %v2364, %v2365
    %v2367 = vsel %vm1975, %v2264, 0.0
    %v2368 = vadd.f32 %v2366, %v2367
    %v2369 = vsel %vm1975, %v2268, 0.0
    %v2370 = vadd.f32 %v2368, %v2369
    %v2371 = vsel %vm1975, %v2272, 0.0
    %v2372 = vadd.f32 %v2370, %v2371
    %v2373 = vsel %vm1975, %v2276, 0.0
    %v2374 = vadd.f32 %v2372, %v2373
    %v2375 = vsel %vm1975, %v2280, 0.0
    %v2376 = vadd.f32 %v2374, %v2375
    %v2377 = vsel %vm1975, %v2284, 0.0
    %v2378 = vadd.f32 %v2376, %v2377
    %v2379 = vsel %vm1975, %v2288, 0.0
    %v2380 = vadd.f32 %v2378, %v2379
    %v2381 = vsel %vm1975, %v2233, 0.0
    %v2382 = vsel %vm1975, %v2237, 0.0
    %v2383 = vadd.f32 %v2381, %v2382
    %v2384 = vsel %vm1975, %v2241, 0.0
    %v2385 = vadd.f32 %v2383, %v2384
    %v2386 = vsel %vm1975, %v2245, 0.0
    %v2387 = vadd.f32 %v2385, %v2386
    %v2388 = vsel %vm1975, %v2249, 0.0
    %v2389 = vadd.f32 %v2387, %v2388
    %v2390 = vsel %vm1975, %v2253, 0.0
    %v2391 = vadd.f32 %v2389, %v2390
    %v2392 = vsel %vm1975, %v2257, 0.0
    %v2393 = vadd.f32 %v2391, %v2392
    %v2394 = vsel %vm1975, %v2261, 0.0
    %v2395 = vadd.f32 %v2393, %v2394
    %v2396 = vsel %vm1975, %v2265, 0.0
    %v2397 = vadd.f32 %v2395, %v2396
    %v2398 = vsel %vm1975, %v2269, 0.0
    %v2399 = vadd.f32 %v2397, %v2398
    %v2400 = vsel %vm1975, %v2273, 0.0
    %v2401 = vadd.f32 %v2399, %v2400
    %v2402 = vsel %vm1975, %v2277, 0.0
    %v2403 = vadd.f32 %v2401, %v2402
    %v2404 = vsel %vm1975, %v2281, 0.0
    %v2405 = vadd.f32 %v2403, %v2404
    %v2406 = vsel %vm1975, %v2285, 0.0
    %v2407 = vadd.f32 %v2405, %v2406
    %v2408 = vsel %vm1975, %v2289, 0.0
    %v2409 = vadd.f32 %v2407, %v2408
    %v2410 = vsel %vm1975, %v2234, 0.0
    %v2411 = vsel %vm1975, %v2238, 0.0
    %v2412 = vadd.f32 %v2410, %v2411
    %v2413 = vsel %vm1975, %v2242, 0.0
    %v2414 = vadd.f32 %v2412, %v2413
    %v2415 = vsel %vm1975, %v2246, 0.0
    %v2416 = vadd.f32 %v2414, %v2415
    %v2417 = vsel %vm1975, %v2250, 0.0
    %v2418 = vadd.f32 %v2416, %v2417
    %v2419 = vsel %vm1975, %v2254, 0.0
    %v2420 = vadd.f32 %v2418, %v2419
    %v2421 = vsel %vm1975, %v2258, 0.0
    %v2422 = vadd.f32 %v2420, %v2421
    %v2423 = vsel %vm1975, %v2262, 0.0
    %v2424 = vadd.f32 %v2422, %v2423
    %v2425 = vsel %vm1975, %v2266, 0.0
    %v2426 = vadd.f32 %v2424, %v2425
    %v2427 = vsel %vm1975, %v2270, 0.0
    %v2428 = vadd.f32 %v2426, %v2427
    %v2429 = vsel %vm1975, %v2274, 0.0
    %v2430 = vadd.f32 %v2428, %v2429
    %v2431 = vsel %vm1975, %v2278, 0.0
    %v2432 = vadd.f32 %v2430, %v2431
    %v2433 = vsel %vm1975, %v2282, 0.0
    %v2434 = vadd.f32 %v2432, %v2433
    %v2435 = vsel %vm1975, %v2286, 0.0
    %v2436 = vadd.f32 %v2434, %v2435
    %v2437 = vsel %vm1975, %v2290, 0.0
    %v2438 = vadd.f32 %v2436, %v2437
    %v2439 = vsel %vm1975, %v2235, 0.0
    %v2440 = vsel %vm1975, %v2239, 0.0
    %v2441 = vadd.f32 %v2439, %v2440
    %v2442 = vsel %vm1975, %v2243, 0.0
    %v2443 = vadd.f32 %v2441, %v2442
    %v2444 = vsel %vm1975, %v2247, 0.0
    %v2445 = vadd.f32 %v2443, %v2444
    %v2446 = vsel %vm1975, %v2251, 0.0
    %v2447 = vadd.f32 %v2445, %v2446
    %v2448 = vsel %vm1975, %v2255, 0.0
    %v2449 = vadd.f32 %v2447, %v2448
    %v2450 = vsel %vm1975, %v2259, 0.0
    %v2451 = vadd.f32 %v2449, %v2450
    %v2452 = vsel %vm1975, %v2263, 0.0
    %v2453 = vadd.f32 %v2451, %v2452
    %v2454 = vsel %vm1975, %v2267, 0.0
    %v2455 = vadd.f32 %v2453, %v2454
    %v2456 = vsel %vm1975, %v2271, 0.0
    %v2457 = vadd.f32 %v2455, %v2456
    %v2458 = vsel %vm1975, %v2275, 0.0
    %v2459 = vadd.f32 %v2457, %v2458
    %v2460 = vsel %vm1975, %v2279, 0.0
    %v2461 = vadd.f32 %v2459, %v2460
    %v2462 = vsel %vm1975, %v2283, 0.0
    %v2463 = vadd.f32 %v2461, %v2462
    %v2464 = vsel %vm1975, %v2287, 0.0
    %v2465 = vadd.f32 %v2463, %v2464
    %v2466 = vsel %vm1975, %v2291, 0.0
    %v2467 = vadd.f32 %v2465, %v2466
    %v2468 = vsel %vm1975, %v2292, 0.0
    %v2469 = vsel %vm1975, %v2296, 0.0
    %v2470 = vadd.f32 %v2468, %v2469
    %v2471 = vsel %vm1975, %v2300, 0.0
    %v2472 = vadd.f32 %v2470, %v2471
    %v2473 = vsel %vm1975, %v2304, 0.0
    %v2474 = vadd.f32 %v2472, %v2473
    %v2475 = vsel %vm1975, %v2308, 0.0
    %v2476 = vadd.f32 %v2474, %v2475
    %v2477 = vsel %vm1975, %v2312, 0.0
    %v2478 = vadd.f32 %v2476, %v2477
    %v2479 = vsel %vm1975, %v2316, 0.0
    %v2480 = vadd.f32 %v2478, %v2479
    %v2481 = vsel %vm1975, %v2320, 0.0
    %v2482 = vadd.f32 %v2480, %v2481
    %v2483 = vsel %vm1975, %v2324, 0.0
    %v2484 = vadd.f32 %v2482, %v2483
    %v2485 = vsel %vm1975, %v2328, 0.0
    %v2486 = vadd.f32 %v2484, %v2485
    %v2487 = vsel %vm1975, %v2332, 0.0
    %v2488 = vadd.f32 %v2486, %v2487
    %v2489 = vsel %vm1975, %v2336, 0.0
    %v2490 = vadd.f32 %v2488, %v2489
    %v2491 = vsel %vm1975, %v2340, 0.0
    %v2492 = vadd.f32 %v2490, %v2491
    %v2493 = vsel %vm1975, %v2344, 0.0
    %v2494 = vadd.f32 %v2492, %v2493
    %v2495 = vsel %vm1975, %v2348, 0.0
    %v2496 = vadd.f32 %v2494, %v2495
    %v2497 = vsel %vm1975, %v2293, 0.0
    %v2498 = vsel %vm1975, %v2297, 0.0
    %v2499 = vadd.f32 %v2497, %v2498
    %v2500 = vsel %vm1975, %v2301, 0.0
    %v2501 = vadd.f32 %v2499, %v2500
    %v2502 = vsel %vm1975, %v2305, 0.0
    %v2503 = vadd.f32 %v2501, %v2502
    %v2504 = vsel %vm1975, %v2309, 0.0
    %v2505 = vadd.f32 %v2503, %v2504
    %v2506 = vsel %vm1975, %v2313, 0.0
    %v2507 = vadd.f32 %v2505, %v2506
    %v2508 = vsel %vm1975, %v2317, 0.0
    %v2509 = vadd.f32 %v2507, %v2508
    %v2510 = vsel %vm1975, %v2321, 0.0
    %v2511 = vadd.f32 %v2509, %v2510
    %v2512 = vsel %vm1975, %v2325, 0.0
    %v2513 = vadd.f32 %v2511, %v2512
    %v2514 = vsel %vm1975, %v2329, 0.0
    %v2515 = vadd.f32 %v2513, %v2514
    %v2516 = vsel %vm1975, %v2333, 0.0
    %v2517 = vadd.f32 %v2515, %v2516
    %v2518 = vsel %vm1975, %v2337, 0.0
    %v2519 = vadd.f32 %v2517, %v2518
    %v2520 = vsel %vm1975, %v2341, 0.0
    %v2521 = vadd.f32 %v2519, %v2520
    %v2522 = vsel %vm1975, %v2345, 0.0
    %v2523 = vadd.f32 %v2521, %v2522
    %v2524 = vsel %vm1975, %v2349, 0.0
    %v2525 = vadd.f32 %v2523, %v2524
    %v2526 = vsel %vm1975, %v2294, 0.0
    %v2527 = vsel %vm1975, %v2298, 0.0
    %v2528 = vadd.f32 %v2526, %v2527
    %v2529 = vsel %vm1975, %v2302, 0.0
    %v2530 = vadd.f32 %v2528, %v2529
    %v2531 = vsel %vm1975, %v2306, 0.0
    %v2532 = vadd.f32 %v2530, %v2531
    %v2533 = vsel %vm1975, %v2310, 0.0
    %v2534 = vadd.f32 %v2532, %v2533
    %v2535 = vsel %vm1975, %v2314, 0.0
    %v2536 = vadd.f32 %v2534, %v2535
    %v2537 = vsel %vm1975, %v2318, 0.0
    %v2538 = vadd.f32 %v2536, %v2537
    %v2539 = vsel %vm1975, %v2322, 0.0
    %v2540 = vadd.f32 %v2538, %v2539
    %v2541 = vsel %vm1975, %v2326, 0.0
    %v2542 = vadd.f32 %v2540, %v2541
    %v2543 = vsel %vm1975, %v2330, 0.0
    %v2544 = vadd.f32 %v2542, %v2543
    %v2545 = vsel %vm1975, %v2334, 0.0
    %v2546 = vadd.f32 %v2544, %v2545
    %v2547 = vsel %vm1975, %v2338, 0.0
    %v2548 = vadd.f32 %v2546, %v2547
    %v2549 = vsel %vm1975, %v2342, 0.0
    %v2550 = vadd.f32 %v2548, %v2549
    %v2551 = vsel %vm1975, %v2346, 0.0
    %v2552 = vadd.f32 %v2550, %v2551
    %v2553 = vsel %vm1975, %v2350, 0.0
    %v2554 = vadd.f32 %v2552, %v2553
    %v2555 = vsel %vm1975, %v2295, 0.0
    %v2556 = vsel %vm1975, %v2299, 0.0
    %v2557 = vadd.f32 %v2555, %v2556
    %v2558 = vsel %vm1975, %v2303, 0.0
    %v2559 = vadd.f32 %v2557, %v2558
    %v2560 = vsel %vm1975, %v2307, 0.0
    %v2561 = vadd.f32 %v2559, %v2560
    %v2562 = vsel %vm1975, %v2311, 0.0
    %v2563 = vadd.f32 %v2561, %v2562
    %v2564 = vsel %vm1975, %v2315, 0.0
    %v2565 = vadd.f32 %v2563, %v2564
    %v2566 = vsel %vm1975, %v2319, 0.0
    %v2567 = vadd.f32 %v2565, %v2566
    %v2568 = vsel %vm1975, %v2323, 0.0
    %v2569 = vadd.f32 %v2567, %v2568
    %v2570 = vsel %vm1975, %v2327, 0.0
    %v2571 = vadd.f32 %v2569, %v2570
    %v2572 = vsel %vm1975, %v2331, 0.0
    %v2573 = vadd.f32 %v2571, %v2572
    %v2574 = vsel %vm1975, %v2335, 0.0
    %v2575 = vadd.f32 %v2573, %v2574
    %v2576 = vsel %vm1975, %v2339, 0.0
    %v2577 = vadd.f32 %v2575, %v2576
    %v2578 = vsel %vm1975, %v2343, 0.0
    %v2579 = vadd.f32 %v2577, %v2578
    %v2580 = vsel %vm1975, %v2347, 0.0
    %v2581 = vadd.f32 %v2579, %v2580
    %v2582 = vsel %vm1975, %v2351, 0.0
    %v2583 = vadd.f32 %v2581, %v2582
    %v2584 = vsel %vm1975, %v2380, 0.0
    %2585 = vadd.xlane.f32.xlu0 %v2584
    %v2586 = vpop.xlane.xlu0 %2585
    %v2587 = vsel %vm1975, %v2409, 0.0
    %2588 = vadd.xlane.f32.xlu0 %v2587
    %v2589 = vpop.xlane.xlu0 %2588
    %v2590 = vsel %vm1975, %v2438, 0.0
    %2591 = vadd.xlane.f32.xlu0 %v2590
    %v2592 = vpop.xlane.xlu0 %2591
    %v2593 = vsel %vm1975, %v2467, 0.0
    %2594 = vadd.xlane.f32.xlu0 %v2593
    %v2595 = vpop.xlane.xlu0 %2594
    %v2596 = vsel %vm1975, %v2496, 0.0
    %2597 = vadd.xlane.f32.xlu0 %v2596
    %v2598 = vpop.xlane.xlu0 %2597
    %v2599 = vsel %vm1975, %v2525, 0.0
    %2600 = vadd.xlane.f32.xlu0 %v2599
    %v2601 = vpop.xlane.xlu0 %2600
    %v2602 = vsel %vm1975, %v2554, 0.0
    %2603 = vadd.xlane.f32.xlu0 %v2602
    %v2604 = vpop.xlane.xlu0 %2603
    %v2605 = vsel %vm1975, %v2583, 0.0
    %2606 = vadd.xlane.f32.xlu0 %v2605
    %v2607 = vpop.xlane.xlu0 %2606
    %v2608 = vmul.f32 %v2210, 0.016666668
    %v2609 = vmul.f32 %v2213, 0.016666668
    %v2610 = vmul.f32 %v2216, 0.016666668
    %v2611 = vmul.f32 %v2219, 0.016666668
    %v2612 = vmul.f32 %v2222, 0.016666668
    %v2613 = vmul.f32 %v2225, 0.016666668
    %v2614 = vmul.f32 %v2228, 0.016666668
    %v2615 = vmul.f32 %v2231, 0.016666668
    %v2616 = vmul.f32 %v2586, 0.016666668
    %v2617 = vmul.f32 %v2589, 0.016666668
    %v2618 = vmul.f32 %v2592, 0.016666668
    %v2619 = vmul.f32 %v2595, 0.016666668
    %v2620 = vmul.f32 %v2598, 0.016666668
    %v2621 = vmul.f32 %v2601, 0.016666668
    %v2622 = vmul.f32 %v2604, 0.016666668
    %v2623 = vmul.f32 %v2607, 0.016666668
    %v2624 = vmul.f32 %v2608, %v2608
    %v2625 = vmul.f32 %v2609, %v2609
    %v2626 = vmul.f32 %v2610, %v2610
    %v2627 = vmul.f32 %v2611, %v2611
    %v2628 = vmul.f32 %v2612, %v2612
    %v2629 = vmul.f32 %v2613, %v2613
    %v2630 = vmul.f32 %v2614, %v2614
    %v2631 = vmul.f32 %v2615, %v2615
    %v2632 = vsub.f32 %v2616, %v2624
    %v2633 = vsub.f32 %v2617, %v2625
    %v2634 = vsub.f32 %v2618, %v2626
    %v2635 = vsub.f32 %v2619, %v2627
    %v2636 = vsub.f32 %v2620, %v2628
    %v2637 = vsub.f32 %v2621, %v2629
    %v2638 = vsub.f32 %v2622, %v2630
    %v2639 = vsub.f32 %v2623, %v2631
    %v2640 = vmax.f32 %v2632, 0.0
    %v2641 = vmax.f32 %v2633, 0.0
    %v2642 = vmax.f32 %v2634, 0.0
    %v2643 = vmax.f32 %v2635, 0.0
    %v2644 = vmax.f32 %v2636, 0.0
    %v2645 = vmax.f32 %v2637, 0.0
    %v2646 = vmax.f32 %v2638, 0.0
    %v2647 = vmax.f32 %v2639, 0.0
    %v2648 = vsub.f32 %v1855, %v2608
    %v2649 = vsub.f32 %v1856, %v2609
    %v2650 = vsub.f32 %v1857, %v2610
    %v2651 = vsub.f32 %v1858, %v2611
    %v2652 = vsub.f32 %v1859, %v2608
    %v2653 = vsub.f32 %v1860, %v2609
    %v2654 = vsub.f32 %v1861, %v2610
    %v2655 = vsub.f32 %v1862, %v2611
    %v2656 = vsub.f32 %v1863, %v2608
    %v2657 = vsub.f32 %v1864, %v2609
    %v2658 = vsub.f32 %v1865, %v2610
    %v2659 = vsub.f32 %v1866, %v2611
    %v2660 = vsub.f32 %v1867, %v2608
    %v2661 = vsub.f32 %v1868, %v2609
    %v2662 = vsub.f32 %v1869, %v2610
    %v2663 = vsub.f32 %v1870, %v2611
    %v2664 = vsub.f32 %v1871, %v2608
    %v2665 = vsub.f32 %v1872, %v2609
    %v2666 = vsub.f32 %v1873, %v2610
    %v2667 = vsub.f32 %v1874, %v2611
    %v2668 = vsub.f32 %v1875, %v2608
    %v2669 = vsub.f32 %v1876, %v2609
    %v2670 = vsub.f32 %v1877, %v2610
    %v2671 = vsub.f32 %v1878, %v2611
    %v2672 = vsub.f32 %v1879, %v2608
    %v2673 = vsub.f32 %v1880, %v2609
    %v2674 = vsub.f32 %v1881, %v2610
    %v2675 = vsub.f32 %v1882, %v2611
    %v2676 = vsub.f32 %v1883, %v2608
    %v2677 = vsub.f32 %v1884, %v2609
    %v2678 = vsub.f32 %v1885, %v2610
    %v2679 = vsub.f32 %v1886, %v2611
    %v2680 = vsub.f32 %v1887, %v2608
    %v2681 = vsub.f32 %v1888, %v2609
    %v2682 = vsub.f32 %v1889, %v2610
    %v2683 = vsub.f32 %v1890, %v2611
    %v2684 = vsub.f32 %v1891, %v2608
    %v2685 = vsub.f32 %v1892, %v2609
    %v2686 = vsub.f32 %v1893, %v2610
    %v2687 = vsub.f32 %v1894, %v2611
    %v2688 = vsub.f32 %v1895, %v2608
    %v2689 = vsub.f32 %v1896, %v2609
    %v2690 = vsub.f32 %v1897, %v2610
    %v2691 = vsub.f32 %v1898, %v2611
    %v2692 = vsub.f32 %v1899, %v2608
    %v2693 = vsub.f32 %v1900, %v2609
    %v2694 = vsub.f32 %v1901, %v2610
    %v2695 = vsub.f32 %v1902, %v2611
    %v2696 = vsub.f32 %v1903, %v2608
    %v2697 = vsub.f32 %v1904, %v2609
    %v2698 = vsub.f32 %v1905, %v2610
    %v2699 = vsub.f32 %v1906, %v2611
    %v2700 = vsub.f32 %v1907, %v2608
    %v2701 = vsub.f32 %v1908, %v2609
    %v2702 = vsub.f32 %v1909, %v2610
    %v2703 = vsub.f32 %v1910, %v2611
    %v2704 = vsub.f32 %v1911, %v2608
    %v2705 = vsub.f32 %v1912, %v2609
    %v2706 = vsub.f32 %v1913, %v2610
    %v2707 = vsub.f32 %v1914, %v2611
    %v2708 = vsub.f32 %v1915, %v2612
    %v2709 = vsub.f32 %v1916, %v2613
    %v2710 = vsub.f32 %v1917, %v2614
    %v2711 = vsub.f32 %v1918, %v2615
    %v2712 = vsub.f32 %v1919, %v2612
    %v2713 = vsub.f32 %v1920, %v2613
    %v2714 = vsub.f32 %v1921, %v2614
    %v2715 = vsub.f32 %v1922, %v2615
    %v2716 = vsub.f32 %v1923, %v2612
    %v2717 = vsub.f32 %v1924, %v2613
    %v2718 = vsub.f32 %v1925, %v2614
    %v2719 = vsub.f32 %v1926, %v2615
    %v2720 = vsub.f32 %v1927, %v2612
    %v2721 = vsub.f32 %v1928, %v2613
    %v2722 = vsub.f32 %v1929, %v2614
    %v2723 = vsub.f32 %v1930, %v2615
    %v2724 = vsub.f32 %v1931, %v2612
    %v2725 = vsub.f32 %v1932, %v2613
    %v2726 = vsub.f32 %v1933, %v2614
    %v2727 = vsub.f32 %v1934, %v2615
    %v2728 = vsub.f32 %v1935, %v2612
    %v2729 = vsub.f32 %v1936, %v2613
    %v2730 = vsub.f32 %v1937, %v2614
    %v2731 = vsub.f32 %v1938, %v2615
    %v2732 = vsub.f32 %v1939, %v2612
    %v2733 = vsub.f32 %v1940, %v2613
    %v2734 = vsub.f32 %v1941, %v2614
    %v2735 = vsub.f32 %v1942, %v2615
    %v2736 = vsub.f32 %v1943, %v2612
    %v2737 = vsub.f32 %v1944, %v2613
    %v2738 = vsub.f32 %v1945, %v2614
    %v2739 = vsub.f32 %v1946, %v2615
    %v2740 = vsub.f32 %v1947, %v2612
    %v2741 = vsub.f32 %v1948, %v2613
    %v2742 = vsub.f32 %v1949, %v2614
    %v2743 = vsub.f32 %v1950, %v2615
    %v2744 = vsub.f32 %v1951, %v2612
    %v2745 = vsub.f32 %v1952, %v2613
    %v2746 = vsub.f32 %v1953, %v2614
    %v2747 = vsub.f32 %v1954, %v2615
    %v2748 = vsub.f32 %v1955, %v2612
    %v2749 = vsub.f32 %v1956, %v2613
    %v2750 = vsub.f32 %v1957, %v2614
    %v2751 = vsub.f32 %v1958, %v2615
    %v2752 = vsub.f32 %v1959, %v2612
    %v2753 = vsub.f32 %v1960, %v2613
    %v2754 = vsub.f32 %v1961, %v2614
    %v2755 = vsub.f32 %v1962, %v2615
    %v2756 = vsub.f32 %v1963, %v2612
    %v2757 = vsub.f32 %v1964, %v2613
    %v2758 = vsub.f32 %v1965, %v2614
    %v2759 = vsub.f32 %v1966, %v2615
    %v2760 = vsub.f32 %v1967, %v2612
    %v2761 = vsub.f32 %v1968, %v2613
    %v2762 = vsub.f32 %v1969, %v2614
    %v2763 = vsub.f32 %v1970, %v2615
    %v2764 = vsub.f32 %v1971, %v2612
    %v2765 = vsub.f32 %v1972, %v2613
    %v2766 = vsub.f32 %v1973, %v2614
    %v2767 = vsub.f32 %v1974, %v2615
    %v2768 = vadd.f32 %v2640, 1e-05
    %v2769 = vadd.f32 %v2641, 1e-05
    %v2770 = vadd.f32 %v2642, 1e-05
    %v2771 = vadd.f32 %v2643, 1e-05
    %v2772 = vadd.f32 %v2644, 1e-05
    %v2773 = vadd.f32 %v2645, 1e-05
    %v2774 = vadd.f32 %v2646, 1e-05
    %v2775 = vadd.f32 %v2647, 1e-05
    %v2776 = vrsqrt.pop %v2768
    %v2777 = vmul.f32 %v2776, %v2768
    %v2778 = vmul.f32 %v2777, %v2776
    %v2779 = vmul.f32 0.5, %v2778
    %v2780 = vsub.f32 1.5, %v2779
    %v2781 = vmul.f32 %v2776, %v2780
    %vm2782 = vweird.f32 %v2768
    %vm2783 = vweird.f32 %v2776
    %vm2784 = vmor %vm2782, %vm2783
    %v2785 = vsel %vm2784, %v2776, %v2781
    %v2786 = vrsqrt.pop %v2769
    %v2787 = vmul.f32 %v2786, %v2769
    %v2788 = vmul.f32 %v2787, %v2786
    %v2789 = vmul.f32 0.5, %v2788
    %v2790 = vsub.f32 1.5, %v2789
    %v2791 = vmul.f32 %v2786, %v2790
    %vm2792 = vweird.f32 %v2769
    %vm2793 = vweird.f32 %v2786
    %vm2794 = vmor %vm2792, %vm2793
    %v2795 = vsel %vm2794, %v2786, %v2791
    %v2796 = vrsqrt.pop %v2770
    %v2797 = vmul.f32 %v2796, %v2770
    %v2798 = vmul.f32 %v2797, %v2796
    %v2799 = vmul.f32 0.5, %v2798
    %v2800 = vsub.f32 1.5, %v2799
    %v2801 = vmul.f32 %v2796, %v2800
    %vm2802 = vweird.f32 %v2770
    %vm2803 = vweird.f32 %v2796
    %vm2804 = vmor %vm2802, %vm2803
    %v2805 = vsel %vm2804, %v2796, %v2801
    %v2806 = vrsqrt.pop %v2771
    %v2807 = vmul.f32 %v2806, %v2771
    %v2808 = vmul.f32 %v2807, %v2806
    %v2809 = vmul.f32 0.5, %v2808
    %v2810 = vsub.f32 1.5, %v2809
    %v2811 = vmul.f32 %v2806, %v2810
    %vm2812 = vweird.f32 %v2771
    %vm2813 = vweird.f32 %v2806
    %vm2814 = vmor %vm2812, %vm2813
    %v2815 = vsel %vm2814, %v2806, %v2811
    %v2816 = vrsqrt.pop %v2772
    %v2817 = vmul.f32 %v2816, %v2772
    %v2818 = vmul.f32 %v2817, %v2816
    %v2819 = vmul.f32 0.5, %v2818
    %v2820 = vsub.f32 1.5, %v2819
    %v2821 = vmul.f32 %v2816, %v2820
    %vm2822 = vweird.f32 %v2772
    %vm2823 = vweird.f32 %v2816
    %vm2824 = vmor %vm2822, %vm2823
    %v2825 = vsel %vm2824, %v2816, %v2821
    %v2826 = vrsqrt.pop %v2773
    %v2827 = vmul.f32 %v2826, %v2773
    %v2828 = vmul.f32 %v2827, %v2826
    %v2829 = vmul.f32 0.5, %v2828
    %v2830 = vsub.f32 1.5, %v2829
    %v2831 = vmul.f32 %v2826, %v2830
    %vm2832 = vweird.f32 %v2773
    %vm2833 = vweird.f32 %v2826
    %vm2834 = vmor %vm2832, %vm2833
    %v2835 = vsel %vm2834, %v2826, %v2831
    %v2836 = vrsqrt.pop %v2774
    %v2837 = vmul.f32 %v2836, %v2774
    %v2838 = vmul.f32 %v2837, %v2836
    %v2839 = vmul.f32 0.5, %v2838
    %v2840 = vsub.f32 1.5, %v2839
    %v2841 = vmul.f32 %v2836, %v2840
    %vm2842 = vweird.f32 %v2774
    %vm2843 = vweird.f32 %v2836
    %vm2844 = vmor %vm2842, %vm2843
    %v2845 = vsel %vm2844, %v2836, %v2841
    %v2846 = vrsqrt.pop %v2775
    %v2847 = vmul.f32 %v2846, %v2775
    %v2848 = vmul.f32 %v2847, %v2846
    %v2849 = vmul.f32 0.5, %v2848
    %v2850 = vsub.f32 1.5, %v2849
    %v2851 = vmul.f32 %v2846, %v2850
    %vm2852 = vweird.f32 %v2775
    %vm2853 = vweird.f32 %v2846
    %vm2854 = vmor %vm2852, %vm2853
    %v2855 = vsel %vm2854, %v2846, %v2851
    %v2856 = vmul.f32 %v2648, %v2785
    %v2857 = vmul.f32 %v2649, %v2795
    %v2858 = vmul.f32 %v2650, %v2805
    %v2859 = vmul.f32 %v2651, %v2815
    %v2860 = vmul.f32 %v2652, %v2785
    %v2861 = vmul.f32 %v2653, %v2795
    %v2862 = vmul.f32 %v2654, %v2805
    %v2863 = vmul.f32 %v2655, %v2815
    %v2864 = vmul.f32 %v2656, %v2785
    %v2865 = vmul.f32 %v2657, %v2795
    %v2866 = vmul.f32 %v2658, %v2805
    %v2867 = vmul.f32 %v2659, %v2815
    %v2868 = vmul.f32 %v2660, %v2785
    %v2869 = vmul.f32 %v2661, %v2795
    %v2870 = vmul.f32 %v2662, %v2805
    %v2871 = vmul.f32 %v2663, %v2815
    %v2872 = vmul.f32 %v2664, %v2785
    %v2873 = vmul.f32 %v2665, %v2795
    %v2874 = vmul.f32 %v2666, %v2805
    %v2875 = vmul.f32 %v2667, %v2815
    %v2876 = vmul.f32 %v2668, %v2785
    %v2877 = vmul.f32 %v2669, %v2795
    %v2878 = vmul.f32 %v2670, %v2805
    %v2879 = vmul.f32 %v2671, %v2815
    %v2880 = vmul.f32 %v2672, %v2785
    %v2881 = vmul.f32 %v2673, %v2795
    %v2882 = vmul.f32 %v2674, %v2805
    %v2883 = vmul.f32 %v2675, %v2815
    %v2884 = vmul.f32 %v2676, %v2785
    %v2885 = vmul.f32 %v2677, %v2795
    %v2886 = vmul.f32 %v2678, %v2805
    %v2887 = vmul.f32 %v2679, %v2815
    %v2888 = vmul.f32 %v2680, %v2785
    %v2889 = vmul.f32 %v2681, %v2795
    %v2890 = vmul.f32 %v2682, %v2805
    %v2891 = vmul.f32 %v2683, %v2815
    %v2892 = vmul.f32 %v2684, %v2785
    %v2893 = vmul.f32 %v2685, %v2795
    %v2894 = vmul.f32 %v2686, %v2805
    %v2895 = vmul.f32 %v2687, %v2815
    %v2896 = vmul.f32 %v2688, %v2785
    %v2897 = vmul.f32 %v2689, %v2795
    %v2898 = vmul.f32 %v2690, %v2805
    %v2899 = vmul.f32 %v2691, %v2815
    %v2900 = vmul.f32 %v2692, %v2785
    %v2901 = vmul.f32 %v2693, %v2795
    %v2902 = vmul.f32 %v2694, %v2805
    %v2903 = vmul.f32 %v2695, %v2815
    %v2904 = vmul.f32 %v2696, %v2785
    %v2905 = vmul.f32 %v2697, %v2795
    %v2906 = vmul.f32 %v2698, %v2805
    %v2907 = vmul.f32 %v2699, %v2815
    %v2908 = vmul.f32 %v2700, %v2785
    %v2909 = vmul.f32 %v2701, %v2795
    %v2910 = vmul.f32 %v2702, %v2805
    %v2911 = vmul.f32 %v2703, %v2815
    %v2912 = vmul.f32 %v2704, %v2785
    %v2913 = vmul.f32 %v2705, %v2795
    %v2914 = vmul.f32 %v2706, %v2805
    %v2915 = vmul.f32 %v2707, %v2815
    %v2916 = vmul.f32 %v2708, %v2825
    %v2917 = vmul.f32 %v2709, %v2835
    %v2918 = vmul.f32 %v2710, %v2845
    %v2919 = vmul.f32 %v2711, %v2855
    %v2920 = vmul.f32 %v2712, %v2825
    %v2921 = vmul.f32 %v2713, %v2835
    %v2922 = vmul.f32 %v2714, %v2845
    %v2923 = vmul.f32 %v2715, %v2855
    %v2924 = vmul.f32 %v2716, %v2825
    %v2925 = vmul.f32 %v2717, %v2835
    %v2926 = vmul.f32 %v2718, %v2845
    %v2927 = vmul.f32 %v2719, %v2855
    %v2928 = vmul.f32 %v2720, %v2825
    %v2929 = vmul.f32 %v2721, %v2835
    %v2930 = vmul.f32 %v2722, %v2845
    %v2931 = vmul.f32 %v2723, %v2855
    %v2932 = vmul.f32 %v2724, %v2825
    %v2933 = vmul.f32 %v2725, %v2835
    %v2934 = vmul.f32 %v2726, %v2845
    %v2935 = vmul.f32 %v2727, %v2855
    %v2936 = vmul.f32 %v2728, %v2825
    %v2937 = vmul.f32 %v2729, %v2835
    %v2938 = vmul.f32 %v2730, %v2845
    %v2939 = vmul.f32 %v2731, %v2855
    %v2940 = vmul.f32 %v2732, %v2825
    %v2941 = vmul.f32 %v2733, %v2835
    %v2942 = vmul.f32 %v2734, %v2845
    %v2943 = vmul.f32 %v2735, %v2855
    %v2944 = vmul.f32 %v2736, %v2825
    %v2945 = vmul.f32 %v2737, %v2835
    %v2946 = vmul.f32 %v2738, %v2845
    %v2947 = vmul.f32 %v2739, %v2855
    %v2948 = vmul.f32 %v2740, %v2825
    %v2949 = vmul.f32 %v2741, %v2835
    %v2950 = vmul.f32 %v2742, %v2845
    %v2951 = vmul.f32 %v2743, %v2855
    %v2952 = vmul.f32 %v2744, %v2825
    %v2953 = vmul.f32 %v2745, %v2835
    %v2954 = vmul.f32 %v2746, %v2845
    %v2955 = vmul.f32 %v2747, %v2855
    %v2956 = vmul.f32 %v2748, %v2825
    %v2957 = vmul.f32 %v2749, %v2835
    %v2958 = vmul.f32 %v2750, %v2845
    %v2959 = vmul.f32 %v2751, %v2855
    %v2960 = vmul.f32 %v2752, %v2825
    %v2961 = vmul.f32 %v2753, %v2835
    %v2962 = vmul.f32 %v2754, %v2845
    %v2963 = vmul.f32 %v2755, %v2855
    %v2964 = vmul.f32 %v2756, %v2825
    %v2965 = vmul.f32 %v2757, %v2835
    %v2966 = vmul.f32 %v2758, %v2845
    %v2967 = vmul.f32 %v2759, %v2855
    %v2968 = vmul.f32 %v2760, %v2825
    %v2969 = vmul.f32 %v2761, %v2835
    %v2970 = vmul.f32 %v2762, %v2845
    %v2971 = vmul.f32 %v2763, %v2855
    %v2972 = vmul.f32 %v2764, %v2825
    %v2973 = vmul.f32 %v2765, %v2835
    %v2974 = vmul.f32 %v2766, %v2845
    %v2975 = vmul.f32 %v2767, %v2855
    %2976 = vset.pattern.permute.xlu0 1
    %2977 = vperm.xlu0 %2976, %v55
    %v2978 = vpop.permute.xlu0 %2977
    %2980 = vset.pattern.permute.xlu0 1
    %2981 = vperm.xlu0 %2980, %v56
    %v2982 = vpop.permute.xlu0 %2981
    %2984 = vset.pattern.permute.xlu0 1
    %2985 = vperm.xlu0 %2984, %v57
    %v2986 = vpop.permute.xlu0 %2985
    %2988 = vset.pattern.permute.xlu0 1
    %2989 = vperm.xlu0 %2988, %v58
    %v2990 = vpop.permute.xlu0 %2989
    %2992 = vset.pattern.permute.xlu0 1
    %2993 = vperm.xlu0 %2992, %v59
    %v2994 = vpop.permute.xlu0 %2993
    %2996 = vset.pattern.permute.xlu0 1
    %2997 = vperm.xlu0 %2996, %v60
    %v2998 = vpop.permute.xlu0 %2997
    %3000 = vset.pattern.permute.xlu0 1
    %3001 = vperm.xlu0 %3000, %v61
    %v3002 = vpop.permute.xlu0 %3001
    %3004 = vset.pattern.permute.xlu0 1
    %3005 = vperm.xlu0 %3004, %v62
    %v3006 = vpop.permute.xlu0 %3005
    %v3008 = vmul.f32 %v2856, %v2978
    %v3009 = vmul.f32 %v2857, %v2982
    %v3010 = vmul.f32 %v2858, %v2986
    %v3011 = vmul.f32 %v2859, %v2990
    %v3012 = vmul.f32 %v2860, %v2978
    %v3013 = vmul.f32 %v2861, %v2982
    %v3014 = vmul.f32 %v2862, %v2986
    %v3015 = vmul.f32 %v2863, %v2990
    %v3016 = vmul.f32 %v2864, %v2978
    %v3017 = vmul.f32 %v2865, %v2982
    %v3018 = vmul.f32 %v2866, %v2986
    %v3019 = vmul.f32 %v2867, %v2990
    %v3020 = vmul.f32 %v2868, %v2978
    %v3021 = vmul.f32 %v2869, %v2982
    %v3022 = vmul.f32 %v2870, %v2986
    %v3023 = vmul.f32 %v2871, %v2990
    %v3024 = vmul.f32 %v2872, %v2978
    %v3025 = vmul.f32 %v2873, %v2982
    %v3026 = vmul.f32 %v2874, %v2986
    %v3027 = vmul.f32 %v2875, %v2990
    %v3028 = vmul.f32 %v2876, %v2978
    %v3029 = vmul.f32 %v2877, %v2982
    %v3030 = vmul.f32 %v2878, %v2986
    %v3031 = vmul.f32 %v2879, %v2990
    %v3032 = vmul.f32 %v2880, %v2978
    %v3033 = vmul.f32 %v2881, %v2982
    %v3034 = vmul.f32 %v2882, %v2986
    %v3035 = vmul.f32 %v2883, %v2990
    %v3036 = vmul.f32 %v2884, %v2978
    %v3037 = vmul.f32 %v2885, %v2982
    %v3038 = vmul.f32 %v2886, %v2986
    %v3039 = vmul.f32 %v2887, %v2990
    %v3040 = vmul.f32 %v2888, %v2978
    %v3041 = vmul.f32 %v2889, %v2982
    %v3042 = vmul.f32 %v2890, %v2986
    %v3043 = vmul.f32 %v2891, %v2990
    %v3044 = vmul.f32 %v2892, %v2978
    %v3045 = vmul.f32 %v2893, %v2982
    %v3046 = vmul.f32 %v2894, %v2986
    %v3047 = vmul.f32 %v2895, %v2990
    %v3048 = vmul.f32 %v2896, %v2978
    %v3049 = vmul.f32 %v2897, %v2982
    %v3050 = vmul.f32 %v2898, %v2986
    %v3051 = vmul.f32 %v2899, %v2990
    %v3052 = vmul.f32 %v2900, %v2978
    %v3053 = vmul.f32 %v2901, %v2982
    %v3054 = vmul.f32 %v2902, %v2986
    %v3055 = vmul.f32 %v2903, %v2990
    %v3056 = vmul.f32 %v2904, %v2978
    %v3057 = vmul.f32 %v2905, %v2982
    %v3058 = vmul.f32 %v2906, %v2986
    %v3059 = vmul.f32 %v2907, %v2990
    %v3060 = vmul.f32 %v2908, %v2978
    %v3061 = vmul.f32 %v2909, %v2982
    %v3062 = vmul.f32 %v2910, %v2986
    %v3063 = vmul.f32 %v2911, %v2990
    %v3064 = vmul.f32 %v2912, %v2978
    %v3065 = vmul.f32 %v2913, %v2982
    %v3066 = vmul.f32 %v2914, %v2986
    %v3067 = vmul.f32 %v2915, %v2990
    %v3068 = vmul.f32 %v2916, %v2994
    %v3069 = vmul.f32 %v2917, %v2998
    %v3070 = vmul.f32 %v2918, %v3002
    %v3071 = vmul.f32 %v2919, %v3006
    %v3072 = vmul.f32 %v2920, %v2994
    %v3073 = vmul.f32 %v2921, %v2998
    %v3074 = vmul.f32 %v2922, %v3002
    %v3075 = vmul.f32 %v2923, %v3006
    %v3076 = vmul.f32 %v2924, %v2994
    %v3077 = vmul.f32 %v2925, %v2998
    %v3078 = vmul.f32 %v2926, %v3002
    %v3079 = vmul.f32 %v2927, %v3006
    %v3080 = vmul.f32 %v2928, %v2994
    %v3081 = vmul.f32 %v2929, %v2998
    %v3082 = vmul.f32 %v2930, %v3002
    %v3083 = vmul.f32 %v2931, %v3006
    %v3084 = vmul.f32 %v2932, %v2994
    %v3085 = vmul.f32 %v2933, %v2998
    %v3086 = vmul.f32 %v2934, %v3002
    %v3087 = vmul.f32 %v2935, %v3006
    %v3088 = vmul.f32 %v2936, %v2994
    %v3089 = vmul.f32 %v2937, %v2998
    %v3090 = vmul.f32 %v2938, %v3002
    %v3091 = vmul.f32 %v2939, %v3006
    %v3092 = vmul.f32 %v2940, %v2994
    %v3093 = vmul.f32 %v2941, %v2998
    %v3094 = vmul.f32 %v2942, %v3002
    %v3095 = vmul.f32 %v2943, %v3006
    %v3096 = vmul.f32 %v2944, %v2994
    %v3097 = vmul.f32 %v2945, %v2998
    %v3098 = vmul.f32 %v2946, %v3002
    %v3099 = vmul.f32 %v2947, %v3006
    %v3100 = vmul.f32 %v2948, %v2994
    %v3101 = vmul.f32 %v2949, %v2998
    %v3102 = vmul.f32 %v2950, %v3002
    %v3103 = vmul.f32 %v2951, %v3006
    %v3104 = vmul.f32 %v2952, %v2994
    %v3105 = vmul.f32 %v2953, %v2998
    %v3106 = vmul.f32 %v2954, %v3002
    %v3107 = vmul.f32 %v2955, %v3006
    %v3108 = vmul.f32 %v2956, %v2994
    %v3109 = vmul.f32 %v2957, %v2998
    %v3110 = vmul.f32 %v2958, %v3002
    %v3111 = vmul.f32 %v2959, %v3006
    %v3112 = vmul.f32 %v2960, %v2994
    %v3113 = vmul.f32 %v2961, %v2998
    %v3114 = vmul.f32 %v2962, %v3002
    %v3115 = vmul.f32 %v2963, %v3006
    %v3116 = vmul.f32 %v2964, %v2994
    %v3117 = vmul.f32 %v2965, %v2998
    %v3118 = vmul.f32 %v2966, %v3002
    %v3119 = vmul.f32 %v2967, %v3006
    %v3120 = vmul.f32 %v2968, %v2994
    %v3121 = vmul.f32 %v2969, %v2998
    %v3122 = vmul.f32 %v2970, %v3002
    %v3123 = vmul.f32 %v2971, %v3006
    %v3124 = vmul.f32 %v2972, %v2994
    %v3125 = vmul.f32 %v2973, %v2998
    %v3126 = vmul.f32 %v2974, %v3002
    %v3127 = vmul.f32 %v2975, %v3006
    %3128 = vset.pattern.permute.xlu0 2
    %3129 = vperm.xlu0 %3128, %v55
    %v3130 = vpop.permute.xlu0 %3129
    %3132 = vset.pattern.permute.xlu0 2
    %3133 = vperm.xlu0 %3132, %v56
    %v3134 = vpop.permute.xlu0 %3133
    %3136 = vset.pattern.permute.xlu0 2
    %3137 = vperm.xlu0 %3136, %v57
    %v3138 = vpop.permute.xlu0 %3137
    %3140 = vset.pattern.permute.xlu0 2
    %3141 = vperm.xlu0 %3140, %v58
    %v3142 = vpop.permute.xlu0 %3141
    %3144 = vset.pattern.permute.xlu0 2
    %3145 = vperm.xlu0 %3144, %v59
    %v3146 = vpop.permute.xlu0 %3145
    %3148 = vset.pattern.permute.xlu0 2
    %3149 = vperm.xlu0 %3148, %v60
    %v3150 = vpop.permute.xlu0 %3149
    %3152 = vset.pattern.permute.xlu0 2
    %3153 = vperm.xlu0 %3152, %v61
    %v3154 = vpop.permute.xlu0 %3153
    %3156 = vset.pattern.permute.xlu0 2
    %3157 = vperm.xlu0 %3156, %v62
    %v3158 = vpop.permute.xlu0 %3157
    %v3160 = vadd.f32 %v3008, %v3130
    %v3161 = vadd.f32 %v3009, %v3134
    %v3162 = vadd.f32 %v3010, %v3138
    %v3163 = vadd.f32 %v3011, %v3142
    %v3164 = vadd.f32 %v3012, %v3130
    %v3165 = vadd.f32 %v3013, %v3134
    %v3166 = vadd.f32 %v3014, %v3138
    %v3167 = vadd.f32 %v3015, %v3142
    %v3168 = vadd.f32 %v3016, %v3130
    %v3169 = vadd.f32 %v3017, %v3134
    %v3170 = vadd.f32 %v3018, %v3138
    %v3171 = vadd.f32 %v3019, %v3142
    %v3172 = vadd.f32 %v3020, %v3130
    %v3173 = vadd.f32 %v3021, %v3134
    %v3174 = vadd.f32 %v3022, %v3138
    %v3175 = vadd.f32 %v3023, %v3142
    %v3176 = vadd.f32 %v3024, %v3130
    %v3177 = vadd.f32 %v3025, %v3134
    %v3178 = vadd.f32 %v3026, %v3138
    %v3179 = vadd.f32 %v3027, %v3142
    %v3180 = vadd.f32 %v3028, %v3130
    %v3181 = vadd.f32 %v3029, %v3134
    %v3182 = vadd.f32 %v3030, %v3138
    %v3183 = vadd.f32 %v3031, %v3142
    %v3184 = vadd.f32 %v3032, %v3130
    %v3185 = vadd.f32 %v3033, %v3134
    %v3186 = vadd.f32 %v3034, %v3138
    %v3187 = vadd.f32 %v3035, %v3142
    %v3188 = vadd.f32 %v3036, %v3130
    %v3189 = vadd.f32 %v3037, %v3134
    %v3190 = vadd.f32 %v3038, %v3138
    %v3191 = vadd.f32 %v3039, %v3142
    %v3192 = vadd.f32 %v3040, %v3130
    %v3193 = vadd.f32 %v3041, %v3134
    %v3194 = vadd.f32 %v3042, %v3138
    %v3195 = vadd.f32 %v3043, %v3142
    %v3196 = vadd.f32 %v3044, %v3130
    %v3197 = vadd.f32 %v3045, %v3134
    %v3198 = vadd.f32 %v3046, %v3138
    %v3199 = vadd.f32 %v3047, %v3142
    %v3200 = vadd.f32 %v3048, %v3130
    %v3201 = vadd.f32 %v3049, %v3134
    %v3202 = vadd.f32 %v3050, %v3138
    %v3203 = vadd.f32 %v3051, %v3142
    %v3204 = vadd.f32 %v3052, %v3130
    %v3205 = vadd.f32 %v3053, %v3134
    %v3206 = vadd.f32 %v3054, %v3138
    %v3207 = vadd.f32 %v3055, %v3142
    %v3208 = vadd.f32 %v3056, %v3130
    %v3209 = vadd.f32 %v3057, %v3134
    %v3210 = vadd.f32 %v3058, %v3138
    %v3211 = vadd.f32 %v3059, %v3142
    %v3212 = vadd.f32 %v3060, %v3130
    %v3213 = vadd.f32 %v3061, %v3134
    %v3214 = vadd.f32 %v3062, %v3138
    %v3215 = vadd.f32 %v3063, %v3142
    %v3216 = vadd.f32 %v3064, %v3130
    %v3217 = vadd.f32 %v3065, %v3134
    %v3218 = vadd.f32 %v3066, %v3138
    %v3219 = vadd.f32 %v3067, %v3142
    %v3220 = vadd.f32 %v3068, %v3146
    %v3221 = vadd.f32 %v3069, %v3150
    %v3222 = vadd.f32 %v3070, %v3154
    %v3223 = vadd.f32 %v3071, %v3158
    %v3224 = vadd.f32 %v3072, %v3146
    %v3225 = vadd.f32 %v3073, %v3150
    %v3226 = vadd.f32 %v3074, %v3154
    %v3227 = vadd.f32 %v3075, %v3158
    %v3228 = vadd.f32 %v3076, %v3146
    %v3229 = vadd.f32 %v3077, %v3150
    %v3230 = vadd.f32 %v3078, %v3154
    %v3231 = vadd.f32 %v3079, %v3158
    %v3232 = vadd.f32 %v3080, %v3146
    %v3233 = vadd.f32 %v3081, %v3150
    %v3234 = vadd.f32 %v3082, %v3154
    %v3235 = vadd.f32 %v3083, %v3158
    %v3236 = vadd.f32 %v3084, %v3146
    %v3237 = vadd.f32 %v3085, %v3150
    %v3238 = vadd.f32 %v3086, %v3154
    %v3239 = vadd.f32 %v3087, %v3158
    %v3240 = vadd.f32 %v3088, %v3146
    %v3241 = vadd.f32 %v3089, %v3150
    %v3242 = vadd.f32 %v3090, %v3154
    %v3243 = vadd.f32 %v3091, %v3158
    %v3244 = vadd.f32 %v3092, %v3146
    %v3245 = vadd.f32 %v3093, %v3150
    %v3246 = vadd.f32 %v3094, %v3154
    %v3247 = vadd.f32 %v3095, %v3158
    %v3248 = vadd.f32 %v3096, %v3146
    %v3249 = vadd.f32 %v3097, %v3150
    %v3250 = vadd.f32 %v3098, %v3154
    %v3251 = vadd.f32 %v3099, %v3158
    %v3252 = vadd.f32 %v3100, %v3146
    %v3253 = vadd.f32 %v3101, %v3150
    %v3254 = vadd.f32 %v3102, %v3154
    %v3255 = vadd.f32 %v3103, %v3158
    %v3256 = vadd.f32 %v3104, %v3146
    %v3257 = vadd.f32 %v3105, %v3150
    %v3258 = vadd.f32 %v3106, %v3154
    %v3259 = vadd.f32 %v3107, %v3158
    %v3260 = vadd.f32 %v3108, %v3146
    %v3261 = vadd.f32 %v3109, %v3150
    %v3262 = vadd.f32 %v3110, %v3154
    %v3263 = vadd.f32 %v3111, %v3158
    %v3264 = vadd.f32 %v3112, %v3146
    %v3265 = vadd.f32 %v3113, %v3150
    %v3266 = vadd.f32 %v3114, %v3154
    %v3267 = vadd.f32 %v3115, %v3158
    %v3268 = vadd.f32 %v3116, %v3146
    %v3269 = vadd.f32 %v3117, %v3150
    %v3270 = vadd.f32 %v3118, %v3154
    %v3271 = vadd.f32 %v3119, %v3158
    %v3272 = vadd.f32 %v3120, %v3146
    %v3273 = vadd.f32 %v3121, %v3150
    %v3274 = vadd.f32 %v3122, %v3154
    %v3275 = vadd.f32 %v3123, %v3158
    %v3276 = vadd.f32 %v3124, %v3146
    %v3277 = vadd.f32 %v3125, %v3150
    %v3278 = vadd.f32 %v3126, %v3154
    %v3279 = vadd.f32 %v3127, %v3158
    %v3280 = vmax.f32 %v3160, %v3164
    %v3281 = vmax.f32 %v3161, %v3165
    %v3282 = vmax.f32 %v3162, %v3166
    %v3283 = vmax.f32 %v3163, %v3167
    %v3284 = vmax.f32 %v3280, %v3168
    %v3285 = vmax.f32 %v3281, %v3169
    %v3286 = vmax.f32 %v3282, %v3170
    %v3287 = vmax.f32 %v3283, %v3171
    %v3288 = vmax.f32 %v3168, %v3172
    %v3289 = vmax.f32 %v3169, %v3173
    %v3290 = vmax.f32 %v3170, %v3174
    %v3291 = vmax.f32 %v3171, %v3175
    %v3292 = vmax.f32 %v3288, %v3176
    %v3293 = vmax.f32 %v3289, %v3177
    %v3294 = vmax.f32 %v3290, %v3178
    %v3295 = vmax.f32 %v3291, %v3179
    %v3296 = vmax.f32 %v3176, %v3180
    %v3297 = vmax.f32 %v3177, %v3181
    %v3298 = vmax.f32 %v3178, %v3182
    %v3299 = vmax.f32 %v3179, %v3183
    %v3300 = vmax.f32 %v3296, %v3184
    %v3301 = vmax.f32 %v3297, %v3185
    %v3302 = vmax.f32 %v3298, %v3186
    %v3303 = vmax.f32 %v3299, %v3187
    %v3304 = vmax.f32 %v3184, %v3188
    %v3305 = vmax.f32 %v3185, %v3189
    %v3306 = vmax.f32 %v3186, %v3190
    %v3307 = vmax.f32 %v3187, %v3191
    %v3308 = vmax.f32 %v3304, %v3192
    %v3309 = vmax.f32 %v3305, %v3193
    %v3310 = vmax.f32 %v3306, %v3194
    %v3311 = vmax.f32 %v3307, %v3195
    %v3312 = vmax.f32 %v3192, %v3196
    %v3313 = vmax.f32 %v3193, %v3197
    %v3314 = vmax.f32 %v3194, %v3198
    %v3315 = vmax.f32 %v3195, %v3199
    %v3316 = vmax.f32 %v3312, %v3200
    %v3317 = vmax.f32 %v3313, %v3201
    %v3318 = vmax.f32 %v3314, %v3202
    %v3319 = vmax.f32 %v3315, %v3203
    %v3320 = vmax.f32 %v3200, %v3204
    %v3321 = vmax.f32 %v3201, %v3205
    %v3322 = vmax.f32 %v3202, %v3206
    %v3323 = vmax.f32 %v3203, %v3207
    %v3324 = vmax.f32 %v3320, %v3208
    %v3325 = vmax.f32 %v3321, %v3209
    %v3326 = vmax.f32 %v3322, %v3210
    %v3327 = vmax.f32 %v3323, %v3211
    %v3328 = vmax.f32 %v3208, %v3212
    %v3329 = vmax.f32 %v3209, %v3213
    %v3330 = vmax.f32 %v3210, %v3214
    %v3331 = vmax.f32 %v3211, %v3215
    %v3332 = vmax.f32 %v3328, %v3216
    %v3333 = vmax.f32 %v3329, %v3217
    %v3334 = vmax.f32 %v3330, %v3218
    %v3335 = vmax.f32 %v3331, %v3219
    %v3336 = vmax.f32 %v3220, %v3224
    %v3337 = vmax.f32 %v3221, %v3225
    %v3338 = vmax.f32 %v3222, %v3226
    %v3339 = vmax.f32 %v3223, %v3227
    %v3340 = vmax.f32 %v3336, %v3228
    %v3341 = vmax.f32 %v3337, %v3229
    %v3342 = vmax.f32 %v3338, %v3230
    %v3343 = vmax.f32 %v3339, %v3231
    %v3344 = vmax.f32 %v3228, %v3232
    %v3345 = vmax.f32 %v3229, %v3233
    %v3346 = vmax.f32 %v3230, %v3234
    %v3347 = vmax.f32 %v3231, %v3235
    %v3348 = vmax.f32 %v3344, %v3236
    %v3349 = vmax.f32 %v3345, %v3237
    %v3350 = vmax.f32 %v3346, %v3238
    %v3351 = vmax.f32 %v3347, %v3239
    %v3352 = vmax.f32 %v3236, %v3240
    %v3353 = vmax.f32 %v3237, %v3241
    %v3354 = vmax.f32 %v3238, %v3242
    %v3355 = vmax.f32 %v3239, %v3243
    %v3356 = vmax.f32 %v3352, %v3244
    %v3357 = vmax.f32 %v3353, %v3245
    %v3358 = vmax.f32 %v3354, %v3246
    %v3359 = vmax.f32 %v3355, %v3247
    %v3360 = vmax.f32 %v3244, %v3248
    %v3361 = vmax.f32 %v3245, %v3249
    %v3362 = vmax.f32 %v3246, %v3250
    %v3363 = vmax.f32 %v3247, %v3251
    %v3364 = vmax.f32 %v3360, %v3252
    %v3365 = vmax.f32 %v3361, %v3253
    %v3366 = vmax.f32 %v3362, %v3254
    %v3367 = vmax.f32 %v3363, %v3255
    %v3368 = vmax.f32 %v3252, %v3256
    %v3369 = vmax.f32 %v3253, %v3257
    %v3370 = vmax.f32 %v3254, %v3258
    %v3371 = vmax.f32 %v3255, %v3259
    %v3372 = vmax.f32 %v3368, %v3260
    %v3373 = vmax.f32 %v3369, %v3261
    %v3374 = vmax.f32 %v3370, %v3262
    %v3375 = vmax.f32 %v3371, %v3263
    %v3376 = vmax.f32 %v3260, %v3264
    %v3377 = vmax.f32 %v3261, %v3265
    %v3378 = vmax.f32 %v3262, %v3266
    %v3379 = vmax.f32 %v3263, %v3267
    %v3380 = vmax.f32 %v3376, %v3268
    %v3381 = vmax.f32 %v3377, %v3269
    %v3382 = vmax.f32 %v3378, %v3270
    %v3383 = vmax.f32 %v3379, %v3271
    %v3384 = vmax.f32 %v3268, %v3272
    %v3385 = vmax.f32 %v3269, %v3273
    %v3386 = vmax.f32 %v3270, %v3274
    %v3387 = vmax.f32 %v3271, %v3275
    %v3388 = vmax.f32 %v3384, %v3276
    %v3389 = vmax.f32 %v3385, %v3277
    %v3390 = vmax.f32 %v3386, %v3278
    %v3391 = vmax.f32 %v3387, %v3279
    %v3392 = vld [vmem:[%s2] sm:$0xff]
    %v3393 = vld [vmem:[%s2 + $0x8] sm:$0xff]
    %v3394 = vld [vmem:[%s2 + $0x10] sm:$0xff]
    %v3395 = vld [vmem:[%s2 + $0x18] sm:$0xff]
    %v3396 = vld [vmem:[%s2 + $0x20] sm:$0xff]
    %v3397 = vld [vmem:[%s2 + $0x28] sm:$0xff]
    %v3398 = vld [vmem:[%s2 + $0x30] sm:$0xff]
    %v3399 = vld [vmem:[%s2 + $0x38] sm:$0xff]
    %v3400 = vld [vmem:[%s2 + $0x40] sm:$0xff]
    %v3401 = vld [vmem:[%s2 + $0x48] sm:$0xff]
    %v3402 = vld [vmem:[%s2 + $0x50] sm:$0xff]
    %v3403 = vld [vmem:[%s2 + $0x58] sm:$0xff]
    %v3404 = vld [vmem:[%s2 + $0x60] sm:$0xff]
    %v3405 = vld [vmem:[%s2 + $0x68] sm:$0xff]
    %v3406 = vld [vmem:[%s2 + $0x70] sm:$0xff]
    %v3407 = vld [vmem:[%s2 + $0x78] sm:$0xff]
    %3408 = vset.pattern.permute.xlu0 9
    %3409 = vperm.xlu0 %3408, %v55
    %v3410 = vpop.permute.xlu0 %3409
    %3412 = vset.pattern.permute.xlu0 9
    %3413 = vperm.xlu0 %3412, %v56
    %v3414 = vpop.permute.xlu0 %3413
    %3416 = vset.pattern.permute.xlu0 9
    %3417 = vperm.xlu0 %3416, %v57
    %v3418 = vpop.permute.xlu0 %3417
    %3420 = vset.pattern.permute.xlu0 9
    %3421 = vperm.xlu0 %3420, %v58
    %v3422 = vpop.permute.xlu0 %3421
    %vm3424 = vcmask 523264
    %v3426 = vsel %vm3424, %v3395, 0
    %v3429 = vsel %vm3424, %v3399, 0
    %v3432 = vsel %vm3424, %v3403, 0
    %v3435 = vsel %vm3424, %v3407, 0
    %v3437 = vand.u32 %v3311, 4294901760
    %3438 = vmatpush.msra.mxu0 %v3437
    %v3439 = vand.u32 %v3310, 4294901760
    %3440 = vmatpush.msra.mxu0 %v3439
    %v3441 = vand.u32 %v3309, 4294901760
    %3442 = vmatpush.msra.mxu0 %v3441
    %v3443 = vand.u32 %v3308, 4294901760
    %3444 = vmatpush.msra.mxu0 %v3443
    %v3445 = vand.u32 %v3303, 4294901760
    %3446 = vmatpush.msra.mxu0 %v3445
    %v3447 = vand.u32 %v3302, 4294901760
    %3448 = vmatpush.msra.mxu0 %v3447
    %v3449 = vand.u32 %v3301, 4294901760
    %3450 = vmatpush.msra.mxu0 %v3449
    %v3451 = vand.u32 %v3300, 4294901760
    %3452 = vmatpush.msra.mxu0 %v3451
    %v3453 = vand.u32 %v3295, 4294901760
    %3454 = vmatpush.msra.mxu0 %v3453
    %v3455 = vand.u32 %v3294, 4294901760
    %3456 = vmatpush.msra.mxu0 %v3455
    %v3457 = vand.u32 %v3293, 4294901760
    %3458 = vmatpush.msra.mxu0 %v3457
    %v3459 = vand.u32 %v3292, 4294901760
    %3460 = vmatpush.msra.mxu0 %v3459
    %v3461 = vand.u32 %v3287, 4294901760
    %3462 = vmatpush.msra.mxu0 %v3461
    %v3463 = vand.u32 %v3286, 4294901760
    %3464 = vmatpush.msra.mxu0 %v3463
    %v3465 = vand.u32 %v3285, 4294901760
    %3466 = vmatpush.msra.mxu0 %v3465
    %v3467 = vand.u32 %v3284, 4294901760
    %3468 = vmatpush.msra.mxu0 %v3467
    %v3469 = vand.u32 %v3392, 4294901760
    %v3470 = vsub.f32 %v3392, %v3469
    %v3471 = vand.u32 %v3470, 4294901760
    %v3472 = vsub.f32 %v3470, %v3471
    %v3473 = vand.u32 %v3472, 4294901760
    %3474 = vmatmul.f32.gmra.mxu0 %v3473
    %v3475 = vpop.f32.mrf.mxu0
    %v3476 = vadd.f32 %v3410, %v3475
    %v3477 = vand.u32 %v3396, 4294901760
    %v3478 = vsub.f32 %v3396, %v3477
    %v3479 = vand.u32 %v3478, 4294901760
    %v3480 = vsub.f32 %v3478, %v3479
    %v3481 = vand.u32 %v3480, 4294901760
    %3482 = vmatmul.f32.gmra.mxu0 %v3481
    %v3483 = vpop.f32.mrf.mxu0
    %v3484 = vadd.f32 %v3414, %v3483
    %v3485 = vand.u32 %v3400, 4294901760
    %v3486 = vsub.f32 %v3400, %v3485
    %v3487 = vand.u32 %v3486, 4294901760
    %v3488 = vsub.f32 %v3486, %v3487
    %v3489 = vand.u32 %v3488, 4294901760
    %3490 = vmatmul.f32.gmra.mxu0 %v3489
    %v3491 = vpop.f32.mrf.mxu0
    %v3492 = vadd.f32 %v3418, %v3491
    %v3493 = vand.u32 %v3404, 4294901760
    %v3494 = vsub.f32 %v3404, %v3493
    %v3495 = vand.u32 %v3494, 4294901760
    %v3496 = vsub.f32 %v3494, %v3495
    %v3497 = vand.u32 %v3496, 4294901760
    %3498 = vmatmul.f32.gmra.mxu0 %v3497
    %v3499 = vpop.f32.mrf.mxu0
    %v3500 = vadd.f32 %v3422, %v3499
    %3501 = vdwg.mxu0
    %v3502 = vand.u32 %v3311, 4294901760
    %v3503 = vsub.f32 %v3311, %v3502
    %v3504 = vand.u32 %v3503, 4294901760
    %v3505 = vsub.f32 %v3503, %v3504
    %v3506 = vand.u32 %v3505, 4294901760
    %3507 = vmatpush.msra.mxu0 %v3506
    %v3508 = vand.u32 %v3310, 4294901760
    %v3509 = vsub.f32 %v3310, %v3508
    %v3510 = vand.u32 %v3509, 4294901760
    %v3511 = vsub.f32 %v3509, %v3510
    %v3512 = vand.u32 %v3511, 4294901760
    %3513 = vmatpush.msra.mxu0 %v3512
    %v3514 = vand.u32 %v3309, 4294901760
    %v3515 = vsub.f32 %v3309, %v3514
    %v3516 = vand.u32 %v3515, 4294901760
    %v3517 = vsub.f32 %v3515, %v3516
    %v3518 = vand.u32 %v3517, 4294901760
    %3519 = vmatpush.msra.mxu0 %v3518
    %v3520 = vand.u32 %v3308, 4294901760
    %v3521 = vsub.f32 %v3308, %v3520
    %v3522 = vand.u32 %v3521, 4294901760
    %v3523 = vsub.f32 %v3521, %v3522
    %v3524 = vand.u32 %v3523, 4294901760
    %3525 = vmatpush.msra.mxu0 %v3524
    %v3526 = vand.u32 %v3303, 4294901760
    %v3527 = vsub.f32 %v3303, %v3526
    %v3528 = vand.u32 %v3527, 4294901760
    %v3529 = vsub.f32 %v3527, %v3528
    %v3530 = vand.u32 %v3529, 4294901760
    %3531 = vmatpush.msra.mxu0 %v3530
    %v3532 = vand.u32 %v3302, 4294901760
    %v3533 = vsub.f32 %v3302, %v3532
    %v3534 = vand.u32 %v3533, 4294901760
    %v3535 = vsub.f32 %v3533, %v3534
    %v3536 = vand.u32 %v3535, 4294901760
    %3537 = vmatpush.msra.mxu0 %v3536
    %v3538 = vand.u32 %v3301, 4294901760
    %v3539 = vsub.f32 %v3301, %v3538
    %v3540 = vand.u32 %v3539, 4294901760
    %v3541 = vsub.f32 %v3539, %v3540
    %v3542 = vand.u32 %v3541, 4294901760
    %3543 = vmatpush.msra.mxu0 %v3542
    %v3544 = vand.u32 %v3300, 4294901760
    %v3545 = vsub.f32 %v3300, %v3544
    %v3546 = vand.u32 %v3545, 4294901760
    %v3547 = vsub.f32 %v3545, %v3546
    %v3548 = vand.u32 %v3547, 4294901760
    %3549 = vmatpush.msra.mxu0 %v3548
    %v3550 = vand.u32 %v3295, 4294901760
    %v3551 = vsub.f32 %v3295, %v3550
    %v3552 = vand.u32 %v3551, 4294901760
    %v3553 = vsub.f32 %v3551, %v3552
    %v3554 = vand.u32 %v3553, 4294901760
    %3555 = vmatpush.msra.mxu0 %v3554
    %v3556 = vand.u32 %v3294, 4294901760
    %v3557 = vsub.f32 %v3294, %v3556
    %v3558 = vand.u32 %v3557, 4294901760
    %v3559 = vsub.f32 %v3557, %v3558
    %v3560 = vand.u32 %v3559, 4294901760
    %3561 = vmatpush.msra.mxu0 %v3560
    %v3562 = vand.u32 %v3293, 4294901760
    %v3563 = vsub.f32 %v3293, %v3562
    %v3564 = vand.u32 %v3563, 4294901760
    %v3565 = vsub.f32 %v3563, %v3564
    %v3566 = vand.u32 %v3565, 4294901760
    %3567 = vmatpush.msra.mxu0 %v3566
    %v3568 = vand.u32 %v3292, 4294901760
    %v3569 = vsub.f32 %v3292, %v3568
    %v3570 = vand.u32 %v3569, 4294901760
    %v3571 = vsub.f32 %v3569, %v3570
    %v3572 = vand.u32 %v3571, 4294901760
    %3573 = vmatpush.msra.mxu0 %v3572
    %v3574 = vand.u32 %v3287, 4294901760
    %v3575 = vsub.f32 %v3287, %v3574
    %v3576 = vand.u32 %v3575, 4294901760
    %v3577 = vsub.f32 %v3575, %v3576
    %v3578 = vand.u32 %v3577, 4294901760
    %3579 = vmatpush.msra.mxu0 %v3578
    %v3580 = vand.u32 %v3286, 4294901760
    %v3581 = vsub.f32 %v3286, %v3580
    %v3582 = vand.u32 %v3581, 4294901760
    %v3583 = vsub.f32 %v3581, %v3582
    %v3584 = vand.u32 %v3583, 4294901760
    %3585 = vmatpush.msra.mxu0 %v3584
    %v3586 = vand.u32 %v3285, 4294901760
    %v3587 = vsub.f32 %v3285, %v3586
    %v3588 = vand.u32 %v3587, 4294901760
    %v3589 = vsub.f32 %v3587, %v3588
    %v3590 = vand.u32 %v3589, 4294901760
    %3591 = vmatpush.msra.mxu0 %v3590
    %v3592 = vand.u32 %v3284, 4294901760
    %v3593 = vsub.f32 %v3284, %v3592
    %v3594 = vand.u32 %v3593, 4294901760
    %v3595 = vsub.f32 %v3593, %v3594
    %v3596 = vand.u32 %v3595, 4294901760
    %3597 = vmatpush.msra.mxu0 %v3596
    %v3598 = vand.u32 %v3392, 4294901760
    %3599 = vmatmul.f32.gmra.mxu0 %v3598
    %v3600 = vpop.f32.mrf.mxu0
    %v3601 = vadd.f32 %v3476, %v3600
    %v3602 = vand.u32 %v3396, 4294901760
    %3603 = vmatmul.f32.gmra.mxu0 %v3602
    %v3604 = vpop.f32.mrf.mxu0
    %v3605 = vadd.f32 %v3484, %v3604
    %v3606 = vand.u32 %v3400, 4294901760
    %3607 = vmatmul.f32.gmra.mxu0 %v3606
    %v3608 = vpop.f32.mrf.mxu0
    %v3609 = vadd.f32 %v3492, %v3608
    %v3610 = vand.u32 %v3404, 4294901760
    %3611 = vmatmul.f32.gmra.mxu0 %v3610
    %v3612 = vpop.f32.mrf.mxu0
    %v3613 = vadd.f32 %v3500, %v3612
    %3614 = vdwg.mxu0
    %v3615 = vand.u32 %v3311, 4294901760
    %v3616 = vsub.f32 %v3311, %v3615
    %3617 = vmatpush.msra.mxu0 %v3616
    %v3618 = vand.u32 %v3310, 4294901760
    %v3619 = vsub.f32 %v3310, %v3618
    %3620 = vmatpush.msra.mxu0 %v3619
    %v3621 = vand.u32 %v3309, 4294901760
    %v3622 = vsub.f32 %v3309, %v3621
    %3623 = vmatpush.msra.mxu0 %v3622
    %v3624 = vand.u32 %v3308, 4294901760
    %v3625 = vsub.f32 %v3308, %v3624
    %3626 = vmatpush.msra.mxu0 %v3625
    %v3627 = vand.u32 %v3303, 4294901760
    %v3628 = vsub.f32 %v3303, %v3627
    %3629 = vmatpush.msra.mxu0 %v3628
    %v3630 = vand.u32 %v3302, 4294901760
    %v3631 = vsub.f32 %v3302, %v3630
    %3632 = vmatpush.msra.mxu0 %v3631
    %v3633 = vand.u32 %v3301, 4294901760
    %v3634 = vsub.f32 %v3301, %v3633
    %3635 = vmatpush.msra.mxu0 %v3634
    %v3636 = vand.u32 %v3300, 4294901760
    %v3637 = vsub.f32 %v3300, %v3636
    %3638 = vmatpush.msra.mxu0 %v3637
    %v3639 = vand.u32 %v3295, 4294901760
    %v3640 = vsub.f32 %v3295, %v3639
    %3641 = vmatpush.msra.mxu0 %v3640
    %v3642 = vand.u32 %v3294, 4294901760
    %v3643 = vsub.f32 %v3294, %v3642
    %3644 = vmatpush.msra.mxu0 %v3643
    %v3645 = vand.u32 %v3293, 4294901760
    %v3646 = vsub.f32 %v3293, %v3645
    %3647 = vmatpush.msra.mxu0 %v3646
    %v3648 = vand.u32 %v3292, 4294901760
    %v3649 = vsub.f32 %v3292, %v3648
    %3650 = vmatpush.msra.mxu0 %v3649
    %v3651 = vand.u32 %v3287, 4294901760
    %v3652 = vsub.f32 %v3287, %v3651
    %3653 = vmatpush.msra.mxu0 %v3652
    %v3654 = vand.u32 %v3286, 4294901760
    %v3655 = vsub.f32 %v3286, %v3654
    %3656 = vmatpush.msra.mxu0 %v3655
    %v3657 = vand.u32 %v3285, 4294901760
    %v3658 = vsub.f32 %v3285, %v3657
    %3659 = vmatpush.msra.mxu0 %v3658
    %v3660 = vand.u32 %v3284, 4294901760
    %v3661 = vsub.f32 %v3284, %v3660
    %3662 = vmatpush.msra.mxu0 %v3661
    %v3663 = vand.u32 %v3392, 4294901760
    %v3664 = vsub.f32 %v3392, %v3663
    %3665 = vmatmul.f32.gmra.mxu0 %v3664
    %v3666 = vpop.f32.mrf.mxu0
    %v3667 = vadd.f32 %v3601, %v3666
    %v3668 = vand.u32 %v3396, 4294901760
    %v3669 = vsub.f32 %v3396, %v3668
    %3670 = vmatmul.f32.gmra.mxu0 %v3669
    %v3671 = vpop.f32.mrf.mxu0
    %v3672 = vadd.f32 %v3605, %v3671
    %v3673 = vand.u32 %v3400, 4294901760
    %v3674 = vsub.f32 %v3400, %v3673
    %3675 = vmatmul.f32.gmra.mxu0 %v3674
    %v3676 = vpop.f32.mrf.mxu0
    %v3677 = vadd.f32 %v3609, %v3676
    %v3678 = vand.u32 %v3404, 4294901760
    %v3679 = vsub.f32 %v3404, %v3678
    %3680 = vmatmul.f32.gmra.mxu0 %v3679
    %v3681 = vpop.f32.mrf.mxu0
    %v3682 = vadd.f32 %v3613, %v3681
    %3683 = vdwg.mxu0
    %v3684 = vand.u32 %v3311, 4294901760
    %3685 = vmatpush.msra.mxu0 %v3684
    %v3686 = vand.u32 %v3310, 4294901760
    %3687 = vmatpush.msra.mxu0 %v3686
    %v3688 = vand.u32 %v3309, 4294901760
    %3689 = vmatpush.msra.mxu0 %v3688
    %v3690 = vand.u32 %v3308, 4294901760
    %3691 = vmatpush.msra.mxu0 %v3690
    %v3692 = vand.u32 %v3303, 4294901760
    %3693 = vmatpush.msra.mxu0 %v3692
    %v3694 = vand.u32 %v3302, 4294901760
    %3695 = vmatpush.msra.mxu0 %v3694
    %v3696 = vand.u32 %v3301, 4294901760
    %3697 = vmatpush.msra.mxu0 %v3696
    %v3698 = vand.u32 %v3300, 4294901760
    %3699 = vmatpush.msra.mxu0 %v3698
    %v3700 = vand.u32 %v3295, 4294901760
    %3701 = vmatpush.msra.mxu0 %v3700
    %v3702 = vand.u32 %v3294, 4294901760
    %3703 = vmatpush.msra.mxu0 %v3702
    %v3704 = vand.u32 %v3293, 4294901760
    %3705 = vmatpush.msra.mxu0 %v3704
    %v3706 = vand.u32 %v3292, 4294901760
    %3707 = vmatpush.msra.mxu0 %v3706
    %v3708 = vand.u32 %v3287, 4294901760
    %3709 = vmatpush.msra.mxu0 %v3708
    %v3710 = vand.u32 %v3286, 4294901760
    %3711 = vmatpush.msra.mxu0 %v3710
    %v3712 = vand.u32 %v3285, 4294901760
    %3713 = vmatpush.msra.mxu0 %v3712
    %v3714 = vand.u32 %v3284, 4294901760
    %3715 = vmatpush.msra.mxu0 %v3714
    %v3716 = vand.u32 %v3392, 4294901760
    %v3717 = vsub.f32 %v3392, %v3716
    %v3718 = vand.u32 %v3717, 4294901760
    %3719 = vmatmul.f32.gmra.mxu0 %v3718
    %v3720 = vpop.f32.mrf.mxu0
    %v3721 = vadd.f32 %v3667, %v3720
    %v3722 = vand.u32 %v3396, 4294901760
    %v3723 = vsub.f32 %v3396, %v3722
    %v3724 = vand.u32 %v3723, 4294901760
    %3725 = vmatmul.f32.gmra.mxu0 %v3724
    %v3726 = vpop.f32.mrf.mxu0
    %v3727 = vadd.f32 %v3672, %v3726
    %v3728 = vand.u32 %v3400, 4294901760
    %v3729 = vsub.f32 %v3400, %v3728
    %v3730 = vand.u32 %v3729, 4294901760
    %3731 = vmatmul.f32.gmra.mxu0 %v3730
    %v3732 = vpop.f32.mrf.mxu0
    %v3733 = vadd.f32 %v3677, %v3732
    %v3734 = vand.u32 %v3404, 4294901760
    %v3735 = vsub.f32 %v3404, %v3734
    %v3736 = vand.u32 %v3735, 4294901760
    %3737 = vmatmul.f32.gmra.mxu0 %v3736
    %v3738 = vpop.f32.mrf.mxu0
    %v3739 = vadd.f32 %v3682, %v3738
    %3740 = vdwg.mxu0
    %v3741 = vand.u32 %v3311, 4294901760
    %v3742 = vsub.f32 %v3311, %v3741
    %v3743 = vand.u32 %v3742, 4294901760
    %3744 = vmatpush.msra.mxu0 %v3743
    %v3745 = vand.u32 %v3310, 4294901760
    %v3746 = vsub.f32 %v3310, %v3745
    %v3747 = vand.u32 %v3746, 4294901760
    %3748 = vmatpush.msra.mxu0 %v3747
    %v3749 = vand.u32 %v3309, 4294901760
    %v3750 = vsub.f32 %v3309, %v3749
    %v3751 = vand.u32 %v3750, 4294901760
    %3752 = vmatpush.msra.mxu0 %v3751
    %v3753 = vand.u32 %v3308, 4294901760
    %v3754 = vsub.f32 %v3308, %v3753
    %v3755 = vand.u32 %v3754, 4294901760
    %3756 = vmatpush.msra.mxu0 %v3755
    %v3757 = vand.u32 %v3303, 4294901760
    %v3758 = vsub.f32 %v3303, %v3757
    %v3759 = vand.u32 %v3758, 4294901760
    %3760 = vmatpush.msra.mxu0 %v3759
    %v3761 = vand.u32 %v3302, 4294901760
    %v3762 = vsub.f32 %v3302, %v3761
    %v3763 = vand.u32 %v3762, 4294901760
    %3764 = vmatpush.msra.mxu0 %v3763
    %v3765 = vand.u32 %v3301, 4294901760
    %v3766 = vsub.f32 %v3301, %v3765
    %v3767 = vand.u32 %v3766, 4294901760
    %3768 = vmatpush.msra.mxu0 %v3767
    %v3769 = vand.u32 %v3300, 4294901760
    %v3770 = vsub.f32 %v3300, %v3769
    %v3771 = vand.u32 %v3770, 4294901760
    %3772 = vmatpush.msra.mxu0 %v3771
    %v3773 = vand.u32 %v3295, 4294901760
    %v3774 = vsub.f32 %v3295, %v3773
    %v3775 = vand.u32 %v3774, 4294901760
    %3776 = vmatpush.msra.mxu0 %v3775
    %v3777 = vand.u32 %v3294, 4294901760
    %v3778 = vsub.f32 %v3294, %v3777
    %v3779 = vand.u32 %v3778, 4294901760
    %3780 = vmatpush.msra.mxu0 %v3779
    %v3781 = vand.u32 %v3293, 4294901760
    %v3782 = vsub.f32 %v3293, %v3781
    %v3783 = vand.u32 %v3782, 4294901760
    %3784 = vmatpush.msra.mxu0 %v3783
    %v3785 = vand.u32 %v3292, 4294901760
    %v3786 = vsub.f32 %v3292, %v3785
    %v3787 = vand.u32 %v3786, 4294901760
    %3788 = vmatpush.msra.mxu0 %v3787
    %v3789 = vand.u32 %v3287, 4294901760
    %v3790 = vsub.f32 %v3287, %v3789
    %v3791 = vand.u32 %v3790, 4294901760
    %3792 = vmatpush.msra.mxu0 %v3791
    %v3793 = vand.u32 %v3286, 4294901760
    %v3794 = vsub.f32 %v3286, %v3793
    %v3795 = vand.u32 %v3794, 4294901760
    %3796 = vmatpush.msra.mxu0 %v3795
    %v3797 = vand.u32 %v3285, 4294901760
    %v3798 = vsub.f32 %v3285, %v3797
    %v3799 = vand.u32 %v3798, 4294901760
    %3800 = vmatpush.msra.mxu0 %v3799
    %v3801 = vand.u32 %v3284, 4294901760
    %v3802 = vsub.f32 %v3284, %v3801
    %v3803 = vand.u32 %v3802, 4294901760
    %3804 = vmatpush.msra.mxu0 %v3803
    %v3805 = vand.u32 %v3392, 4294901760
    %3806 = vmatmul.f32.gmra.mxu0 %v3805
    %v3807 = vpop.f32.mrf.mxu0
    %v3808 = vadd.f32 %v3721, %v3807
    %v3809 = vand.u32 %v3396, 4294901760
    %3810 = vmatmul.f32.gmra.mxu0 %v3809
    %v3811 = vpop.f32.mrf.mxu0
    %v3812 = vadd.f32 %v3727, %v3811
    %v3813 = vand.u32 %v3400, 4294901760
    %3814 = vmatmul.f32.gmra.mxu0 %v3813
    %v3815 = vpop.f32.mrf.mxu0
    %v3816 = vadd.f32 %v3733, %v3815
    %v3817 = vand.u32 %v3404, 4294901760
    %3818 = vmatmul.f32.gmra.mxu0 %v3817
    %v3819 = vpop.f32.mrf.mxu0
    %v3820 = vadd.f32 %v3739, %v3819
    %3821 = vdwg.mxu0
    %v3822 = vand.u32 %v3311, 4294901760
    %3823 = vmatpush.msra.mxu0 %v3822
    %v3824 = vand.u32 %v3310, 4294901760
    %3825 = vmatpush.msra.mxu0 %v3824
    %v3826 = vand.u32 %v3309, 4294901760
    %3827 = vmatpush.msra.mxu0 %v3826
    %v3828 = vand.u32 %v3308, 4294901760
    %3829 = vmatpush.msra.mxu0 %v3828
    %v3830 = vand.u32 %v3303, 4294901760
    %3831 = vmatpush.msra.mxu0 %v3830
    %v3832 = vand.u32 %v3302, 4294901760
    %3833 = vmatpush.msra.mxu0 %v3832
    %v3834 = vand.u32 %v3301, 4294901760
    %3835 = vmatpush.msra.mxu0 %v3834
    %v3836 = vand.u32 %v3300, 4294901760
    %3837 = vmatpush.msra.mxu0 %v3836
    %v3838 = vand.u32 %v3295, 4294901760
    %3839 = vmatpush.msra.mxu0 %v3838
    %v3840 = vand.u32 %v3294, 4294901760
    %3841 = vmatpush.msra.mxu0 %v3840
    %v3842 = vand.u32 %v3293, 4294901760
    %3843 = vmatpush.msra.mxu0 %v3842
    %v3844 = vand.u32 %v3292, 4294901760
    %3845 = vmatpush.msra.mxu0 %v3844
    %v3846 = vand.u32 %v3287, 4294901760
    %3847 = vmatpush.msra.mxu0 %v3846
    %v3848 = vand.u32 %v3286, 4294901760
    %3849 = vmatpush.msra.mxu0 %v3848
    %v3850 = vand.u32 %v3285, 4294901760
    %3851 = vmatpush.msra.mxu0 %v3850
    %v3852 = vand.u32 %v3284, 4294901760
    %3853 = vmatpush.msra.mxu0 %v3852
    %v3854 = vand.u32 %v3392, 4294901760
    %3855 = vmatmul.f32.gmra.mxu0 %v3854
    %v3856 = vpop.f32.mrf.mxu0
    %v3857 = vadd.f32 %v3808, %v3856
    %v3858 = vand.u32 %v3396, 4294901760
    %3859 = vmatmul.f32.gmra.mxu0 %v3858
    %v3860 = vpop.f32.mrf.mxu0
    %v3861 = vadd.f32 %v3812, %v3860
    %v3862 = vand.u32 %v3400, 4294901760
    %3863 = vmatmul.f32.gmra.mxu0 %v3862
    %v3864 = vpop.f32.mrf.mxu0
    %v3865 = vadd.f32 %v3816, %v3864
    %v3866 = vand.u32 %v3404, 4294901760
    %3867 = vmatmul.f32.gmra.mxu0 %v3866
    %v3868 = vpop.f32.mrf.mxu0
    %v3869 = vadd.f32 %v3820, %v3868
    %3870 = vdwg.mxu0
    %v3871 = vand.u32 %v3343, 4294901760
    %3872 = vmatpush.msra.mxu0 %v3871
    %v3873 = vand.u32 %v3342, 4294901760
    %3874 = vmatpush.msra.mxu0 %v3873
    %v3875 = vand.u32 %v3341, 4294901760
    %3876 = vmatpush.msra.mxu0 %v3875
    %v3877 = vand.u32 %v3340, 4294901760
    %3878 = vmatpush.msra.mxu0 %v3877
    %v3879 = vand.u32 %v3335, 4294901760
    %3880 = vmatpush.msra.mxu0 %v3879
    %v3881 = vand.u32 %v3334, 4294901760
    %3882 = vmatpush.msra.mxu0 %v3881
    %v3883 = vand.u32 %v3333, 4294901760
    %3884 = vmatpush.msra.mxu0 %v3883
    %v3885 = vand.u32 %v3332, 4294901760
    %3886 = vmatpush.msra.mxu0 %v3885
    %v3887 = vand.u32 %v3327, 4294901760
    %3888 = vmatpush.msra.mxu0 %v3887
    %v3889 = vand.u32 %v3326, 4294901760
    %3890 = vmatpush.msra.mxu0 %v3889
    %v3891 = vand.u32 %v3325, 4294901760
    %3892 = vmatpush.msra.mxu0 %v3891
    %v3893 = vand.u32 %v3324, 4294901760
    %3894 = vmatpush.msra.mxu0 %v3893
    %v3895 = vand.u32 %v3319, 4294901760
    %3896 = vmatpush.msra.mxu0 %v3895
    %v3897 = vand.u32 %v3318, 4294901760
    %3898 = vmatpush.msra.mxu0 %v3897
    %v3899 = vand.u32 %v3317, 4294901760
    %3900 = vmatpush.msra.mxu0 %v3899
    %v3901 = vand.u32 %v3316, 4294901760
    %3902 = vmatpush.msra.mxu0 %v3901
    %v3903 = vand.u32 %v3393, 4294901760
    %v3904 = vsub.f32 %v3393, %v3903
    %v3905 = vand.u32 %v3904, 4294901760
    %v3906 = vsub.f32 %v3904, %v3905
    %v3907 = vand.u32 %v3906, 4294901760
    %3908 = vmatmul.f32.gmra.mxu0 %v3907
    %v3909 = vpop.f32.mrf.mxu0
    %v3910 = vadd.f32 %v3857, %v3909
    %v3911 = vand.u32 %v3397, 4294901760
    %v3912 = vsub.f32 %v3397, %v3911
    %v3913 = vand.u32 %v3912, 4294901760
    %v3914 = vsub.f32 %v3912, %v3913
    %v3915 = vand.u32 %v3914, 4294901760
    %3916 = vmatmul.f32.gmra.mxu0 %v3915
    %v3917 = vpop.f32.mrf.mxu0
    %v3918 = vadd.f32 %v3861, %v3917
    %v3919 = vand.u32 %v3401, 4294901760
    %v3920 = vsub.f32 %v3401, %v3919
    %v3921 = vand.u32 %v3920, 4294901760
    %v3922 = vsub.f32 %v3920, %v3921
    %v3923 = vand.u32 %v3922, 4294901760
    %3924 = vmatmul.f32.gmra.mxu0 %v3923
    %v3925 = vpop.f32.mrf.mxu0
    %v3926 = vadd.f32 %v3865, %v3925
    %v3927 = vand.u32 %v3405, 4294901760
    %v3928 = vsub.f32 %v3405, %v3927
    %v3929 = vand.u32 %v3928, 4294901760
    %v3930 = vsub.f32 %v3928, %v3929
    %v3931 = vand.u32 %v3930, 4294901760
    %3932 = vmatmul.f32.gmra.mxu0 %v3931
    %v3933 = vpop.f32.mrf.mxu0
    %v3934 = vadd.f32 %v3869, %v3933
    %3935 = vdwg.mxu0
    %v3936 = vand.u32 %v3343, 4294901760
    %v3937 = vsub.f32 %v3343, %v3936
    %v3938 = vand.u32 %v3937, 4294901760
    %v3939 = vsub.f32 %v3937, %v3938
    %v3940 = vand.u32 %v3939, 4294901760
    %3941 = vmatpush.msra.mxu0 %v3940
    %v3942 = vand.u32 %v3342, 4294901760
    %v3943 = vsub.f32 %v3342, %v3942
    %v3944 = vand.u32 %v3943, 4294901760
    %v3945 = vsub.f32 %v3943, %v3944
    %v3946 = vand.u32 %v3945, 4294901760
    %3947 = vmatpush.msra.mxu0 %v3946
    %v3948 = vand.u32 %v3341, 4294901760
    %v3949 = vsub.f32 %v3341, %v3948
    %v3950 = vand.u32 %v3949, 4294901760
    %v3951 = vsub.f32 %v3949, %v3950
    %v3952 = vand.u32 %v3951, 4294901760
    %3953 = vmatpush.msra.mxu0 %v3952
    %v3954 = vand.u32 %v3340, 4294901760
    %v3955 = vsub.f32 %v3340, %v3954
    %v3956 = vand.u32 %v3955, 4294901760
    %v3957 = vsub.f32 %v3955, %v3956
    %v3958 = vand.u32 %v3957, 4294901760
    %3959 = vmatpush.msra.mxu0 %v3958
    %v3960 = vand.u32 %v3335, 4294901760
    %v3961 = vsub.f32 %v3335, %v3960
    %v3962 = vand.u32 %v3961, 4294901760
    %v3963 = vsub.f32 %v3961, %v3962
    %v3964 = vand.u32 %v3963, 4294901760
    %3965 = vmatpush.msra.mxu0 %v3964
    %v3966 = vand.u32 %v3334, 4294901760
    %v3967 = vsub.f32 %v3334, %v3966
    %v3968 = vand.u32 %v3967, 4294901760
    %v3969 = vsub.f32 %v3967, %v3968
    %v3970 = vand.u32 %v3969, 4294901760
    %3971 = vmatpush.msra.mxu0 %v3970
    %v3972 = vand.u32 %v3333, 4294901760
    %v3973 = vsub.f32 %v3333, %v3972
    %v3974 = vand.u32 %v3973, 4294901760
    %v3975 = vsub.f32 %v3973, %v3974
    %v3976 = vand.u32 %v3975, 4294901760
    %3977 = vmatpush.msra.mxu0 %v3976
    %v3978 = vand.u32 %v3332, 4294901760
    %v3979 = vsub.f32 %v3332, %v3978
    %v3980 = vand.u32 %v3979, 4294901760
    %v3981 = vsub.f32 %v3979, %v3980
    %v3982 = vand.u32 %v3981, 4294901760
    %3983 = vmatpush.msra.mxu0 %v3982
    %v3984 = vand.u32 %v3327, 4294901760
    %v3985 = vsub.f32 %v3327, %v3984
    %v3986 = vand.u32 %v3985, 4294901760
    %v3987 = vsub.f32 %v3985, %v3986
    %v3988 = vand.u32 %v3987, 4294901760
    %3989 = vmatpush.msra.mxu0 %v3988
    %v3990 = vand.u32 %v3326, 4294901760
    %v3991 = vsub.f32 %v3326, %v3990
    %v3992 = vand.u32 %v3991, 4294901760
    %v3993 = vsub.f32 %v3991, %v3992
    %v3994 = vand.u32 %v3993, 4294901760
    %3995 = vmatpush.msra.mxu0 %v3994
    %v3996 = vand.u32 %v3325, 4294901760
    %v3997 = vsub.f32 %v3325, %v3996
    %v3998 = vand.u32 %v3997, 4294901760
    %v3999 = vsub.f32 %v3997, %v3998
    %v4000 = vand.u32 %v3999, 4294901760
    %4001 = vmatpush.msra.mxu0 %v4000
    %v4002 = vand.u32 %v3324, 4294901760
    %v4003 = vsub.f32 %v3324, %v4002
    %v4004 = vand.u32 %v4003, 4294901760
    %v4005 = vsub.f32 %v4003, %v4004
    %v4006 = vand.u32 %v4005, 4294901760
    %4007 = vmatpush.msra.mxu0 %v4006
    %v4008 = vand.u32 %v3319, 4294901760
    %v4009 = vsub.f32 %v3319, %v4008
    %v4010 = vand.u32 %v4009, 4294901760
    %v4011 = vsub.f32 %v4009, %v4010
    %v4012 = vand.u32 %v4011, 4294901760
    %4013 = vmatpush.msra.mxu0 %v4012
    %v4014 = vand.u32 %v3318, 4294901760
    %v4015 = vsub.f32 %v3318, %v4014
    %v4016 = vand.u32 %v4015, 4294901760
    %v4017 = vsub.f32 %v4015, %v4016
    %v4018 = vand.u32 %v4017, 4294901760
    %4019 = vmatpush.msra.mxu0 %v4018
    %v4020 = vand.u32 %v3317, 4294901760
    %v4021 = vsub.f32 %v3317, %v4020
    %v4022 = vand.u32 %v4021, 4294901760
    %v4023 = vsub.f32 %v4021, %v4022
    %v4024 = vand.u32 %v4023, 4294901760
    %4025 = vmatpush.msra.mxu0 %v4024
    %v4026 = vand.u32 %v3316, 4294901760
    %v4027 = vsub.f32 %v3316, %v4026
    %v4028 = vand.u32 %v4027, 4294901760
    %v4029 = vsub.f32 %v4027, %v4028
    %v4030 = vand.u32 %v4029, 4294901760
    %4031 = vmatpush.msra.mxu0 %v4030
    %v4032 = vand.u32 %v3393, 4294901760
    %4033 = vmatmul.f32.gmra.mxu0 %v4032
    %v4034 = vpop.f32.mrf.mxu0
    %v4035 = vadd.f32 %v3910, %v4034
    %v4036 = vand.u32 %v3397, 4294901760
    %4037 = vmatmul.f32.gmra.mxu0 %v4036
    %v4038 = vpop.f32.mrf.mxu0
    %v4039 = vadd.f32 %v3918, %v4038
    %v4040 = vand.u32 %v3401, 4294901760
    %4041 = vmatmul.f32.gmra.mxu0 %v4040
    %v4042 = vpop.f32.mrf.mxu0
    %v4043 = vadd.f32 %v3926, %v4042
    %v4044 = vand.u32 %v3405, 4294901760
    %4045 = vmatmul.f32.gmra.mxu0 %v4044
    %v4046 = vpop.f32.mrf.mxu0
    %v4047 = vadd.f32 %v3934, %v4046
    %4048 = vdwg.mxu0
    %v4049 = vand.u32 %v3343, 4294901760
    %v4050 = vsub.f32 %v3343, %v4049
    %4051 = vmatpush.msra.mxu0 %v4050
    %v4052 = vand.u32 %v3342, 4294901760
    %v4053 = vsub.f32 %v3342, %v4052
    %4054 = vmatpush.msra.mxu0 %v4053
    %v4055 = vand.u32 %v3341, 4294901760
    %v4056 = vsub.f32 %v3341, %v4055
    %4057 = vmatpush.msra.mxu0 %v4056
    %v4058 = vand.u32 %v3340, 4294901760
    %v4059 = vsub.f32 %v3340, %v4058
    %4060 = vmatpush.msra.mxu0 %v4059
    %v4061 = vand.u32 %v3335, 4294901760
    %v4062 = vsub.f32 %v3335, %v4061
    %4063 = vmatpush.msra.mxu0 %v4062
    %v4064 = vand.u32 %v3334, 4294901760
    %v4065 = vsub.f32 %v3334, %v4064
    %4066 = vmatpush.msra.mxu0 %v4065
    %v4067 = vand.u32 %v3333, 4294901760
    %v4068 = vsub.f32 %v3333, %v4067
    %4069 = vmatpush.msra.mxu0 %v4068
    %v4070 = vand.u32 %v3332, 4294901760
    %v4071 = vsub.f32 %v3332, %v4070
    %4072 = vmatpush.msra.mxu0 %v4071
    %v4073 = vand.u32 %v3327, 4294901760
    %v4074 = vsub.f32 %v3327, %v4073
    %4075 = vmatpush.msra.mxu0 %v4074
    %v4076 = vand.u32 %v3326, 4294901760
    %v4077 = vsub.f32 %v3326, %v4076
    %4078 = vmatpush.msra.mxu0 %v4077
    %v4079 = vand.u32 %v3325, 4294901760
    %v4080 = vsub.f32 %v3325, %v4079
    %4081 = vmatpush.msra.mxu0 %v4080
    %v4082 = vand.u32 %v3324, 4294901760
    %v4083 = vsub.f32 %v3324, %v4082
    %4084 = vmatpush.msra.mxu0 %v4083
    %v4085 = vand.u32 %v3319, 4294901760
    %v4086 = vsub.f32 %v3319, %v4085
    %4087 = vmatpush.msra.mxu0 %v4086
    %v4088 = vand.u32 %v3318, 4294901760
    %v4089 = vsub.f32 %v3318, %v4088
    %4090 = vmatpush.msra.mxu0 %v4089
    %v4091 = vand.u32 %v3317, 4294901760
    %v4092 = vsub.f32 %v3317, %v4091
    %4093 = vmatpush.msra.mxu0 %v4092
    %v4094 = vand.u32 %v3316, 4294901760
    %v4095 = vsub.f32 %v3316, %v4094
    %4096 = vmatpush.msra.mxu0 %v4095
    %v4097 = vand.u32 %v3393, 4294901760
    %v4098 = vsub.f32 %v3393, %v4097
    %4099 = vmatmul.f32.gmra.mxu0 %v4098
    %v4100 = vpop.f32.mrf.mxu0
    %v4101 = vadd.f32 %v4035, %v4100
    %v4102 = vand.u32 %v3397, 4294901760
    %v4103 = vsub.f32 %v3397, %v4102
    %4104 = vmatmul.f32.gmra.mxu0 %v4103
    %v4105 = vpop.f32.mrf.mxu0
    %v4106 = vadd.f32 %v4039, %v4105
    %v4107 = vand.u32 %v3401, 4294901760
    %v4108 = vsub.f32 %v3401, %v4107
    %4109 = vmatmul.f32.gmra.mxu0 %v4108
    %v4110 = vpop.f32.mrf.mxu0
    %v4111 = vadd.f32 %v4043, %v4110
    %v4112 = vand.u32 %v3405, 4294901760
    %v4113 = vsub.f32 %v3405, %v4112
    %4114 = vmatmul.f32.gmra.mxu0 %v4113
    %v4115 = vpop.f32.mrf.mxu0
    %v4116 = vadd.f32 %v4047, %v4115
    %4117 = vdwg.mxu0
    %v4118 = vand.u32 %v3343, 4294901760
    %4119 = vmatpush.msra.mxu0 %v4118
    %v4120 = vand.u32 %v3342, 4294901760
    %4121 = vmatpush.msra.mxu0 %v4120
    %v4122 = vand.u32 %v3341, 4294901760
    %4123 = vmatpush.msra.mxu0 %v4122
    %v4124 = vand.u32 %v3340, 4294901760
    %4125 = vmatpush.msra.mxu0 %v4124
    %v4126 = vand.u32 %v3335, 4294901760
    %4127 = vmatpush.msra.mxu0 %v4126
    %v4128 = vand.u32 %v3334, 4294901760
    %4129 = vmatpush.msra.mxu0 %v4128
    %v4130 = vand.u32 %v3333, 4294901760
    %4131 = vmatpush.msra.mxu0 %v4130
    %v4132 = vand.u32 %v3332, 4294901760
    %4133 = vmatpush.msra.mxu0 %v4132
    %v4134 = vand.u32 %v3327, 4294901760
    %4135 = vmatpush.msra.mxu0 %v4134
    %v4136 = vand.u32 %v3326, 4294901760
    %4137 = vmatpush.msra.mxu0 %v4136
    %v4138 = vand.u32 %v3325, 4294901760
    %4139 = vmatpush.msra.mxu0 %v4138
    %v4140 = vand.u32 %v3324, 4294901760
    %4141 = vmatpush.msra.mxu0 %v4140
    %v4142 = vand.u32 %v3319, 4294901760
    %4143 = vmatpush.msra.mxu0 %v4142
    %v4144 = vand.u32 %v3318, 4294901760
    %4145 = vmatpush.msra.mxu0 %v4144
    %v4146 = vand.u32 %v3317, 4294901760
    %4147 = vmatpush.msra.mxu0 %v4146
    %v4148 = vand.u32 %v3316, 4294901760
    %4149 = vmatpush.msra.mxu0 %v4148
    %v4150 = vand.u32 %v3393, 4294901760
    %v4151 = vsub.f32 %v3393, %v4150
    %v4152 = vand.u32 %v4151, 4294901760
    %4153 = vmatmul.f32.gmra.mxu0 %v4152
    %v4154 = vpop.f32.mrf.mxu0
    %v4155 = vadd.f32 %v4101, %v4154
    %v4156 = vand.u32 %v3397, 4294901760
    %v4157 = vsub.f32 %v3397, %v4156
    %v4158 = vand.u32 %v4157, 4294901760
    %4159 = vmatmul.f32.gmra.mxu0 %v4158
    %v4160 = vpop.f32.mrf.mxu0
    %v4161 = vadd.f32 %v4106, %v4160
    %v4162 = vand.u32 %v3401, 4294901760
    %v4163 = vsub.f32 %v3401, %v4162
    %v4164 = vand.u32 %v4163, 4294901760
    %4165 = vmatmul.f32.gmra.mxu0 %v4164
    %v4166 = vpop.f32.mrf.mxu0
    %v4167 = vadd.f32 %v4111, %v4166
    %v4168 = vand.u32 %v3405, 4294901760
    %v4169 = vsub.f32 %v3405, %v4168
    %v4170 = vand.u32 %v4169, 4294901760
    %4171 = vmatmul.f32.gmra.mxu0 %v4170
    %v4172 = vpop.f32.mrf.mxu0
    %v4173 = vadd.f32 %v4116, %v4172
    %4174 = vdwg.mxu0
    %v4175 = vand.u32 %v3343, 4294901760
    %v4176 = vsub.f32 %v3343, %v4175
    %v4177 = vand.u32 %v4176, 4294901760
    %4178 = vmatpush.msra.mxu0 %v4177
    %v4179 = vand.u32 %v3342, 4294901760
    %v4180 = vsub.f32 %v3342, %v4179
    %v4181 = vand.u32 %v4180, 4294901760
    %4182 = vmatpush.msra.mxu0 %v4181
    %v4183 = vand.u32 %v3341, 4294901760
    %v4184 = vsub.f32 %v3341, %v4183
    %v4185 = vand.u32 %v4184, 4294901760
    %4186 = vmatpush.msra.mxu0 %v4185
    %v4187 = vand.u32 %v3340, 4294901760
    %v4188 = vsub.f32 %v3340, %v4187
    %v4189 = vand.u32 %v4188, 4294901760
    %4190 = vmatpush.msra.mxu0 %v4189
    %v4191 = vand.u32 %v3335, 4294901760
    %v4192 = vsub.f32 %v3335, %v4191
    %v4193 = vand.u32 %v4192, 4294901760
    %4194 = vmatpush.msra.mxu0 %v4193
    %v4195 = vand.u32 %v3334, 4294901760
    %v4196 = vsub.f32 %v3334, %v4195
    %v4197 = vand.u32 %v4196, 4294901760
    %4198 = vmatpush.msra.mxu0 %v4197
    %v4199 = vand.u32 %v3333, 4294901760
    %v4200 = vsub.f32 %v3333, %v4199
    %v4201 = vand.u32 %v4200, 4294901760
    %4202 = vmatpush.msra.mxu0 %v4201
    %v4203 = vand.u32 %v3332, 4294901760
    %v4204 = vsub.f32 %v3332, %v4203
    %v4205 = vand.u32 %v4204, 4294901760
    %4206 = vmatpush.msra.mxu0 %v4205
    %v4207 = vand.u32 %v3327, 4294901760
    %v4208 = vsub.f32 %v3327, %v4207
    %v4209 = vand.u32 %v4208, 4294901760
    %4210 = vmatpush.msra.mxu0 %v4209
    %v4211 = vand.u32 %v3326, 4294901760
    %v4212 = vsub.f32 %v3326, %v4211
    %v4213 = vand.u32 %v4212, 4294901760
    %4214 = vmatpush.msra.mxu0 %v4213
    %v4215 = vand.u32 %v3325, 4294901760
    %v4216 = vsub.f32 %v3325, %v4215
    %v4217 = vand.u32 %v4216, 4294901760
    %4218 = vmatpush.msra.mxu0 %v4217
    %v4219 = vand.u32 %v3324, 4294901760
    %v4220 = vsub.f32 %v3324, %v4219
    %v4221 = vand.u32 %v4220, 4294901760
    %4222 = vmatpush.msra.mxu0 %v4221
    %v4223 = vand.u32 %v3319, 4294901760
    %v4224 = vsub.f32 %v3319, %v4223
    %v4225 = vand.u32 %v4224, 4294901760
    %4226 = vmatpush.msra.mxu0 %v4225
    %v4227 = vand.u32 %v3318, 4294901760
    %v4228 = vsub.f32 %v3318, %v4227
    %v4229 = vand.u32 %v4228, 4294901760
    %4230 = vmatpush.msra.mxu0 %v4229
    %v4231 = vand.u32 %v3317, 4294901760
    %v4232 = vsub.f32 %v3317, %v4231
    %v4233 = vand.u32 %v4232, 4294901760
    %4234 = vmatpush.msra.mxu0 %v4233
    %v4235 = vand.u32 %v3316, 4294901760
    %v4236 = vsub.f32 %v3316, %v4235
    %v4237 = vand.u32 %v4236, 4294901760
    %4238 = vmatpush.msra.mxu0 %v4237
    %v4239 = vand.u32 %v3393, 4294901760
    %4240 = vmatmul.f32.gmra.mxu0 %v4239
    %v4241 = vpop.f32.mrf.mxu0
    %v4242 = vadd.f32 %v4155, %v4241
    %v4243 = vand.u32 %v3397, 4294901760
    %4244 = vmatmul.f32.gmra.mxu0 %v4243
    %v4245 = vpop.f32.mrf.mxu0
    %v4246 = vadd.f32 %v4161, %v4245
    %v4247 = vand.u32 %v3401, 4294901760
    %4248 = vmatmul.f32.gmra.mxu0 %v4247
    %v4249 = vpop.f32.mrf.mxu0
    %v4250 = vadd.f32 %v4167, %v4249
    %v4251 = vand.u32 %v3405, 4294901760
    %4252 = vmatmul.f32.gmra.mxu0 %v4251
    %v4253 = vpop.f32.mrf.mxu0
    %v4254 = vadd.f32 %v4173, %v4253
    %4255 = vdwg.mxu0
    %v4256 = vand.u32 %v3343, 4294901760
    %4257 = vmatpush.msra.mxu0 %v4256
    %v4258 = vand.u32 %v3342, 4294901760
    %4259 = vmatpush.msra.mxu0 %v4258
    %v4260 = vand.u32 %v3341, 4294901760
    %4261 = vmatpush.msra.mxu0 %v4260
    %v4262 = vand.u32 %v3340, 4294901760
    %4263 = vmatpush.msra.mxu0 %v4262
    %v4264 = vand.u32 %v3335, 4294901760
    %4265 = vmatpush.msra.mxu0 %v4264
    %v4266 = vand.u32 %v3334, 4294901760
    %4267 = vmatpush.msra.mxu0 %v4266
    %v4268 = vand.u32 %v3333, 4294901760
    %4269 = vmatpush.msra.mxu0 %v4268
    %v4270 = vand.u32 %v3332, 4294901760
    %4271 = vmatpush.msra.mxu0 %v4270
    %v4272 = vand.u32 %v3327, 4294901760
    %4273 = vmatpush.msra.mxu0 %v4272
    %v4274 = vand.u32 %v3326, 4294901760
    %4275 = vmatpush.msra.mxu0 %v4274
    %v4276 = vand.u32 %v3325, 4294901760
    %4277 = vmatpush.msra.mxu0 %v4276
    %v4278 = vand.u32 %v3324, 4294901760
    %4279 = vmatpush.msra.mxu0 %v4278
    %v4280 = vand.u32 %v3319, 4294901760
    %4281 = vmatpush.msra.mxu0 %v4280
    %v4282 = vand.u32 %v3318, 4294901760
    %4283 = vmatpush.msra.mxu0 %v4282
    %v4284 = vand.u32 %v3317, 4294901760
    %4285 = vmatpush.msra.mxu0 %v4284
    %v4286 = vand.u32 %v3316, 4294901760
    %4287 = vmatpush.msra.mxu0 %v4286
    %v4288 = vand.u32 %v3393, 4294901760
    %4289 = vmatmul.f32.gmra.mxu0 %v4288
    %v4290 = vpop.f32.mrf.mxu0
    %v4291 = vadd.f32 %v4242, %v4290
    %v4292 = vand.u32 %v3397, 4294901760
    %4293 = vmatmul.f32.gmra.mxu0 %v4292
    %v4294 = vpop.f32.mrf.mxu0
    %v4295 = vadd.f32 %v4246, %v4294
    %v4296 = vand.u32 %v3401, 4294901760
    %4297 = vmatmul.f32.gmra.mxu0 %v4296
    %v4298 = vpop.f32.mrf.mxu0
    %v4299 = vadd.f32 %v4250, %v4298
    %v4300 = vand.u32 %v3405, 4294901760
    %4301 = vmatmul.f32.gmra.mxu0 %v4300
    %v4302 = vpop.f32.mrf.mxu0
    %v4303 = vadd.f32 %v4254, %v4302
    %4304 = vdwg.mxu0
    %v4305 = vand.u32 %v3375, 4294901760
    %4306 = vmatpush.msra.mxu0 %v4305
    %v4307 = vand.u32 %v3374, 4294901760
    %4308 = vmatpush.msra.mxu0 %v4307
    %v4309 = vand.u32 %v3373, 4294901760
    %4310 = vmatpush.msra.mxu0 %v4309
    %v4311 = vand.u32 %v3372, 4294901760
    %4312 = vmatpush.msra.mxu0 %v4311
    %v4313 = vand.u32 %v3367, 4294901760
    %4314 = vmatpush.msra.mxu0 %v4313
    %v4315 = vand.u32 %v3366, 4294901760
    %4316 = vmatpush.msra.mxu0 %v4315
    %v4317 = vand.u32 %v3365, 4294901760
    %4318 = vmatpush.msra.mxu0 %v4317
    %v4319 = vand.u32 %v3364, 4294901760
    %4320 = vmatpush.msra.mxu0 %v4319
    %v4321 = vand.u32 %v3359, 4294901760
    %4322 = vmatpush.msra.mxu0 %v4321
    %v4323 = vand.u32 %v3358, 4294901760
    %4324 = vmatpush.msra.mxu0 %v4323
    %v4325 = vand.u32 %v3357, 4294901760
    %4326 = vmatpush.msra.mxu0 %v4325
    %v4327 = vand.u32 %v3356, 4294901760
    %4328 = vmatpush.msra.mxu0 %v4327
    %v4329 = vand.u32 %v3351, 4294901760
    %4330 = vmatpush.msra.mxu0 %v4329
    %v4331 = vand.u32 %v3350, 4294901760
    %4332 = vmatpush.msra.mxu0 %v4331
    %v4333 = vand.u32 %v3349, 4294901760
    %4334 = vmatpush.msra.mxu0 %v4333
    %v4335 = vand.u32 %v3348, 4294901760
    %4336 = vmatpush.msra.mxu0 %v4335
    %v4337 = vand.u32 %v3394, 4294901760
    %v4338 = vsub.f32 %v3394, %v4337
    %v4339 = vand.u32 %v4338, 4294901760
    %v4340 = vsub.f32 %v4338, %v4339
    %v4341 = vand.u32 %v4340, 4294901760
    %4342 = vmatmul.f32.gmra.mxu0 %v4341
    %v4343 = vpop.f32.mrf.mxu0
    %v4344 = vadd.f32 %v4291, %v4343
    %v4345 = vand.u32 %v3398, 4294901760
    %v4346 = vsub.f32 %v3398, %v4345
    %v4347 = vand.u32 %v4346, 4294901760
    %v4348 = vsub.f32 %v4346, %v4347
    %v4349 = vand.u32 %v4348, 4294901760
    %4350 = vmatmul.f32.gmra.mxu0 %v4349
    %v4351 = vpop.f32.mrf.mxu0
    %v4352 = vadd.f32 %v4295, %v4351
    %v4353 = vand.u32 %v3402, 4294901760
    %v4354 = vsub.f32 %v3402, %v4353
    %v4355 = vand.u32 %v4354, 4294901760
    %v4356 = vsub.f32 %v4354, %v4355
    %v4357 = vand.u32 %v4356, 4294901760
    %4358 = vmatmul.f32.gmra.mxu0 %v4357
    %v4359 = vpop.f32.mrf.mxu0
    %v4360 = vadd.f32 %v4299, %v4359
    %v4361 = vand.u32 %v3406, 4294901760
    %v4362 = vsub.f32 %v3406, %v4361
    %v4363 = vand.u32 %v4362, 4294901760
    %v4364 = vsub.f32 %v4362, %v4363
    %v4365 = vand.u32 %v4364, 4294901760
    %4366 = vmatmul.f32.gmra.mxu0 %v4365
    %v4367 = vpop.f32.mrf.mxu0
    %v4368 = vadd.f32 %v4303, %v4367
    %4369 = vdwg.mxu0
    %v4370 = vand.u32 %v3375, 4294901760
    %v4371 = vsub.f32 %v3375, %v4370
    %v4372 = vand.u32 %v4371, 4294901760
    %v4373 = vsub.f32 %v4371, %v4372
    %v4374 = vand.u32 %v4373, 4294901760
    %4375 = vmatpush.msra.mxu0 %v4374
    %v4376 = vand.u32 %v3374, 4294901760
    %v4377 = vsub.f32 %v3374, %v4376
    %v4378 = vand.u32 %v4377, 4294901760
    %v4379 = vsub.f32 %v4377, %v4378
    %v4380 = vand.u32 %v4379, 4294901760
    %4381 = vmatpush.msra.mxu0 %v4380
    %v4382 = vand.u32 %v3373, 4294901760
    %v4383 = vsub.f32 %v3373, %v4382
    %v4384 = vand.u32 %v4383, 4294901760
    %v4385 = vsub.f32 %v4383, %v4384
    %v4386 = vand.u32 %v4385, 4294901760
    %4387 = vmatpush.msra.mxu0 %v4386
    %v4388 = vand.u32 %v3372, 4294901760
    %v4389 = vsub.f32 %v3372, %v4388
    %v4390 = vand.u32 %v4389, 4294901760
    %v4391 = vsub.f32 %v4389, %v4390
    %v4392 = vand.u32 %v4391, 4294901760
    %4393 = vmatpush.msra.mxu0 %v4392
    %v4394 = vand.u32 %v3367, 4294901760
    %v4395 = vsub.f32 %v3367, %v4394
    %v4396 = vand.u32 %v4395, 4294901760
    %v4397 = vsub.f32 %v4395, %v4396
    %v4398 = vand.u32 %v4397, 4294901760
    %4399 = vmatpush.msra.mxu0 %v4398
    %v4400 = vand.u32 %v3366, 4294901760
    %v4401 = vsub.f32 %v3366, %v4400
    %v4402 = vand.u32 %v4401, 4294901760
    %v4403 = vsub.f32 %v4401, %v4402
    %v4404 = vand.u32 %v4403, 4294901760
    %4405 = vmatpush.msra.mxu0 %v4404
    %v4406 = vand.u32 %v3365, 4294901760
    %v4407 = vsub.f32 %v3365, %v4406
    %v4408 = vand.u32 %v4407, 4294901760
    %v4409 = vsub.f32 %v4407, %v4408
    %v4410 = vand.u32 %v4409, 4294901760
    %4411 = vmatpush.msra.mxu0 %v4410
    %v4412 = vand.u32 %v3364, 4294901760
    %v4413 = vsub.f32 %v3364, %v4412
    %v4414 = vand.u32 %v4413, 4294901760
    %v4415 = vsub.f32 %v4413, %v4414
    %v4416 = vand.u32 %v4415, 4294901760
    %4417 = vmatpush.msra.mxu0 %v4416
    %v4418 = vand.u32 %v3359, 4294901760
    %v4419 = vsub.f32 %v3359, %v4418
    %v4420 = vand.u32 %v4419, 4294901760
    %v4421 = vsub.f32 %v4419, %v4420
    %v4422 = vand.u32 %v4421, 4294901760
    %4423 = vmatpush.msra.mxu0 %v4422
    %v4424 = vand.u32 %v3358, 4294901760
    %v4425 = vsub.f32 %v3358, %v4424
    %v4426 = vand.u32 %v4425, 4294901760
    %v4427 = vsub.f32 %v4425, %v4426
    %v4428 = vand.u32 %v4427, 4294901760
    %4429 = vmatpush.msra.mxu0 %v4428
    %v4430 = vand.u32 %v3357, 4294901760
    %v4431 = vsub.f32 %v3357, %v4430
    %v4432 = vand.u32 %v4431, 4294901760
    %v4433 = vsub.f32 %v4431, %v4432
    %v4434 = vand.u32 %v4433, 4294901760
    %4435 = vmatpush.msra.mxu0 %v4434
    %v4436 = vand.u32 %v3356, 4294901760
    %v4437 = vsub.f32 %v3356, %v4436
    %v4438 = vand.u32 %v4437, 4294901760
    %v4439 = vsub.f32 %v4437, %v4438
    %v4440 = vand.u32 %v4439, 4294901760
    %4441 = vmatpush.msra.mxu0 %v4440
    %v4442 = vand.u32 %v3351, 4294901760
    %v4443 = vsub.f32 %v3351, %v4442
    %v4444 = vand.u32 %v4443, 4294901760
    %v4445 = vsub.f32 %v4443, %v4444
    %v4446 = vand.u32 %v4445, 4294901760
    %4447 = vmatpush.msra.mxu0 %v4446
    %v4448 = vand.u32 %v3350, 4294901760
    %v4449 = vsub.f32 %v3350, %v4448
    %v4450 = vand.u32 %v4449, 4294901760
    %v4451 = vsub.f32 %v4449, %v4450
    %v4452 = vand.u32 %v4451, 4294901760
    %4453 = vmatpush.msra.mxu0 %v4452
    %v4454 = vand.u32 %v3349, 4294901760
    %v4455 = vsub.f32 %v3349, %v4454
    %v4456 = vand.u32 %v4455, 4294901760
    %v4457 = vsub.f32 %v4455, %v4456
    %v4458 = vand.u32 %v4457, 4294901760
    %4459 = vmatpush.msra.mxu0 %v4458
    %v4460 = vand.u32 %v3348, 4294901760
    %v4461 = vsub.f32 %v3348, %v4460
    %v4462 = vand.u32 %v4461, 4294901760
    %v4463 = vsub.f32 %v4461, %v4462
    %v4464 = vand.u32 %v4463, 4294901760
    %4465 = vmatpush.msra.mxu0 %v4464
    %v4466 = vand.u32 %v3394, 4294901760
    %4467 = vmatmul.f32.gmra.mxu0 %v4466
    %v4468 = vpop.f32.mrf.mxu0
    %v4469 = vadd.f32 %v4344, %v4468
    %v4470 = vand.u32 %v3398, 4294901760
    %4471 = vmatmul.f32.gmra.mxu0 %v4470
    %v4472 = vpop.f32.mrf.mxu0
    %v4473 = vadd.f32 %v4352, %v4472
    %v4474 = vand.u32 %v3402, 4294901760
    %4475 = vmatmul.f32.gmra.mxu0 %v4474
    %v4476 = vpop.f32.mrf.mxu0
    %v4477 = vadd.f32 %v4360, %v4476
    %v4478 = vand.u32 %v3406, 4294901760
    %4479 = vmatmul.f32.gmra.mxu0 %v4478
    %v4480 = vpop.f32.mrf.mxu0
    %v4481 = vadd.f32 %v4368, %v4480
    %4482 = vdwg.mxu0
    %v4483 = vand.u32 %v3375, 4294901760
    %v4484 = vsub.f32 %v3375, %v4483
    %4485 = vmatpush.msra.mxu0 %v4484
    %v4486 = vand.u32 %v3374, 4294901760
    %v4487 = vsub.f32 %v3374, %v4486
    %4488 = vmatpush.msra.mxu0 %v4487
    %v4489 = vand.u32 %v3373, 4294901760
    %v4490 = vsub.f32 %v3373, %v4489
    %4491 = vmatpush.msra.mxu0 %v4490
    %v4492 = vand.u32 %v3372, 4294901760
    %v4493 = vsub.f32 %v3372, %v4492
    %4494 = vmatpush.msra.mxu0 %v4493
    %v4495 = vand.u32 %v3367, 4294901760
    %v4496 = vsub.f32 %v3367, %v4495
    %4497 = vmatpush.msra.mxu0 %v4496
    %v4498 = vand.u32 %v3366, 4294901760
    %v4499 = vsub.f32 %v3366, %v4498
    %4500 = vmatpush.msra.mxu0 %v4499
    %v4501 = vand.u32 %v3365, 4294901760
    %v4502 = vsub.f32 %v3365, %v4501
    %4503 = vmatpush.msra.mxu0 %v4502
    %v4504 = vand.u32 %v3364, 4294901760
    %v4505 = vsub.f32 %v3364, %v4504
    %4506 = vmatpush.msra.mxu0 %v4505
    %v4507 = vand.u32 %v3359, 4294901760
    %v4508 = vsub.f32 %v3359, %v4507
    %4509 = vmatpush.msra.mxu0 %v4508
    %v4510 = vand.u32 %v3358, 4294901760
    %v4511 = vsub.f32 %v3358, %v4510
    %4512 = vmatpush.msra.mxu0 %v4511
    %v4513 = vand.u32 %v3357, 4294901760
    %v4514 = vsub.f32 %v3357, %v4513
    %4515 = vmatpush.msra.mxu0 %v4514
    %v4516 = vand.u32 %v3356, 4294901760
    %v4517 = vsub.f32 %v3356, %v4516
    %4518 = vmatpush.msra.mxu0 %v4517
    %v4519 = vand.u32 %v3351, 4294901760
    %v4520 = vsub.f32 %v3351, %v4519
    %4521 = vmatpush.msra.mxu0 %v4520
    %v4522 = vand.u32 %v3350, 4294901760
    %v4523 = vsub.f32 %v3350, %v4522
    %4524 = vmatpush.msra.mxu0 %v4523
    %v4525 = vand.u32 %v3349, 4294901760
    %v4526 = vsub.f32 %v3349, %v4525
    %4527 = vmatpush.msra.mxu0 %v4526
    %v4528 = vand.u32 %v3348, 4294901760
    %v4529 = vsub.f32 %v3348, %v4528
    %4530 = vmatpush.msra.mxu0 %v4529
    %v4531 = vand.u32 %v3394, 4294901760
    %v4532 = vsub.f32 %v3394, %v4531
    %4533 = vmatmul.f32.gmra.mxu0 %v4532
    %v4534 = vpop.f32.mrf.mxu0
    %v4535 = vadd.f32 %v4469, %v4534
    %v4536 = vand.u32 %v3398, 4294901760
    %v4537 = vsub.f32 %v3398, %v4536
    %4538 = vmatmul.f32.gmra.mxu0 %v4537
    %v4539 = vpop.f32.mrf.mxu0
    %v4540 = vadd.f32 %v4473, %v4539
    %v4541 = vand.u32 %v3402, 4294901760
    %v4542 = vsub.f32 %v3402, %v4541
    %4543 = vmatmul.f32.gmra.mxu0 %v4542
    %v4544 = vpop.f32.mrf.mxu0
    %v4545 = vadd.f32 %v4477, %v4544
    %v4546 = vand.u32 %v3406, 4294901760
    %v4547 = vsub.f32 %v3406, %v4546
    %4548 = vmatmul.f32.gmra.mxu0 %v4547
    %v4549 = vpop.f32.mrf.mxu0
    %v4550 = vadd.f32 %v4481, %v4549
    %4551 = vdwg.mxu0
    %v4552 = vand.u32 %v3375, 4294901760
    %4553 = vmatpush.msra.mxu0 %v4552
    %v4554 = vand.u32 %v3374, 4294901760
    %4555 = vmatpush.msra.mxu0 %v4554
    %v4556 = vand.u32 %v3373, 4294901760
    %4557 = vmatpush.msra.mxu0 %v4556
    %v4558 = vand.u32 %v3372, 4294901760
    %4559 = vmatpush.msra.mxu0 %v4558
    %v4560 = vand.u32 %v3367, 4294901760
    %4561 = vmatpush.msra.mxu0 %v4560
    %v4562 = vand.u32 %v3366, 4294901760
    %4563 = vmatpush.msra.mxu0 %v4562
    %v4564 = vand.u32 %v3365, 4294901760
    %4565 = vmatpush.msra.mxu0 %v4564
    %v4566 = vand.u32 %v3364, 4294901760
    %4567 = vmatpush.msra.mxu0 %v4566
    %v4568 = vand.u32 %v3359, 4294901760
    %4569 = vmatpush.msra.mxu0 %v4568
    %v4570 = vand.u32 %v3358, 4294901760
    %4571 = vmatpush.msra.mxu0 %v4570
    %v4572 = vand.u32 %v3357, 4294901760
    %4573 = vmatpush.msra.mxu0 %v4572
    %v4574 = vand.u32 %v3356, 4294901760
    %4575 = vmatpush.msra.mxu0 %v4574
    %v4576 = vand.u32 %v3351, 4294901760
    %4577 = vmatpush.msra.mxu0 %v4576
    %v4578 = vand.u32 %v3350, 4294901760
    %4579 = vmatpush.msra.mxu0 %v4578
    %v4580 = vand.u32 %v3349, 4294901760
    %4581 = vmatpush.msra.mxu0 %v4580
    %v4582 = vand.u32 %v3348, 4294901760
    %4583 = vmatpush.msra.mxu0 %v4582
    %v4584 = vand.u32 %v3394, 4294901760
    %v4585 = vsub.f32 %v3394, %v4584
    %v4586 = vand.u32 %v4585, 4294901760
    %4587 = vmatmul.f32.gmra.mxu0 %v4586
    %v4588 = vpop.f32.mrf.mxu0
    %v4589 = vadd.f32 %v4535, %v4588
    %v4590 = vand.u32 %v3398, 4294901760
    %v4591 = vsub.f32 %v3398, %v4590
    %v4592 = vand.u32 %v4591, 4294901760
    %4593 = vmatmul.f32.gmra.mxu0 %v4592
    %v4594 = vpop.f32.mrf.mxu0
    %v4595 = vadd.f32 %v4540, %v4594
    %v4596 = vand.u32 %v3402, 4294901760
    %v4597 = vsub.f32 %v3402, %v4596
    %v4598 = vand.u32 %v4597, 4294901760
    %4599 = vmatmul.f32.gmra.mxu0 %v4598
    %v4600 = vpop.f32.mrf.mxu0
    %v4601 = vadd.f32 %v4545, %v4600
    %v4602 = vand.u32 %v3406, 4294901760
    %v4603 = vsub.f32 %v3406, %v4602
    %v4604 = vand.u32 %v4603, 4294901760
    %4605 = vmatmul.f32.gmra.mxu0 %v4604
    %v4606 = vpop.f32.mrf.mxu0
    %v4607 = vadd.f32 %v4550, %v4606
    %4608 = vdwg.mxu0
    %v4609 = vand.u32 %v3375, 4294901760
    %v4610 = vsub.f32 %v3375, %v4609
    %v4611 = vand.u32 %v4610, 4294901760
    %4612 = vmatpush.msra.mxu0 %v4611
    %v4613 = vand.u32 %v3374, 4294901760
    %v4614 = vsub.f32 %v3374, %v4613
    %v4615 = vand.u32 %v4614, 4294901760
    %4616 = vmatpush.msra.mxu0 %v4615
    %v4617 = vand.u32 %v3373, 4294901760
    %v4618 = vsub.f32 %v3373, %v4617
    %v4619 = vand.u32 %v4618, 4294901760
    %4620 = vmatpush.msra.mxu0 %v4619
    %v4621 = vand.u32 %v3372, 4294901760
    %v4622 = vsub.f32 %v3372, %v4621
    %v4623 = vand.u32 %v4622, 4294901760
    %4624 = vmatpush.msra.mxu0 %v4623
    %v4625 = vand.u32 %v3367, 4294901760
    %v4626 = vsub.f32 %v3367, %v4625
    %v4627 = vand.u32 %v4626, 4294901760
    %4628 = vmatpush.msra.mxu0 %v4627
    %v4629 = vand.u32 %v3366, 4294901760
    %v4630 = vsub.f32 %v3366, %v4629
    %v4631 = vand.u32 %v4630, 4294901760
    %4632 = vmatpush.msra.mxu0 %v4631
    %v4633 = vand.u32 %v3365, 4294901760
    %v4634 = vsub.f32 %v3365, %v4633
    %v4635 = vand.u32 %v4634, 4294901760
    %4636 = vmatpush.msra.mxu0 %v4635
    %v4637 = vand.u32 %v3364, 4294901760
    %v4638 = vsub.f32 %v3364, %v4637
    %v4639 = vand.u32 %v4638, 4294901760
    %4640 = vmatpush.msra.mxu0 %v4639
    %v4641 = vand.u32 %v3359, 4294901760
    %v4642 = vsub.f32 %v3359, %v4641
    %v4643 = vand.u32 %v4642, 4294901760
    %4644 = vmatpush.msra.mxu0 %v4643
    %v4645 = vand.u32 %v3358, 4294901760
    %v4646 = vsub.f32 %v3358, %v4645
    %v4647 = vand.u32 %v4646, 4294901760
    %4648 = vmatpush.msra.mxu0 %v4647
    %v4649 = vand.u32 %v3357, 4294901760
    %v4650 = vsub.f32 %v3357, %v4649
    %v4651 = vand.u32 %v4650, 4294901760
    %4652 = vmatpush.msra.mxu0 %v4651
    %v4653 = vand.u32 %v3356, 4294901760
    %v4654 = vsub.f32 %v3356, %v4653
    %v4655 = vand.u32 %v4654, 4294901760
    %4656 = vmatpush.msra.mxu0 %v4655
    %v4657 = vand.u32 %v3351, 4294901760
    %v4658 = vsub.f32 %v3351, %v4657
    %v4659 = vand.u32 %v4658, 4294901760
    %4660 = vmatpush.msra.mxu0 %v4659
    %v4661 = vand.u32 %v3350, 4294901760
    %v4662 = vsub.f32 %v3350, %v4661
    %v4663 = vand.u32 %v4662, 4294901760
    %4664 = vmatpush.msra.mxu0 %v4663
    %v4665 = vand.u32 %v3349, 4294901760
    %v4666 = vsub.f32 %v3349, %v4665
    %v4667 = vand.u32 %v4666, 4294901760
    %4668 = vmatpush.msra.mxu0 %v4667
    %v4669 = vand.u32 %v3348, 4294901760
    %v4670 = vsub.f32 %v3348, %v4669
    %v4671 = vand.u32 %v4670, 4294901760
    %4672 = vmatpush.msra.mxu0 %v4671
    %v4673 = vand.u32 %v3394, 4294901760
    %4674 = vmatmul.f32.gmra.mxu0 %v4673
    %v4675 = vpop.f32.mrf.mxu0
    %v4676 = vadd.f32 %v4589, %v4675
    %v4677 = vand.u32 %v3398, 4294901760
    %4678 = vmatmul.f32.gmra.mxu0 %v4677
    %v4679 = vpop.f32.mrf.mxu0
    %v4680 = vadd.f32 %v4595, %v4679
    %v4681 = vand.u32 %v3402, 4294901760
    %4682 = vmatmul.f32.gmra.mxu0 %v4681
    %v4683 = vpop.f32.mrf.mxu0
    %v4684 = vadd.f32 %v4601, %v4683
    %v4685 = vand.u32 %v3406, 4294901760
    %4686 = vmatmul.f32.gmra.mxu0 %v4685
    %v4687 = vpop.f32.mrf.mxu0
    %v4688 = vadd.f32 %v4607, %v4687
    %4689 = vdwg.mxu0
    %v4690 = vand.u32 %v3375, 4294901760
    %4691 = vmatpush.msra.mxu0 %v4690
    %v4692 = vand.u32 %v3374, 4294901760
    %4693 = vmatpush.msra.mxu0 %v4692
    %v4694 = vand.u32 %v3373, 4294901760
    %4695 = vmatpush.msra.mxu0 %v4694
    %v4696 = vand.u32 %v3372, 4294901760
    %4697 = vmatpush.msra.mxu0 %v4696
    %v4698 = vand.u32 %v3367, 4294901760
    %4699 = vmatpush.msra.mxu0 %v4698
    %v4700 = vand.u32 %v3366, 4294901760
    %4701 = vmatpush.msra.mxu0 %v4700
    %v4702 = vand.u32 %v3365, 4294901760
    %4703 = vmatpush.msra.mxu0 %v4702
    %v4704 = vand.u32 %v3364, 4294901760
    %4705 = vmatpush.msra.mxu0 %v4704
    %v4706 = vand.u32 %v3359, 4294901760
    %4707 = vmatpush.msra.mxu0 %v4706
    %v4708 = vand.u32 %v3358, 4294901760
    %4709 = vmatpush.msra.mxu0 %v4708
    %v4710 = vand.u32 %v3357, 4294901760
    %4711 = vmatpush.msra.mxu0 %v4710
    %v4712 = vand.u32 %v3356, 4294901760
    %4713 = vmatpush.msra.mxu0 %v4712
    %v4714 = vand.u32 %v3351, 4294901760
    %4715 = vmatpush.msra.mxu0 %v4714
    %v4716 = vand.u32 %v3350, 4294901760
    %4717 = vmatpush.msra.mxu0 %v4716
    %v4718 = vand.u32 %v3349, 4294901760
    %4719 = vmatpush.msra.mxu0 %v4718
    %v4720 = vand.u32 %v3348, 4294901760
    %4721 = vmatpush.msra.mxu0 %v4720
    %v4722 = vand.u32 %v3394, 4294901760
    %4723 = vmatmul.f32.gmra.mxu0 %v4722
    %v4724 = vpop.f32.mrf.mxu0
    %v4725 = vadd.f32 %v4676, %v4724
    %v4726 = vand.u32 %v3398, 4294901760
    %4727 = vmatmul.f32.gmra.mxu0 %v4726
    %v4728 = vpop.f32.mrf.mxu0
    %v4729 = vadd.f32 %v4680, %v4728
    %v4730 = vand.u32 %v3402, 4294901760
    %4731 = vmatmul.f32.gmra.mxu0 %v4730
    %v4732 = vpop.f32.mrf.mxu0
    %v4733 = vadd.f32 %v4684, %v4732
    %v4734 = vand.u32 %v3406, 4294901760
    %4735 = vmatmul.f32.gmra.mxu0 %v4734
    %v4736 = vpop.f32.mrf.mxu0
    %v4737 = vadd.f32 %v4688, %v4736
    %4738 = vdwg.mxu0
    %4739 = vmatpush.msra.mxu0 0.0
    %4740 = vmatpush.msra.mxu0 0.0
    %4741 = vmatpush.msra.mxu0 0.0
    %4742 = vmatpush.msra.mxu0 0.0
    %4743 = vmatpush.msra.mxu0 0.0
    %4744 = vmatpush.msra.mxu0 0.0
    %4745 = vmatpush.msra.mxu0 0.0
    %4746 = vmatpush.msra.mxu0 0.0
    %v4747 = vand.u32 %v3391, 4294901760
    %4748 = vmatpush.msra.mxu0 %v4747
    %v4749 = vand.u32 %v3390, 4294901760
    %4750 = vmatpush.msra.mxu0 %v4749
    %v4751 = vand.u32 %v3389, 4294901760
    %4752 = vmatpush.msra.mxu0 %v4751
    %v4753 = vand.u32 %v3388, 4294901760
    %4754 = vmatpush.msra.mxu0 %v4753
    %v4755 = vand.u32 %v3383, 4294901760
    %4756 = vmatpush.msra.mxu0 %v4755
    %v4757 = vand.u32 %v3382, 4294901760
    %4758 = vmatpush.msra.mxu0 %v4757
    %v4759 = vand.u32 %v3381, 4294901760
    %4760 = vmatpush.msra.mxu0 %v4759
    %v4761 = vand.u32 %v3380, 4294901760
    %4762 = vmatpush.msra.mxu0 %v4761
    %v4763 = vand.u32 %v3426, 4294901760
    %v4764 = vsub.f32 %v3426, %v4763
    %v4765 = vand.u32 %v4764, 4294901760
    %v4766 = vsub.f32 %v4764, %v4765
    %v4767 = vand.u32 %v4766, 4294901760
    %4768 = vmatmul.f32.gmra.mxu0 %v4767
    %v4769 = vpop.f32.mrf.mxu0
    %v4770 = vadd.f32 %v4725, %v4769
    %v4771 = vand.u32 %v3429, 4294901760
    %v4772 = vsub.f32 %v3429, %v4771
    %v4773 = vand.u32 %v4772, 4294901760
    %v4774 = vsub.f32 %v4772, %v4773
    %v4775 = vand.u32 %v4774, 4294901760
    %4776 = vmatmul.f32.gmra.mxu0 %v4775
    %v4777 = vpop.f32.mrf.mxu0
    %v4778 = vadd.f32 %v4729, %v4777
    %v4779 = vand.u32 %v3432, 4294901760
    %v4780 = vsub.f32 %v3432, %v4779
    %v4781 = vand.u32 %v4780, 4294901760
    %v4782 = vsub.f32 %v4780, %v4781
    %v4783 = vand.u32 %v4782, 4294901760
    %4784 = vmatmul.f32.gmra.mxu0 %v4783
    %v4785 = vpop.f32.mrf.mxu0
    %v4786 = vadd.f32 %v4733, %v4785
    %v4787 = vand.u32 %v3435, 4294901760
    %v4788 = vsub.f32 %v3435, %v4787
    %v4789 = vand.u32 %v4788, 4294901760
    %v4790 = vsub.f32 %v4788, %v4789
    %v4791 = vand.u32 %v4790, 4294901760
    %4792 = vmatmul.f32.gmra.mxu0 %v4791
    %v4793 = vpop.f32.mrf.mxu0
    %v4794 = vadd.f32 %v4737, %v4793
    %4795 = vdwg.mxu0
    %4796 = vmatpush.msra.mxu0 0.0
    %4797 = vmatpush.msra.mxu0 0.0
    %4798 = vmatpush.msra.mxu0 0.0
    %4799 = vmatpush.msra.mxu0 0.0
    %4800 = vmatpush.msra.mxu0 0.0
    %4801 = vmatpush.msra.mxu0 0.0
    %4802 = vmatpush.msra.mxu0 0.0
    %4803 = vmatpush.msra.mxu0 0.0
    %v4804 = vand.u32 %v3391, 4294901760
    %v4805 = vsub.f32 %v3391, %v4804
    %v4806 = vand.u32 %v4805, 4294901760
    %v4807 = vsub.f32 %v4805, %v4806
    %v4808 = vand.u32 %v4807, 4294901760
    %4809 = vmatpush.msra.mxu0 %v4808
    %v4810 = vand.u32 %v3390, 4294901760
    %v4811 = vsub.f32 %v3390, %v4810
    %v4812 = vand.u32 %v4811, 4294901760
    %v4813 = vsub.f32 %v4811, %v4812
    %v4814 = vand.u32 %v4813, 4294901760
    %4815 = vmatpush.msra.mxu0 %v4814
    %v4816 = vand.u32 %v3389, 4294901760
    %v4817 = vsub.f32 %v3389, %v4816
    %v4818 = vand.u32 %v4817, 4294901760
    %v4819 = vsub.f32 %v4817, %v4818
    %v4820 = vand.u32 %v4819, 4294901760
    %4821 = vmatpush.msra.mxu0 %v4820
    %v4822 = vand.u32 %v3388, 4294901760
    %v4823 = vsub.f32 %v3388, %v4822
    %v4824 = vand.u32 %v4823, 4294901760
    %v4825 = vsub.f32 %v4823, %v4824
    %v4826 = vand.u32 %v4825, 4294901760
    %4827 = vmatpush.msra.mxu0 %v4826
    %v4828 = vand.u32 %v3383, 4294901760
    %v4829 = vsub.f32 %v3383, %v4828
    %v4830 = vand.u32 %v4829, 4294901760
    %v4831 = vsub.f32 %v4829, %v4830
    %v4832 = vand.u32 %v4831, 4294901760
    %4833 = vmatpush.msra.mxu0 %v4832
    %v4834 = vand.u32 %v3382, 4294901760
    %v4835 = vsub.f32 %v3382, %v4834
    %v4836 = vand.u32 %v4835, 4294901760
    %v4837 = vsub.f32 %v4835, %v4836
    %v4838 = vand.u32 %v4837, 4294901760
    %4839 = vmatpush.msra.mxu0 %v4838
    %v4840 = vand.u32 %v3381, 4294901760
    %v4841 = vsub.f32 %v3381, %v4840
    %v4842 = vand.u32 %v4841, 4294901760
    %v4843 = vsub.f32 %v4841, %v4842
    %v4844 = vand.u32 %v4843, 4294901760
    %4845 = vmatpush.msra.mxu0 %v4844
    %v4846 = vand.u32 %v3380, 4294901760
    %v4847 = vsub.f32 %v3380, %v4846
    %v4848 = vand.u32 %v4847, 4294901760
    %v4849 = vsub.f32 %v4847, %v4848
    %v4850 = vand.u32 %v4849, 4294901760
    %4851 = vmatpush.msra.mxu0 %v4850
    %v4852 = vand.u32 %v3426, 4294901760
    %4853 = vmatmul.f32.gmra.mxu0 %v4852
    %v4854 = vpop.f32.mrf.mxu0
    %v4855 = vadd.f32 %v4770, %v4854
    %v4856 = vand.u32 %v3429, 4294901760
    %4857 = vmatmul.f32.gmra.mxu0 %v4856
    %v4858 = vpop.f32.mrf.mxu0
    %v4859 = vadd.f32 %v4778, %v4858
    %v4860 = vand.u32 %v3432, 4294901760
    %4861 = vmatmul.f32.gmra.mxu0 %v4860
    %v4862 = vpop.f32.mrf.mxu0
    %v4863 = vadd.f32 %v4786, %v4862
    %v4864 = vand.u32 %v3435, 4294901760
    %4865 = vmatmul.f32.gmra.mxu0 %v4864
    %v4866 = vpop.f32.mrf.mxu0
    %v4867 = vadd.f32 %v4794, %v4866
    %4868 = vdwg.mxu0
    %4869 = vmatpush.msra.mxu0 0.0
    %4870 = vmatpush.msra.mxu0 0.0
    %4871 = vmatpush.msra.mxu0 0.0
    %4872 = vmatpush.msra.mxu0 0.0
    %4873 = vmatpush.msra.mxu0 0.0
    %4874 = vmatpush.msra.mxu0 0.0
    %4875 = vmatpush.msra.mxu0 0.0
    %4876 = vmatpush.msra.mxu0 0.0
    %v4877 = vand.u32 %v3391, 4294901760
    %v4878 = vsub.f32 %v3391, %v4877
    %4879 = vmatpush.msra.mxu0 %v4878
    %v4880 = vand.u32 %v3390, 4294901760
    %v4881 = vsub.f32 %v3390, %v4880
    %4882 = vmatpush.msra.mxu0 %v4881
    %v4883 = vand.u32 %v3389, 4294901760
    %v4884 = vsub.f32 %v3389, %v4883
    %4885 = vmatpush.msra.mxu0 %v4884
    %v4886 = vand.u32 %v3388, 4294901760
    %v4887 = vsub.f32 %v3388, %v4886
    %4888 = vmatpush.msra.mxu0 %v4887
    %v4889 = vand.u32 %v3383, 4294901760
    %v4890 = vsub.f32 %v3383, %v4889
    %4891 = vmatpush.msra.mxu0 %v4890
    %v4892 = vand.u32 %v3382, 4294901760
    %v4893 = vsub.f32 %v3382, %v4892
    %4894 = vmatpush.msra.mxu0 %v4893
    %v4895 = vand.u32 %v3381, 4294901760
    %v4896 = vsub.f32 %v3381, %v4895
    %4897 = vmatpush.msra.mxu0 %v4896
    %v4898 = vand.u32 %v3380, 4294901760
    %v4899 = vsub.f32 %v3380, %v4898
    %4900 = vmatpush.msra.mxu0 %v4899
    %v4901 = vand.u32 %v3426, 4294901760
    %v4902 = vsub.f32 %v3426, %v4901
    %4903 = vmatmul.f32.gmra.mxu0 %v4902
    %v4904 = vpop.f32.mrf.mxu0
    %v4905 = vadd.f32 %v4855, %v4904
    %v4906 = vand.u32 %v3429, 4294901760
    %v4907 = vsub.f32 %v3429, %v4906
    %4908 = vmatmul.f32.gmra.mxu0 %v4907
    %v4909 = vpop.f32.mrf.mxu0
    %v4910 = vadd.f32 %v4859, %v4909
    %v4911 = vand.u32 %v3432, 4294901760
    %v4912 = vsub.f32 %v3432, %v4911
    %4913 = vmatmul.f32.gmra.mxu0 %v4912
    %v4914 = vpop.f32.mrf.mxu0
    %v4915 = vadd.f32 %v4863, %v4914
    %v4916 = vand.u32 %v3435, 4294901760
    %v4917 = vsub.f32 %v3435, %v4916
    %4918 = vmatmul.f32.gmra.mxu0 %v4917
    %v4919 = vpop.f32.mrf.mxu0
    %v4920 = vadd.f32 %v4867, %v4919
    %4921 = vdwg.mxu0
    %4922 = vmatpush.msra.mxu0 0.0
    %4923 = vmatpush.msra.mxu0 0.0
    %4924 = vmatpush.msra.mxu0 0.0
    %4925 = vmatpush.msra.mxu0 0.0
    %4926 = vmatpush.msra.mxu0 0.0
    %4927 = vmatpush.msra.mxu0 0.0
    %4928 = vmatpush.msra.mxu0 0.0
    %4929 = vmatpush.msra.mxu0 0.0
    %v4930 = vand.u32 %v3391, 4294901760
    %4931 = vmatpush.msra.mxu0 %v4930
    %v4932 = vand.u32 %v3390, 4294901760
    %4933 = vmatpush.msra.mxu0 %v4932
    %v4934 = vand.u32 %v3389, 4294901760
    %4935 = vmatpush.msra.mxu0 %v4934
    %v4936 = vand.u32 %v3388, 4294901760
    %4937 = vmatpush.msra.mxu0 %v4936
    %v4938 = vand.u32 %v3383, 4294901760
    %4939 = vmatpush.msra.mxu0 %v4938
    %v4940 = vand.u32 %v3382, 4294901760
    %4941 = vmatpush.msra.mxu0 %v4940
    %v4942 = vand.u32 %v3381, 4294901760
    %4943 = vmatpush.msra.mxu0 %v4942
    %v4944 = vand.u32 %v3380, 4294901760
    %4945 = vmatpush.msra.mxu0 %v4944
    %v4946 = vand.u32 %v3426, 4294901760
    %v4947 = vsub.f32 %v3426, %v4946
    %v4948 = vand.u32 %v4947, 4294901760
    %4949 = vmatmul.f32.gmra.mxu0 %v4948
    %v4950 = vpop.f32.mrf.mxu0
    %v4951 = vadd.f32 %v4905, %v4950
    %v4952 = vand.u32 %v3429, 4294901760
    %v4953 = vsub.f32 %v3429, %v4952
    %v4954 = vand.u32 %v4953, 4294901760
    %4955 = vmatmul.f32.gmra.mxu0 %v4954
    %v4956 = vpop.f32.mrf.mxu0
    %v4957 = vadd.f32 %v4910, %v4956
    %v4958 = vand.u32 %v3432, 4294901760
    %v4959 = vsub.f32 %v3432, %v4958
    %v4960 = vand.u32 %v4959, 4294901760
    %4961 = vmatmul.f32.gmra.mxu0 %v4960
    %v4962 = vpop.f32.mrf.mxu0
    %v4963 = vadd.f32 %v4915, %v4962
    %v4964 = vand.u32 %v3435, 4294901760
    %v4965 = vsub.f32 %v3435, %v4964
    %v4966 = vand.u32 %v4965, 4294901760
    %4967 = vmatmul.f32.gmra.mxu0 %v4966
    %v4968 = vpop.f32.mrf.mxu0
    %v4969 = vadd.f32 %v4920, %v4968
    %4970 = vdwg.mxu0
    %4971 = vmatpush.msra.mxu0 0.0
    %4972 = vmatpush.msra.mxu0 0.0
    %4973 = vmatpush.msra.mxu0 0.0
    %4974 = vmatpush.msra.mxu0 0.0
    %4975 = vmatpush.msra.mxu0 0.0
    %4976 = vmatpush.msra.mxu0 0.0
    %4977 = vmatpush.msra.mxu0 0.0
    %4978 = vmatpush.msra.mxu0 0.0
    %v4979 = vand.u32 %v3391, 4294901760
    %v4980 = vsub.f32 %v3391, %v4979
    %v4981 = vand.u32 %v4980, 4294901760
    %4982 = vmatpush.msra.mxu0 %v4981
    %v4983 = vand.u32 %v3390, 4294901760
    %v4984 = vsub.f32 %v3390, %v4983
    %v4985 = vand.u32 %v4984, 4294901760
    %4986 = vmatpush.msra.mxu0 %v4985
    %v4987 = vand.u32 %v3389, 4294901760
    %v4988 = vsub.f32 %v3389, %v4987
    %v4989 = vand.u32 %v4988, 4294901760
    %4990 = vmatpush.msra.mxu0 %v4989
    %v4991 = vand.u32 %v3388, 4294901760
    %v4992 = vsub.f32 %v3388, %v4991
    %v4993 = vand.u32 %v4992, 4294901760
    %4994 = vmatpush.msra.mxu0 %v4993
    %v4995 = vand.u32 %v3383, 4294901760
    %v4996 = vsub.f32 %v3383, %v4995
    %v4997 = vand.u32 %v4996, 4294901760
    %4998 = vmatpush.msra.mxu0 %v4997
    %v4999 = vand.u32 %v3382, 4294901760
    %v5000 = vsub.f32 %v3382, %v4999
    %v5001 = vand.u32 %v5000, 4294901760
    %5002 = vmatpush.msra.mxu0 %v5001
    %v5003 = vand.u32 %v3381, 4294901760
    %v5004 = vsub.f32 %v3381, %v5003
    %v5005 = vand.u32 %v5004, 4294901760
    %5006 = vmatpush.msra.mxu0 %v5005
    %v5007 = vand.u32 %v3380, 4294901760
    %v5008 = vsub.f32 %v3380, %v5007
    %v5009 = vand.u32 %v5008, 4294901760
    %5010 = vmatpush.msra.mxu0 %v5009
    %v5011 = vand.u32 %v3426, 4294901760
    %5012 = vmatmul.f32.gmra.mxu0 %v5011
    %v5013 = vpop.f32.mrf.mxu0
    %v5014 = vadd.f32 %v4951, %v5013
    %v5015 = vand.u32 %v3429, 4294901760
    %5016 = vmatmul.f32.gmra.mxu0 %v5015
    %v5017 = vpop.f32.mrf.mxu0
    %v5018 = vadd.f32 %v4957, %v5017
    %v5019 = vand.u32 %v3432, 4294901760
    %5020 = vmatmul.f32.gmra.mxu0 %v5019
    %v5021 = vpop.f32.mrf.mxu0
    %v5022 = vadd.f32 %v4963, %v5021
    %v5023 = vand.u32 %v3435, 4294901760
    %5024 = vmatmul.f32.gmra.mxu0 %v5023
    %v5025 = vpop.f32.mrf.mxu0
    %v5026 = vadd.f32 %v4969, %v5025
    %5027 = vdwg.mxu0
    %5028 = vmatpush.msra.mxu0 0.0
    %5029 = vmatpush.msra.mxu0 0.0
    %5030 = vmatpush.msra.mxu0 0.0
    %5031 = vmatpush.msra.mxu0 0.0
    %5032 = vmatpush.msra.mxu0 0.0
    %5033 = vmatpush.msra.mxu0 0.0
    %5034 = vmatpush.msra.mxu0 0.0
    %5035 = vmatpush.msra.mxu0 0.0
    %v5036 = vand.u32 %v3391, 4294901760
    %5037 = vmatpush.msra.mxu0 %v5036
    %v5038 = vand.u32 %v3390, 4294901760
    %5039 = vmatpush.msra.mxu0 %v5038
    %v5040 = vand.u32 %v3389, 4294901760
    %5041 = vmatpush.msra.mxu0 %v5040
    %v5042 = vand.u32 %v3388, 4294901760
    %5043 = vmatpush.msra.mxu0 %v5042
    %v5044 = vand.u32 %v3383, 4294901760
    %5045 = vmatpush.msra.mxu0 %v5044
    %v5046 = vand.u32 %v3382, 4294901760
    %5047 = vmatpush.msra.mxu0 %v5046
    %v5048 = vand.u32 %v3381, 4294901760
    %5049 = vmatpush.msra.mxu0 %v5048
    %v5050 = vand.u32 %v3380, 4294901760
    %5051 = vmatpush.msra.mxu0 %v5050
    %v5052 = vand.u32 %v3426, 4294901760
    %5053 = vmatmul.f32.gmra.mxu0 %v5052
    %v5054 = vpop.f32.mrf.mxu0
    %v5055 = vadd.f32 %v5014, %v5054
    %v5056 = vand.u32 %v3429, 4294901760
    %5057 = vmatmul.f32.gmra.mxu0 %v5056
    %v5058 = vpop.f32.mrf.mxu0
    %v5059 = vadd.f32 %v5018, %v5058
    %v5060 = vand.u32 %v3432, 4294901760
    %5061 = vmatmul.f32.gmra.mxu0 %v5060
    %v5062 = vpop.f32.mrf.mxu0
    %v5063 = vadd.f32 %v5022, %v5062
    %v5064 = vand.u32 %v3435, 4294901760
    %5065 = vmatmul.f32.gmra.mxu0 %v5064
    %v5066 = vpop.f32.mrf.mxu0
    %v5067 = vadd.f32 %v5026, %v5066
    %5068 = vdwg.mxu0
    %vm5069 = vcmp.gt.f32.partialorder %v5055, 0.0
    %vm5070 = vcmp.gt.f32.partialorder %v5059, 0.0
    %vm5071 = vcmp.gt.f32.partialorder %v5063, 0.0
    %vm5072 = vcmp.gt.f32.partialorder %v5067, 0.0
    %v5073 = vmul.f32 %v5055, 0.2
    %v5074 = vmul.f32 %v5059, 0.2
    %v5075 = vmul.f32 %v5063, 0.2
    %v5076 = vmul.f32 %v5067, 0.2
    %v5077 = vsel %vm5069, %v5055, %v5073
    %v5078 = vsel %vm5070, %v5059, %v5074
    %v5079 = vsel %vm5071, %v5063, %v5075
    %v5080 = vsel %vm5072, %v5067, %v5076
    %5081 = vset.pattern.permute.xlu0 10
    %5082 = vperm.xlu0 %5081, %v55
    %v5083 = vpop.permute.xlu0 %5082
    %5085 = vset.pattern.permute.xlu0 10
    %5086 = vperm.xlu0 %5085, %v56
    %v5087 = vpop.permute.xlu0 %5086
    %5089 = vset.pattern.permute.xlu0 10
    %5090 = vperm.xlu0 %5089, %v57
    %v5091 = vpop.permute.xlu0 %5090
    %5093 = vset.pattern.permute.xlu0 10
    %5094 = vperm.xlu0 %5093, %v58
    %v5095 = vpop.permute.xlu0 %5094
    %v5097 = vmul.f32 %v5083, %v5077
    %v5098 = vmul.f32 %v5087, %v5078
    %v5099 = vmul.f32 %v5091, %v5079
    %v5100 = vmul.f32 %v5095, %v5080
    %v5101 = vsel %vm1975, %v5097, 0.0
    %v5102 = vsel %vm1975, %v5098, 0.0
    %v5103 = vadd.f32 %v5101, %v5102
    %v5104 = vsel %vm1975, %v5099, 0.0
    %v5105 = vadd.f32 %v5103, %v5104
    %v5106 = vsel %vm1975, %v5100, 0.0
    %v5107 = vadd.f32 %v5105, %v5106
    %v5108 = vrot.slane %v5107, 4
    %v5109 = vadd.f32 %v5107, %v5108
    %v5110 = vrot.slane %v5109, 2
    %v5111 = vadd.f32 %v5109, %v5110
    %v5112 = vrot.slane %v5111, 1
    %v5113 = vadd.f32 %v5111, %v5112
    %5114 = vset.pattern.permute.xlu0 11
    %5115 = vperm.xlu0 %5114, %v55
    %v5116 = vpop.permute.xlu0 %5115
    %v5118 = vadd.f32 %v5113, %v5116
    %vm5119 = vcmask 24576
    %5120 = vst.msk [vmem:[#allocation2] sm:$0x1] %vm5119, %v5118
    // Predicated region
    $region14: #{discriminator_z_forward.1} parent=1 // pred_check
      _
    $region15: #{discriminator_z_forward.1} parent=1 // pred_check_branch
      %5122 = sbr.rel (0) target = $region17
    $region16: #{discriminator_z_forward.1} parent=1 // pred_region
      %5124 = vsyncadd [#allocation3], 0
      %s5126 = sshll.u32 [#allocation2], 4
      %s5127 = int_to_ptr.vmem [resolvable:$true] %s5126
      %s5128 = sshll.u32 %s3, 4
      %s5129 = int_to_ptr.hbm [resolvable:$true] %s5128
      %5131 = dma.vmem_to_hbm [thread:$0]  %s5127, 16, %s5129, [#allocation3]
    $region17: #{discriminator_z_forward.1} parent=1 // pred_fallthru
      _
    // Predicated region
    $region18: #{discriminator_z_forward.1} parent=1 // pred_check
      _
    $region19: #{discriminator_z_forward.1} parent=1 // pred_check_branch
      %5133 = sbr.rel (0) target = $region21
    $region20: #{discriminator_z_forward.1} parent=1 // pred_region
      %5135 = dma.done [#allocation3], 16
    $region21: #{discriminator_z_forward.1} parent=1 // pred_fallthru
      _
    %5136 = vsyncpa [#allocation3], 1

</llo_original>
